<compile_context>
chip_gen: v5e
topology: v5e:2x2
jax: 0.10.0
libtpu: 0.0.40
codegen_flags: <defaults>
</compile_context>

<pallas_src>
import functools

import numpy as np
import jax
import jax.numpy as jnp
from jax import lax
from jax.experimental import pallas as pl
from jax.experimental.pallas import tpu as pltpu


CFG = {
    "textual_converter": {"reduction": {"output_size": 32}},
    "simbase": {
        "pred": {"input_size": 128, "reg_dim": 2},
        "multi_scale_loc": {
            "conv1_kernel_size": 3,
            "overlap_a_kernel_size": 3,
            "overlap_b_kernel_size": 3,
            "reg_a_kernel_size": 3,
            "reg_b_kernel_size": 3,
        },
        "anchor": {
            "feature_map_len": [8, 4],
            "scale_ratios_anchor1": [0.5, 0.75, 1.0],
            "scale_ratios_anchor2": [0.5, 0.75, 1.0],
        },
    },
}

_CPAD = 128  # lane padding: per-tap weight-column block width / channel vectors


def _vmem():
    return pl.BlockSpec(memory_space=pltpu.MemorySpace.VMEM)


# ----------------------------- fused kernel ----------------------------------

def _fused_kernel(B, plan, n_anchor, x_ref, w_ref, vec_ref, *rest):
    """Whole MultiScaleLocalization forward.

    Activations are 2-D slabs: rows = B*L (batch-major), cols = channels.
    """
    out_refs = rest[:n_anchor]
    ds_buf = rest[n_anchor]  # (B*T, 128) f32 scratch for even-row picks

    def even_rows(v, l_in, l_out):
        # Per-batch pick of rows b*l_in + 2*j, j < l_out (v is (B*l_in, 128) f32).
        m_in = B * l_in
        ds_buf[0:m_in, :] = v
        parts = [ds_buf[pl.ds(b * l_in, l_out, stride=2), :] for b in range(B)]
        return parts[0] if B == 1 else jnp.concatenate(parts, axis=0)

    def conv(h, st):
        idx, K, c_out = st["idx"], st["k"], st["c_out"]
        l_in, l_out, stride = st["l_in"], st["l_out"], st["stride"]
        m = B * l_in
        v = vec_ref[idx]                                   # (3, 128) f32
        if st["bn"]:                                       # eval-BN affine + ReLU
            h = jnp.maximum(h * v[0:1, :] + v[1:2, :], 0.0)
        # Single tap-stacked MXU matmul (N = K * 128 lanes).
        z = jnp.dot(h.astype(jnp.bfloat16), w_ref[idx],
                    preferred_element_type=jnp.float32)    # (m, K*_CPAD) f32
        pad = K // 2
        acc = z[:, pad * _CPAD: pad * _CPAD + c_out]       # center tap
        if K > 1:
            row = lax.broadcasted_iota(jnp.int32, (m, 1), 0) % l_in
            for k in range(K):
                d = k - pad                                # tap offset in L
                if d == 0:
                    continue
                yk = z[:, k * _CPAD: k * _CPAD + c_out]
                # sh[r] = yk[r + d]  (jnp.roll convention: out[i] = in[i - s])
                sh = pltpu.roll(yk, shift=(-d) % m, axis=0)
                keep = (row >= -d) if d < 0 else (row <= l_in - 1 - d)
                acc = acc + jnp.where(keep, sh, 0.0)
        acc = acc + v[2:3, :c_out]                         # conv bias
        if stride == 2:                                    # stride-2 = even pick
            acc = even_rows(acc, l_in, l_out)
        return acc

    h = conv(x_ref[...], plan["conv1"])                    # conv1 (no BN)
    h = conv(h, plan["bnrc"])                              # BNReLUConv

    # MaxPool1d(2): max(h[2j], h[2j+1]) per batch, then even-row pick.
    lp_in, lp_out = plan["pool"]
    mp = B * lp_in
    h = jnp.maximum(h, pltpu.roll(h, shift=mp - 1, axis=0))  # pairs (r, r+1)
    h = even_rows(h, lp_in, lp_out)

    anchors = []
    for st in plan["conv_pool"]:                           # stride-2 pyramid
        h = conv(h, st)
        anchors.append(h)

    for i in range(n_anchor):                              # prediction heads
        st_oa, st_ob, st_ra, st_rb = plan["heads"][i]
        a = anchors[i]
        po = conv(conv(a, st_oa), st_ob)                   # overlap logits
        pr = jnp.tanh(conv(conv(a, st_ra), st_rb))         # reg (tanh)
        c_ov, c_rg = st_ob["c_out"], st_rb["c_out"]
        out_refs[i][:, 0:c_ov] = po                        # merged output slab
        out_refs[i][:, c_ov:c_ov + c_rg] = pr


# ----------------------------- parameters ------------------------------------

def _fold_bn(key, c):
    kg, kb, km, kv = jax.random.split(key, 4)
    gamma = 1.0 + 0.1 * jax.random.normal(kg, (c,), jnp.float32)
    beta = 0.1 * jax.random.normal(kb, (c,), jnp.float32)
    mean = 0.1 * jax.random.normal(km, (c,), jnp.float32)
    var = 1.0 + 0.1 * jnp.abs(jax.random.normal(kv, (c,), jnp.float32))
    scale = gamma / jnp.sqrt(var + 1e-5)
    return scale, beta - mean * scale


def _layer(key, c_in, c_out, k, stride, bn):
    kw, kb, kbn = jax.random.split(key, 3)
    ly = {
        "w": 0.05 * jax.random.normal(kw, (c_out, c_in, k), jnp.float32),  # OIK
        "b": 0.05 * jax.random.normal(kb, (c_out,), jnp.float32),
        "k": k, "stride": stride, "bn": bn,
    }
    if bn:
        ly["scale"], ly["shift"] = _fold_bn(kbn, c_in)
    return ly


def init_params(cfg, key):
    msl = cfg["simbase"]["multi_scale_loc"]
    anchor = cfg["simbase"]["anchor"]
    pred_in = cfg["simbase"]["pred"]["input_size"]
    reg_dim = cfg["simbase"]["pred"]["reg_dim"]
    c_text = cfg["textual_converter"]["reduction"]["output_size"]
    n_anchor = len(anchor["feature_map_len"])

    keys = iter(jax.random.split(key, 2 + 5 * n_anchor))
    # Stage order: conv1, bn_relu_conv, conv_pool*, [ov_a, ov_b, reg_a, reg_b]*.
    layers = [
        _layer(next(keys), c_text, pred_in, msl["conv1_kernel_size"], 1, False),
        _layer(next(keys), 128, 128, msl["conv1_kernel_size"], 1, True),
    ]
    for _ in range(n_anchor):
        layers.append(_layer(next(keys), 128, 128, 3, 2, True))
    for aid in range(1, n_anchor + 1):
        n_sc = len(anchor["scale_ratios_anchor%d" % aid])
        layers.append(_layer(next(keys), pred_in, pred_in,
                             msl["overlap_a_kernel_size"], 1, True))
        layers.append(_layer(next(keys), pred_in, n_sc,
                             msl["overlap_b_kernel_size"], 1, True))
        layers.append(_layer(next(keys), pred_in, pred_in,
                             msl["reg_a_kernel_size"], 1, True))
        layers.append(_layer(next(keys), pred_in, n_sc * reg_dim,
                             msl["reg_b_kernel_size"], 1, True))

    # ---- pack everything the kernel needs into two slabs (coalesced DMAs) ---
    k_max = max(ly["k"] for ly in layers)
    n_stage = len(layers)
    w_slab = np.zeros((n_stage, _CPAD, k_max * _CPAD), np.float32)
    vec_slab = np.zeros((n_stage, 3, _CPAD), np.float32)
    vec_slab[:, 0, :] = 1.0  # default affine scale (conv1 skips the affine)
    for i, ly in enumerate(layers):
        c_out, c_in, k = ly["w"].shape
        assert c_in <= _CPAD and c_out <= _CPAD
        w_np = np.asarray(ly["w"], np.float32)
        for kk in range(k):  # per-tap (C_in, C_out), lane-aligned column block
            w_slab[i, :c_in, kk * _CPAD: kk * _CPAD + c_out] = w_np[:, :, kk].T
        if ly["bn"]:
            vec_slab[i, 0, :c_in] = np.asarray(ly["scale"])
            vec_slab[i, 1, :c_in] = np.asarray(ly["shift"])
        vec_slab[i, 2, :c_out] = np.asarray(ly["b"])

    return {
        "layers": layers,                                   # raw (for reference)
        "w_slab": jnp.asarray(w_slab, jnp.bfloat16),
        "vec_slab": jnp.asarray(vec_slab, jnp.float32),
        "n_anchor": n_anchor,
    }


# ----------------------------- forward ----------------------------------------

def multi_scale_localization_forward(fusion_input, params, cfg):
    """fusion_input: (B, C_text, T) in PyTorch NCL layout."""
    B, c_text, T = fusion_input.shape
    assert c_text <= _CPAD
    layers = params["layers"]
    n_anchor = params["n_anchor"]

    def stage(idx, l_in):
        ly = layers[idx]
        k, stride = ly["k"], ly["stride"]
        l_out = (l_in + 2 * (k // 2) - k) // stride + 1
        return {"idx": idx, "k": k, "c_out": ly["w"].shape[0], "stride": stride,
                "l_in": l_in, "l_out": l_out, "bn": ly["bn"]}, l_out

    plan = {}
    L = T
    plan["conv1"], L = stage(0, L)
    plan["bnrc"], L = stage(1, L)
    plan["pool"] = (L, L // 2)
    L = L // 2
    plan["conv_pool"], anchor_lens = [], []
    for i in range(n_anchor):
        st, L = stage(2 + i, L)
        plan["conv_pool"].append(st)
        anchor_lens.append(L)
    plan["heads"], head_dims = [], []
    for i in range(n_anchor):
        base = 2 + n_anchor + 4 * i
        sts = [stage(base + j, anchor_lens[i])[0] for j in range(4)]
        plan["heads"].append(tuple(sts))
        head_dims.append((sts[1]["c_out"], sts[3]["c_out"]))

    # x: NCL -> (B*T, C), zero-pad channels to 128 lanes, bf16 (conv1 has no BN).
    x = jnp.transpose(fusion_input, (0, 2, 1)).reshape(B * T, c_text)
    x = jnp.pad(x, ((0, 0), (0, _CPAD - c_text))).astype(jnp.bfloat16)

    out_shapes = tuple(
        jax.ShapeDtypeStruct((B * anchor_lens[i], head_dims[i][0] + head_dims[i][1]),
                             jnp.float32)
        for i in range(n_anchor))

    outs = pl.pallas_call(
        functools.partial(_fused_kernel, B, plan, n_anchor),
        out_shape=out_shapes,
        in_specs=[_vmem(), _vmem(), _vmem()],
        out_specs=tuple(_vmem() for _ in out_shapes),
        scratch_shapes=[pltpu.VMEM((B * T, _CPAD), jnp.float32)],
    )(x, params["w_slab"], params["vec_slab"])

    predict_overlaps, predict_regs = [], []
    for i in range(n_anchor):
        la = anchor_lens[i]
        c_ov, c_rg = head_dims[i]
        o = outs[i]
        ov = o[:, :c_ov].reshape(B, la, c_ov)
        rg = o[:, c_ov:c_ov + c_rg].reshape(B, la, c_rg)
        predict_overlaps.append(jnp.transpose(ov, (0, 2, 1)))  # back to NCL
        predict_regs.append(jnp.transpose(rg, (0, 2, 1)))
    return predict_overlaps, predict_regs


# ----------------------------- plain-JAX reference ----------------------------

def reference_forward(fusion_input, params):
    layers = params["layers"]
    n_anchor = params["n_anchor"]

    def conv1d(x, ly):
        k = ly["k"]
        out = lax.conv_general_dilated(
            x, ly["w"], (ly["stride"],), [(k // 2, k // 2)],
            dimension_numbers=("NCH", "OIH", "NCH"))
        return out + ly["b"][None, :, None]

    def bnrc(x, ly):
        x = x * ly["scale"][None, :, None] + ly["shift"][None, :, None]
        return conv1d(jnp.maximum(x, 0.0), ly)

    x = conv1d(fusion_input, layers[0])
    x = bnrc(x, layers[1])
    B, C, L = x.shape
    x = x[:, :, :2 * (L // 2)].reshape(B, C, L // 2, 2).max(axis=-1)
    anchors = []
    for i in range(n_anchor):
        x = bnrc(x, layers[2 + i])
        anchors.append(x)
    ovs, rgs = [], []
    for i in range(n_anchor):
        base = 2 + n_anchor + 4 * i
        a = anchors[i]
        ovs.append(bnrc(bnrc(a, layers[base]), layers[base + 1]))
        rgs.append(jnp.tanh(bnrc(bnrc(a, layers[base + 2]), layers[base + 3])))
    return ovs, rgs


if __name__ == "__main__":
    key = jax.random.PRNGKey(0)
    pkey, xkey = jax.random.split(key)
    params = init_params(CFG, pkey)

    B = 2
    c_text = CFG["textual_converter"]["reduction"]["output_size"]
    T = 32  # -> pool:16 -> anchor lengths 8, 4 (matches feature_map_len)
    fusion_input = jax.random.normal(xkey, (B, c_text, T), jnp.float32)

    fwd = jax.jit(lambda inp: multi_scale_localization_forward(inp, params, CFG))
    overlaps, regs = fwd(fusion_input)
    jax.block_until_ready((overlaps, regs))

    assert overlaps[0].shape == (B, 3, 8) and overlaps[1].shape == (B, 3, 4)
    assert regs[0].shape == (B, 6, 8) and regs[1].shape == (B, 6, 4)

    ref_ov, ref_rg = reference_forward(fusion_input, params)
    for got, ref in list(zip(overlaps, ref_ov)) + list(zip(regs, ref_rg)):
        assert bool(jnp.all(jnp.isfinite(got)))
        err = float(jnp.max(jnp.abs(got - jnp.asarray(ref, jnp.float32))))
        assert err < 0.08, f"mismatch vs reference: max abs err {err}"
    print("KERNEL_OK")
</pallas_src>

<mosaic_0001>
module attributes {stable_mosaic.version = 11 : i64} {
  func.func @_fused_kernel(%arg0: memref<64x128xbf16, #tpu.memory_space<vmem>>, %arg1: memref<12x128x384xbf16, #tpu.memory_space<vmem>>, %arg2: memref<12x3x128xf32, #tpu.memory_space<vmem>>, %arg3: memref<16x9xf32, #tpu.memory_space<vmem>>, %arg4: memref<8x9xf32, #tpu.memory_space<vmem>>, %arg5: memref<64x128xf32, #tpu.memory_space<vmem>>) attributes {dimension_semantics = [], scalar_prefetch = 0 : i64, scratch_operands = 1 : i64, tpu.core_type = #tpu.core_type<tc>} {
    %c0 = arith.constant 0 : index
    %c0_0 = arith.constant 0 : index
    %0 = vector.load %arg0[%c0, %c0_0] : memref<64x128xbf16, #tpu.memory_space<vmem>>, vector<64x128xbf16>
    %c0_1 = arith.constant 0 : index
    %c0_2 = arith.constant 0 : index
    %c0_3 = arith.constant 0 : index
    %1 = vector.load %arg2[%c0_1, %c0_2, %c0_3] : memref<12x3x128xf32, #tpu.memory_space<vmem>>, vector<1x3x128xf32>
    %2 = vector.shape_cast %1 : vector<1x3x128xf32> to vector<3x128xf32>
    %c0_4 = arith.constant 0 : index
    %c0_5 = arith.constant 0 : index
    %c0_6 = arith.constant 0 : index
    %3 = vector.load %arg1[%c0_4, %c0_5, %c0_6] : memref<12x128x384xbf16, #tpu.memory_space<vmem>>, vector<1x128x384xbf16>
    %4 = vector.shape_cast %3 : vector<1x128x384xbf16> to vector<128x384xbf16>
    %cst = arith.constant dense<0.000000e+00> : vector<64x384xf32>
    %5 = tpu.matmul %0, %4, %cst {dimension_numbers = #tpu.dot_dimension_numbers<[1], [0], [0], [1], [0, 0, 1, 1], [], []>} : vector<64x128xbf16>, vector<128x384xbf16>, vector<64x384xf32> -> vector<64x384xf32>
    %6 = vector.extract_strided_slice %5 {offsets = [0, 128], sizes = [64, 128], strides = [1, 1]} : vector<64x384xf32> to vector<64x128xf32>
    %7 = tpu.iota {dimensions = array<i32: 0>} : vector<64x1xi32>
    %c32_i32 = arith.constant 32 : i32
    %c0_i32 = arith.constant 0 : i32
    %8 = arith.cmpi eq, %c32_i32, %c0_i32 : i32
    %c1_i32 = arith.constant 1 : i32
    %9 = arith.select %8, %c1_i32, %c32_i32 : i32
    %10 = vector.broadcast %9 : i32 to vector<64x1xi32>
    %11 = arith.remsi %7, %10 : vector<64x1xi32>
    %c0_i32_7 = arith.constant 0 : i32
    %12 = vector.broadcast %c0_i32_7 : i32 to vector<64x1xi32>
    %13 = arith.cmpi ne, %11, %12 : vector<64x1xi32>
    %c0_i32_8 = arith.constant 0 : i32
    %14 = vector.broadcast %c0_i32_8 : i32 to vector<64x1xi32>
    %15 = arith.cmpi slt, %11, %14 : vector<64x1xi32>
    %c0_i32_9 = arith.constant 0 : i32
    %16 = arith.cmpi slt, %9, %c0_i32_9 : i32
    %17 = vector.broadcast %16 : i1 to vector<64x1xi1>
    %18 = vector.broadcast %17 : vector<64x1xi1> to vector<64x1xi1>
    %19 = arith.xori %15, %18 : vector<64x1xi1>
    %20 = arith.andi %19, %13 : vector<64x1xi1>
    %21 = vector.broadcast %9 : i32 to vector<64x1xi32>
    %22 = arith.addi %11, %21 : vector<64x1xi32>
    %23 = arith.select %20, %22, %11 : vector<64x1xi1>, vector<64x1xi32>
    %24 = vector.extract_strided_slice %5 {offsets = [0, 0], sizes = [64, 128], strides = [1, 1]} : vector<64x384xf32> to vector<64x128xf32>
    %c1_i32_10 = arith.constant 1 : i32
    %25 = tpu.dynamic_rotate %24 by %c1_i32_10 dim 0 : vector<64x128xf32>, i32 -> vector<64x128xf32>
    %c1_i32_11 = arith.constant 1 : i32
    %26 = vector.broadcast %c1_i32_11 : i32 to vector<64x1xi32>
    %27 = arith.cmpi sge, %23, %26 : vector<64x1xi32>
    %cst_12 = arith.constant 0.000000e+00 : f32
    %28 = vector.shape_cast %27 : vector<64x1xi1> to vector<64x1xi1>
    %29 = vector.broadcast %28 : vector<64x1xi1> to vector<64x128xi1>
    %30 = vector.broadcast %cst_12 : f32 to vector<64x128xf32>
    %31 = arith.select %29, %25, %30 : vector<64x128xi1>, vector<64x128xf32>
    %32 = arith.addf %6, %31 : vector<64x128xf32>
    %33 = vector.extract_strided_slice %5 {offsets = [0, 256], sizes = [64, 128], strides = [1, 1]} : vector<64x384xf32> to vector<64x128xf32>
    %c63_i32 = arith.constant 63 : i32
    %34 = tpu.dynamic_rotate %33 by %c63_i32 dim 0 : vector<64x128xf32>, i32 -> vector<64x128xf32>
    %c30_i32 = arith.constant 30 : i32
    %35 = vector.broadcast %c30_i32 : i32 to vector<64x1xi32>
    %36 = arith.cmpi sle, %23, %35 : vector<64x1xi32>
    %cst_13 = arith.constant 0.000000e+00 : f32
    %37 = vector.shape_cast %36 : vector<64x1xi1> to vector<64x1xi1>
    %38 = vector.broadcast %37 : vector<64x1xi1> to vector<64x128xi1>
    %39 = vector.broadcast %cst_13 : f32 to vector<64x128xf32>
    %40 = arith.select %38, %34, %39 : vector<64x128xi1>, vector<64x128xf32>
    %41 = arith.addf %32, %40 : vector<64x128xf32>
    %42 = vector.extract_strided_slice %2 {offsets = [2, 0], sizes = [1, 128], strides = [1, 1]} : vector<3x128xf32> to vector<1x128xf32>
    %43 = vector.broadcast %42 : vector<1x128xf32> to vector<64x128xf32>
    %44 = arith.addf %41, %43 : vector<64x128xf32>
    %c1 = arith.constant 1 : index
    %c0_14 = arith.constant 0 : index
    %c0_15 = arith.constant 0 : index
    %45 = vector.load %arg2[%c1, %c0_14, %c0_15] : memref<12x3x128xf32, #tpu.memory_space<vmem>>, vector<1x3x128xf32>
    %46 = vector.shape_cast %45 : vector<1x3x128xf32> to vector<3x128xf32>
    %47 = vector.extract_strided_slice %46 {offsets = [0, 0], sizes = [1, 128], strides = [1, 1]} : vector<3x128xf32> to vector<1x128xf32>
    %48 = vector.broadcast %47 : vector<1x128xf32> to vector<64x128xf32>
    %49 = arith.mulf %44, %48 : vector<64x128xf32>
    %50 = vector.extract_strided_slice %46 {offsets = [1, 0], sizes = [1, 128], strides = [1, 1]} : vector<3x128xf32> to vector<1x128xf32>
    %51 = vector.broadcast %50 : vector<1x128xf32> to vector<64x128xf32>
    %52 = arith.addf %49, %51 : vector<64x128xf32>
    %cst_16 = arith.constant 0.000000e+00 : f32
    %53 = vector.broadcast %cst_16 : f32 to vector<64x128xf32>
    %54 = arith.maximumf %52, %53 : vector<64x128xf32>
    %55 = arith.truncf %54 : vector<64x128xf32> to vector<64x128xbf16>
    %c1_17 = arith.constant 1 : index
    %c0_18 = arith.constant 0 : index
    %c0_19 = arith.constant 0 : index
    %56 = vector.load %arg1[%c1_17, %c0_18, %c0_19] : memref<12x128x384xbf16, #tpu.memory_space<vmem>>, vector<1x128x384xbf16>
    %57 = vector.shape_cast %56 : vector<1x128x384xbf16> to vector<128x384xbf16>
    %cst_20 = arith.constant dense<0.000000e+00> : vector<64x384xf32>
    %58 = tpu.matmul %55, %57, %cst_20 {dimension_numbers = #tpu.dot_dimension_numbers<[1], [0], [0], [1], [0, 0, 1, 1], [], []>} : vector<64x128xbf16>, vector<128x384xbf16>, vector<64x384xf32> -> vector<64x384xf32>
    %59 = vector.extract_strided_slice %58 {offsets = [0, 128], sizes = [64, 128], strides = [1, 1]} : vector<64x384xf32> to vector<64x128xf32>
    %60 = tpu.iota {dimensions = array<i32: 0>} : vector<64x1xi32>
    %c32_i32_21 = arith.constant 32 : i32
    %c0_i32_22 = arith.constant 0 : i32
    %61 = arith.cmpi eq, %c32_i32_21, %c0_i32_22 : i32
    %c1_i32_23 = arith.constant 1 : i32
    %62 = arith.select %61, %c1_i32_23, %c32_i32_21 : i32
    %63 = vector.broadcast %62 : i32 to vector<64x1xi32>
    %64 = arith.remsi %60, %63 : vector<64x1xi32>
    %c0_i32_24 = arith.constant 0 : i32
    %65 = vector.broadcast %c0_i32_24 : i32 to vector<64x1xi32>
    %66 = arith.cmpi ne, %64, %65 : vector<64x1xi32>
    %c0_i32_25 = arith.constant 0 : i32
    %67 = vector.broadcast %c0_i32_25 : i32 to vector<64x1xi32>
    %68 = arith.cmpi slt, %64, %67 : vector<64x1xi32>
    %c0_i32_26 = arith.constant 0 : i32
    %69 = arith.cmpi slt, %62, %c0_i32_26 : i32
    %70 = vector.broadcast %69 : i1 to vector<64x1xi1>
    %71 = vector.broadcast %70 : vector<64x1xi1> to vector<64x1xi1>
    %72 = arith.xori %68, %71 : vector<64x1xi1>
    %73 = arith.andi %72, %66 : vector<64x1xi1>
    %74 = vector.broadcast %62 : i32 to vector<64x1xi32>
    %75 = arith.addi %64, %74 : vector<64x1xi32>
    %76 = arith.select %73, %75, %64 : vector<64x1xi1>, vector<64x1xi32>
    %77 = vector.extract_strided_slice %58 {offsets = [0, 0], sizes = [64, 128], strides = [1, 1]} : vector<64x384xf32> to vector<64x128xf32>
    %c1_i32_27 = arith.constant 1 : i32
    %78 = tpu.dynamic_rotate %77 by %c1_i32_27 dim 0 : vector<64x128xf32>, i32 -> vector<64x128xf32>
    %c1_i32_28 = arith.constant 1 : i32
    %79 = vector.broadcast %c1_i32_28 : i32 to vector<64x1xi32>
    %80 = arith.cmpi sge, %76, %79 : vector<64x1xi32>
    %cst_29 = arith.constant 0.000000e+00 : f32
    %81 = vector.shape_cast %80 : vector<64x1xi1> to vector<64x1xi1>
    %82 = vector.broadcast %81 : vector<64x1xi1> to vector<64x128xi1>
    %83 = vector.broadcast %cst_29 : f32 to vector<64x128xf32>
    %84 = arith.select %82, %78, %83 : vector<64x128xi1>, vector<64x128xf32>
    %85 = arith.addf %59, %84 : vector<64x128xf32>
    %86 = vector.extract_strided_slice %58 {offsets = [0, 256], sizes = [64, 128], strides = [1, 1]} : vector<64x384xf32> to vector<64x128xf32>
    %c63_i32_30 = arith.constant 63 : i32
    %87 = tpu.dynamic_rotate %86 by %c63_i32_30 dim 0 : vector<64x128xf32>, i32 -> vector<64x128xf32>
    %c30_i32_31 = arith.constant 30 : i32
    %88 = vector.broadcast %c30_i32_31 : i32 to vector<64x1xi32>
    %89 = arith.cmpi sle, %76, %88 : vector<64x1xi32>
    %cst_32 = arith.constant 0.000000e+00 : f32
    %90 = vector.shape_cast %89 : vector<64x1xi1> to vector<64x1xi1>
    %91 = vector.broadcast %90 : vector<64x1xi1> to vector<64x128xi1>
    %92 = vector.broadcast %cst_32 : f32 to vector<64x128xf32>
    %93 = arith.select %91, %87, %92 : vector<64x128xi1>, vector<64x128xf32>
    %94 = arith.addf %85, %93 : vector<64x128xf32>
    %95 = vector.extract_strided_slice %46 {offsets = [2, 0], sizes = [1, 128], strides = [1, 1]} : vector<3x128xf32> to vector<1x128xf32>
    %96 = vector.broadcast %95 : vector<1x128xf32> to vector<64x128xf32>
    %97 = arith.addf %94, %96 : vector<64x128xf32>
    %c63_i32_33 = arith.constant 63 : i32
    %98 = tpu.dynamic_rotate %97 by %c63_i32_33 dim 0 : vector<64x128xf32>, i32 -> vector<64x128xf32>
    %99 = arith.maximumf %97, %98 : vector<64x128xf32>
    %c0_34 = arith.constant 0 : index
    %c0_35 = arith.constant 0 : index
    %100 = vector.load %arg5[%c0_34, %c0_35] : memref<64x128xf32, #tpu.memory_space<vmem>>, vector<64x128xf32>
    tpu.vector_store %arg5[%c0_34, %c0_35], %99 {strides = array<i32>} : memref<64x128xf32, #tpu.memory_space<vmem>>, vector<64x128xf32>,
    %c0_36 = arith.constant 0 : index
    %c0_37 = arith.constant 0 : index
    %101 = tpu.strided_load %arg5[%c0_36, %c0_37] {strides = array<i32: 2, 1>} : memref<64x128xf32, #tpu.memory_space<vmem>>, vector<16x128xf32>
    %c32 = arith.constant 32 : index
    %c0_38 = arith.constant 0 : index
    %102 = tpu.strided_load %arg5[%c32, %c0_38] {strides = array<i32: 2, 1>} : memref<64x128xf32, #tpu.memory_space<vmem>>, vector<16x128xf32>
    %103 = tpu.concatenate %101, %102 in 0 : vector<16x128xf32>, vector<16x128xf32> -> vector<32x128xf32>
    %c2 = arith.constant 2 : index
    %c0_39 = arith.constant 0 : index
    %c0_40 = arith.constant 0 : index
    %104 = vector.load %arg2[%c2, %c0_39, %c0_40] : memref<12x3x128xf32, #tpu.memory_space<vmem>>, vector<1x3x128xf32>
    %105 = vector.shape_cast %104 : vector<1x3x128xf32> to vector<3x128xf32>
    %106 = vector.extract_strided_slice %105 {offsets = [0, 0], sizes = [1, 128], strides = [1, 1]} : vector<3x128xf32> to vector<1x128xf32>
    %107 = vector.broadcast %106 : vector<1x128xf32> to vector<32x128xf32>
    %108 = arith.mulf %103, %107 : vector<32x128xf32>
    %109 = vector.extract_strided_slice %105 {offsets = [1, 0], sizes = [1, 128], strides = [1, 1]} : vector<3x128xf32> to vector<1x128xf32>
    %110 = vector.broadcast %109 : vector<1x128xf32> to vector<32x128xf32>
    %111 = arith.addf %108, %110 : vector<32x128xf32>
    %cst_41 = arith.constant 0.000000e+00 : f32
    %112 = vector.broadcast %cst_41 : f32 to vector<32x128xf32>
    %113 = arith.maximumf %111, %112 : vector<32x128xf32>
    %114 = arith.truncf %113 : vector<32x128xf32> to vector<32x128xbf16>
    %c2_42 = arith.constant 2 : index
    %c0_43 = arith.constant 0 : index
    %c0_44 = arith.constant 0 : index
    %115 = vector.load %arg1[%c2_42, %c0_43, %c0_44] : memref<12x128x384xbf16, #tpu.memory_space<vmem>>, vector<1x128x384xbf16>
    %116 = vector.shape_cast %115 : vector<1x128x384xbf16> to vector<128x384xbf16>
    %cst_45 = arith.constant dense<0.000000e+00> : vector<32x384xf32>
    %117 = tpu.matmul %114, %116, %cst_45 {dimension_numbers = #tpu.dot_dimension_numbers<[1], [0], [0], [1], [0, 0, 1, 1], [], []>} : vector<32x128xbf16>, vector<128x384xbf16>, vector<32x384xf32> -> vector<32x384xf32>
    %118 = vector.extract_strided_slice %117 {offsets = [0, 128], sizes = [32, 128], strides = [1, 1]} : vector<32x384xf32> to vector<32x128xf32>
    %119 = tpu.iota {dimensions = array<i32: 0>} : vector<32x1xi32>
    %c16_i32 = arith.constant 16 : i32
    %c0_i32_46 = arith.constant 0 : i32
    %120 = arith.cmpi eq, %c16_i32, %c0_i32_46 : i32
    %c1_i32_47 = arith.constant 1 : i32
    %121 = arith.select %120, %c1_i32_47, %c16_i32 : i32
    %122 = vector.broadcast %121 : i32 to vector<32x1xi32>
    %123 = arith.remsi %119, %122 : vector<32x1xi32>
    %c0_i32_48 = arith.constant 0 : i32
    %124 = vector.broadcast %c0_i32_48 : i32 to vector<32x1xi32>
    %125 = arith.cmpi ne, %123, %124 : vector<32x1xi32>
    %c0_i32_49 = arith.constant 0 : i32
    %126 = vector.broadcast %c0_i32_49 : i32 to vector<32x1xi32>
    %127 = arith.cmpi slt, %123, %126 : vector<32x1xi32>
    %c0_i32_50 = arith.constant 0 : i32
    %128 = arith.cmpi slt, %121, %c0_i32_50 : i32
    %129 = vector.broadcast %128 : i1 to vector<32x1xi1>
    %130 = vector.broadcast %129 : vector<32x1xi1> to vector<32x1xi1>
    %131 = arith.xori %127, %130 : vector<32x1xi1>
    %132 = arith.andi %131, %125 : vector<32x1xi1>
    %133 = vector.broadcast %121 : i32 to vector<32x1xi32>
    %134 = arith.addi %123, %133 : vector<32x1xi32>
    %135 = arith.select %132, %134, %123 : vector<32x1xi1>, vector<32x1xi32>
    %136 = vector.extract_strided_slice %117 {offsets = [0, 0], sizes = [32, 128], strides = [1, 1]} : vector<32x384xf32> to vector<32x128xf32>
    %c1_i32_51 = arith.constant 1 : i32
    %137 = tpu.dynamic_rotate %136 by %c1_i32_51 dim 0 : vector<32x128xf32>, i32 -> vector<32x128xf32>
    %c1_i32_52 = arith.constant 1 : i32
    %138 = vector.broadcast %c1_i32_52 : i32 to vector<32x1xi32>
    %139 = arith.cmpi sge, %135, %138 : vector<32x1xi32>
    %cst_53 = arith.constant 0.000000e+00 : f32
    %140 = vector.shape_cast %139 : vector<32x1xi1> to vector<32x1xi1>
    %141 = vector.broadcast %140 : vector<32x1xi1> to vector<32x128xi1>
    %142 = vector.broadcast %cst_53 : f32 to vector<32x128xf32>
    %143 = arith.select %141, %137, %142 : vector<32x128xi1>, vector<32x128xf32>
    %144 = arith.addf %118, %143 : vector<32x128xf32>
    %145 = vector.extract_strided_slice %117 {offsets = [0, 256], sizes = [32, 128], strides = [1, 1]} : vector<32x384xf32> to vector<32x128xf32>
    %c31_i32 = arith.constant 31 : i32
    %146 = tpu.dynamic_rotate %145 by %c31_i32 dim 0 : vector<32x128xf32>, i32 -> vector<32x128xf32>
    %c14_i32 = arith.constant 14 : i32
    %147 = vector.broadcast %c14_i32 : i32 to vector<32x1xi32>
    %148 = arith.cmpi sle, %135, %147 : vector<32x1xi32>
    %cst_54 = arith.constant 0.000000e+00 : f32
    %149 = vector.shape_cast %148 : vector<32x1xi1> to vector<32x1xi1>
    %150 = vector.broadcast %149 : vector<32x1xi1> to vector<32x128xi1>
    %151 = vector.broadcast %cst_54 : f32 to vector<32x128xf32>
    %152 = arith.select %150, %146, %151 : vector<32x128xi1>, vector<32x128xf32>
    %153 = arith.addf %144, %152 : vector<32x128xf32>
    %154 = vector.extract_strided_slice %105 {offsets = [2, 0], sizes = [1, 128], strides = [1, 1]} : vector<3x128xf32> to vector<1x128xf32>
    %155 = vector.broadcast %154 : vector<1x128xf32> to vector<32x128xf32>
    %156 = arith.addf %153, %155 : vector<32x128xf32>
    %c0_55 = arith.constant 0 : index
    %c0_56 = arith.constant 0 : index
    %157 = vector.load %arg5[%c0_55, %c0_56] : memref<64x128xf32, #tpu.memory_space<vmem>>, vector<32x128xf32>
    tpu.vector_store %arg5[%c0_55, %c0_56], %156 {strides = array<i32>} : memref<64x128xf32, #tpu.memory_space<vmem>>, vector<32x128xf32>,
    %c0_57 = arith.constant 0 : index
    %c0_58 = arith.constant 0 : index
    %158 = tpu.strided_load %arg5[%c0_57, %c0_58] {strides = array<i32: 2, 1>} : memref<64x128xf32, #tpu.memory_space<vmem>>, vector<8x128xf32>
    %c16 = arith.constant 16 : index
    %c0_59 = arith.constant 0 : index
    %159 = tpu.strided_load %arg5[%c16, %c0_59] {strides = array<i32: 2, 1>} : memref<64x128xf32, #tpu.memory_space<vmem>>, vector<8x128xf32>
    %160 = tpu.concatenate %158, %159 in 0 : vector<8x128xf32>, vector<8x128xf32> -> vector<16x128xf32>
    %c3 = arith.constant 3 : index
    %c0_60 = arith.constant 0 : index
    %c0_61 = arith.constant 0 : index
    %161 = vector.load %arg2[%c3, %c0_60, %c0_61] : memref<12x3x128xf32, #tpu.memory_space<vmem>>, vector<1x3x128xf32>
    %162 = vector.shape_cast %161 : vector<1x3x128xf32> to vector<3x128xf32>
    %163 = vector.extract_strided_slice %162 {offsets = [0, 0], sizes = [1, 128], strides = [1, 1]} : vector<3x128xf32> to vector<1x128xf32>
    %164 = vector.broadcast %163 : vector<1x128xf32> to vector<16x128xf32>
    %165 = arith.mulf %160, %164 : vector<16x128xf32>
    %166 = vector.extract_strided_slice %162 {offsets = [1, 0], sizes = [1, 128], strides = [1, 1]} : vector<3x128xf32> to vector<1x128xf32>
    %167 = vector.broadcast %166 : vector<1x128xf32> to vector<16x128xf32>
    %168 = arith.addf %165, %167 : vector<16x128xf32>
    %cst_62 = arith.constant 0.000000e+00 : f32
    %169 = vector.broadcast %cst_62 : f32 to vector<16x128xf32>
    %170 = arith.maximumf %168, %169 : vector<16x128xf32>
    %171 = arith.truncf %170 : vector<16x128xf32> to vector<16x128xbf16>
    %c3_63 = arith.constant 3 : index
    %c0_64 = arith.constant 0 : index
    %c0_65 = arith.constant 0 : index
    %172 = vector.load %arg1[%c3_63, %c0_64, %c0_65] : memref<12x128x384xbf16, #tpu.memory_space<vmem>>, vector<1x128x384xbf16>
    %173 = vector.shape_cast %172 : vector<1x128x384xbf16> to vector<128x384xbf16>
    %cst_66 = arith.constant dense<0.000000e+00> : vector<16x384xf32>
    %174 = tpu.matmul %171, %173, %cst_66 {dimension_numbers = #tpu.dot_dimension_numbers<[1], [0], [0], [1], [0, 0, 1, 1], [], []>} : vector<16x128xbf16>, vector<128x384xbf16>, vector<16x384xf32> -> vector<16x384xf32>
    %175 = vector.extract_strided_slice %174 {offsets = [0, 128], sizes = [16, 128], strides = [1, 1]} : vector<16x384xf32> to vector<16x128xf32>
    %176 = tpu.iota {dimensions = array<i32: 0>} : vector<16x1xi32>
    %c8_i32 = arith.constant 8 : i32
    %c0_i32_67 = arith.constant 0 : i32
    %177 = arith.cmpi eq, %c8_i32, %c0_i32_67 : i32
    %c1_i32_68 = arith.constant 1 : i32
    %178 = arith.select %177, %c1_i32_68, %c8_i32 : i32
    %179 = vector.broadcast %178 : i32 to vector<16x1xi32>
    %180 = arith.remsi %176, %179 : vector<16x1xi32>
    %c0_i32_69 = arith.constant 0 : i32
    %181 = vector.broadcast %c0_i32_69 : i32 to vector<16x1xi32>
    %182 = arith.cmpi ne, %180, %181 : vector<16x1xi32>
    %c0_i32_70 = arith.constant 0 : i32
    %183 = vector.broadcast %c0_i32_70 : i32 to vector<16x1xi32>
    %184 = arith.cmpi slt, %180, %183 : vector<16x1xi32>
    %c0_i32_71 = arith.constant 0 : i32
    %185 = arith.cmpi slt, %178, %c0_i32_71 : i32
    %186 = vector.broadcast %185 : i1 to vector<16x1xi1>
    %187 = vector.broadcast %186 : vector<16x1xi1> to vector<16x1xi1>
    %188 = arith.xori %184, %187 : vector<16x1xi1>
    %189 = arith.andi %188, %182 : vector<16x1xi1>
    %190 = vector.broadcast %178 : i32 to vector<16x1xi32>
    %191 = arith.addi %180, %190 : vector<16x1xi32>
    %192 = arith.select %189, %191, %180 : vector<16x1xi1>, vector<16x1xi32>
    %193 = vector.extract_strided_slice %174 {offsets = [0, 0], sizes = [16, 128], strides = [1, 1]} : vector<16x384xf32> to vector<16x128xf32>
    %c1_i32_72 = arith.constant 1 : i32
    %194 = tpu.dynamic_rotate %193 by %c1_i32_72 dim 0 : vector<16x128xf32>, i32 -> vector<16x128xf32>
    %c1_i32_73 = arith.constant 1 : i32
    %195 = vector.broadcast %c1_i32_73 : i32 to vector<16x1xi32>
    %196 = arith.cmpi sge, %192, %195 : vector<16x1xi32>
    %cst_74 = arith.constant 0.000000e+00 : f32
    %197 = vector.shape_cast %196 : vector<16x1xi1> to vector<16x1xi1>
    %198 = vector.broadcast %197 : vector<16x1xi1> to vector<16x128xi1>
    %199 = vector.broadcast %cst_74 : f32 to vector<16x128xf32>
    %200 = arith.select %198, %194, %199 : vector<16x128xi1>, vector<16x128xf32>
    %201 = arith.addf %175, %200 : vector<16x128xf32>
    %202 = vector.extract_strided_slice %174 {offsets = [0, 256], sizes = [16, 128], strides = [1, 1]} : vector<16x384xf32> to vector<16x128xf32>
    %c15_i32 = arith.constant 15 : i32
    %203 = tpu.dynamic_rotate %202 by %c15_i32 dim 0 : vector<16x128xf32>, i32 -> vector<16x128xf32>
    %c6_i32 = arith.constant 6 : i32
    %204 = vector.broadcast %c6_i32 : i32 to vector<16x1xi32>
    %205 = arith.cmpi sle, %192, %204 : vector<16x1xi32>
    %cst_75 = arith.constant 0.000000e+00 : f32
    %206 = vector.shape_cast %205 : vector<16x1xi1> to vector<16x1xi1>
    %207 = vector.broadcast %206 : vector<16x1xi1> to vector<16x128xi1>
    %208 = vector.broadcast %cst_75 : f32 to vector<16x128xf32>
    %209 = arith.select %207, %203, %208 : vector<16x128xi1>, vector<16x128xf32>
    %210 = arith.addf %201, %209 : vector<16x128xf32>
    %211 = vector.extract_strided_slice %162 {offsets = [2, 0], sizes = [1, 128], strides = [1, 1]} : vector<3x128xf32> to vector<1x128xf32>
    %212 = vector.broadcast %211 : vector<1x128xf32> to vector<16x128xf32>
    %213 = arith.addf %210, %212 : vector<16x128xf32>
    %c0_76 = arith.constant 0 : index
    %c0_77 = arith.constant 0 : index
    %214 = vector.load %arg5[%c0_76, %c0_77] : memref<64x128xf32, #tpu.memory_space<vmem>>, vector<16x128xf32>
    tpu.vector_store %arg5[%c0_76, %c0_77], %213 {strides = array<i32>} : memref<64x128xf32, #tpu.memory_space<vmem>>, vector<16x128xf32>,
    %c0_78 = arith.constant 0 : index
    %c0_79 = arith.constant 0 : index
    %215 = tpu.strided_load %arg5[%c0_78, %c0_79] {strides = array<i32: 2, 1>} : memref<64x128xf32, #tpu.memory_space<vmem>>, vector<4x128xf32>
    %c8 = arith.constant 8 : index
    %c0_80 = arith.constant 0 : index
    %216 = tpu.strided_load %arg5[%c8, %c0_80] {strides = array<i32: 2, 1>} : memref<64x128xf32, #tpu.memory_space<vmem>>, vector<4x128xf32>
    %217 = tpu.concatenate %215, %216 in 0 : vector<4x128xf32>, vector<4x128xf32> -> vector<8x128xf32>
    %c4 = arith.constant 4 : index
    %c0_81 = arith.constant 0 : index
    %c0_82 = arith.constant 0 : index
    %218 = vector.load %arg2[%c4, %c0_81, %c0_82] : memref<12x3x128xf32, #tpu.memory_space<vmem>>, vector<1x3x128xf32>
    %219 = vector.shape_cast %218 : vector<1x3x128xf32> to vector<3x128xf32>
    %220 = vector.extract_strided_slice %219 {offsets = [0, 0], sizes = [1, 128], strides = [1, 1]} : vector<3x128xf32> to vector<1x128xf32>
    %221 = vector.broadcast %220 : vector<1x128xf32> to vector<16x128xf32>
    %222 = arith.mulf %160, %221 : vector<16x128xf32>
    %223 = vector.extract_strided_slice %219 {offsets = [1, 0], sizes = [1, 128], strides = [1, 1]} : vector<3x128xf32> to vector<1x128xf32>
    %224 = vector.broadcast %223 : vector<1x128xf32> to vector<16x128xf32>
    %225 = arith.addf %222, %224 : vector<16x128xf32>
    %cst_83 = arith.constant 0.000000e+00 : f32
    %226 = vector.broadcast %cst_83 : f32 to vector<16x128xf32>
    %227 = arith.maximumf %225, %226 : vector<16x128xf32>
    %228 = arith.truncf %227 : vector<16x128xf32> to vector<16x128xbf16>
    %c4_84 = arith.constant 4 : index
    %c0_85 = arith.constant 0 : index
    %c0_86 = arith.constant 0 : index
    %229 = vector.load %arg1[%c4_84, %c0_85, %c0_86] : memref<12x128x384xbf16, #tpu.memory_space<vmem>>, vector<1x128x384xbf16>
    %230 = vector.shape_cast %229 : vector<1x128x384xbf16> to vector<128x384xbf16>
    %cst_87 = arith.constant dense<0.000000e+00> : vector<16x384xf32>
    %231 = tpu.matmul %228, %230, %cst_87 {dimension_numbers = #tpu.dot_dimension_numbers<[1], [0], [0], [1], [0, 0, 1, 1], [], []>} : vector<16x128xbf16>, vector<128x384xbf16>, vector<16x384xf32> -> vector<16x384xf32>
    %232 = vector.extract_strided_slice %231 {offsets = [0, 128], sizes = [16, 128], strides = [1, 1]} : vector<16x384xf32> to vector<16x128xf32>
    %233 = tpu.iota {dimensions = array<i32: 0>} : vector<16x1xi32>
    %c8_i32_88 = arith.constant 8 : i32
    %c0_i32_89 = arith.constant 0 : i32
    %234 = arith.cmpi eq, %c8_i32_88, %c0_i32_89 : i32
    %c1_i32_90 = arith.constant 1 : i32
    %235 = arith.select %234, %c1_i32_90, %c8_i32_88 : i32
    %236 = vector.broadcast %235 : i32 to vector<16x1xi32>
    %237 = arith.remsi %233, %236 : vector<16x1xi32>
    %c0_i32_91 = arith.constant 0 : i32
    %238 = vector.broadcast %c0_i32_91 : i32 to vector<16x1xi32>
    %239 = arith.cmpi ne, %237, %238 : vector<16x1xi32>
    %c0_i32_92 = arith.constant 0 : i32
    %240 = vector.broadcast %c0_i32_92 : i32 to vector<16x1xi32>
    %241 = arith.cmpi slt, %237, %240 : vector<16x1xi32>
    %c0_i32_93 = arith.constant 0 : i32
    %242 = arith.cmpi slt, %235, %c0_i32_93 : i32
    %243 = vector.broadcast %242 : i1 to vector<16x1xi1>
    %244 = vector.broadcast %243 : vector<16x1xi1> to vector<16x1xi1>
    %245 = arith.xori %241, %244 : vector<16x1xi1>
    %246 = arith.andi %245, %239 : vector<16x1xi1>
    %247 = vector.broadcast %235 : i32 to vector<16x1xi32>
    %248 = arith.addi %237, %247 : vector<16x1xi32>
    %249 = arith.select %246, %248, %237 : vector<16x1xi1>, vector<16x1xi32>
    %250 = vector.extract_strided_slice %231 {offsets = [0, 0], sizes = [16, 128], strides = [1, 1]} : vector<16x384xf32> to vector<16x128xf32>
    %c1_i32_94 = arith.constant 1 : i32
    %251 = tpu.dynamic_rotate %250 by %c1_i32_94 dim 0 : vector<16x128xf32>, i32 -> vector<16x128xf32>
    %c1_i32_95 = arith.constant 1 : i32
    %252 = vector.broadcast %c1_i32_95 : i32 to vector<16x1xi32>
    %253 = arith.cmpi sge, %249, %252 : vector<16x1xi32>
    %cst_96 = arith.constant 0.000000e+00 : f32
    %254 = vector.shape_cast %253 : vector<16x1xi1> to vector<16x1xi1>
    %255 = vector.broadcast %254 : vector<16x1xi1> to vector<16x128xi1>
    %256 = vector.broadcast %cst_96 : f32 to vector<16x128xf32>
    %257 = arith.select %255, %251, %256 : vector<16x128xi1>, vector<16x128xf32>
    %258 = arith.addf %232, %257 : vector<16x128xf32>
    %259 = vector.extract_strided_slice %231 {offsets = [0, 256], sizes = [16, 128], strides = [1, 1]} : vector<16x384xf32> to vector<16x128xf32>
    %c15_i32_97 = arith.constant 15 : i32
    %260 = tpu.dynamic_rotate %259 by %c15_i32_97 dim 0 : vector<16x128xf32>, i32 -> vector<16x128xf32>
    %c6_i32_98 = arith.constant 6 : i32
    %261 = vector.broadcast %c6_i32_98 : i32 to vector<16x1xi32>
    %262 = arith.cmpi sle, %249, %261 : vector<16x1xi32>
    %cst_99 = arith.constant 0.000000e+00 : f32
    %263 = vector.shape_cast %262 : vector<16x1xi1> to vector<16x1xi1>
    %264 = vector.broadcast %263 : vector<16x1xi1> to vector<16x128xi1>
    %265 = vector.broadcast %cst_99 : f32 to vector<16x128xf32>
    %266 = arith.select %264, %260, %265 : vector<16x128xi1>, vector<16x128xf32>
    %267 = arith.addf %258, %266 : vector<16x128xf32>
    %268 = vector.extract_strided_slice %219 {offsets = [2, 0], sizes = [1, 128], strides = [1, 1]} : vector<3x128xf32> to vector<1x128xf32>
    %269 = vector.broadcast %268 : vector<1x128xf32> to vector<16x128xf32>
    %270 = arith.addf %267, %269 : vector<16x128xf32>
    %c5 = arith.constant 5 : index
    %c0_100 = arith.constant 0 : index
    %c0_101 = arith.constant 0 : index
    %271 = vector.load %arg2[%c5, %c0_100, %c0_101] : memref<12x3x128xf32, #tpu.memory_space<vmem>>, vector<1x3x128xf32>
    %272 = vector.shape_cast %271 : vector<1x3x128xf32> to vector<3x128xf32>
    %273 = vector.extract_strided_slice %272 {offsets = [0, 0], sizes = [1, 128], strides = [1, 1]} : vector<3x128xf32> to vector<1x128xf32>
    %274 = vector.broadcast %273 : vector<1x128xf32> to vector<16x128xf32>
    %275 = arith.mulf %270, %274 : vector<16x128xf32>
    %276 = vector.extract_strided_slice %272 {offsets = [1, 0], sizes = [1, 128], strides = [1, 1]} : vector<3x128xf32> to vector<1x128xf32>
    %277 = vector.broadcast %276 : vector<1x128xf32> to vector<16x128xf32>
    %278 = arith.addf %275, %277 : vector<16x128xf32>
    %cst_102 = arith.constant 0.000000e+00 : f32
    %279 = vector.broadcast %cst_102 : f32 to vector<16x128xf32>
    %280 = arith.maximumf %278, %279 : vector<16x128xf32>
    %281 = arith.truncf %280 : vector<16x128xf32> to vector<16x128xbf16>
    %c5_103 = arith.constant 5 : index
    %c0_104 = arith.constant 0 : index
    %c0_105 = arith.constant 0 : index
    %282 = vector.load %arg1[%c5_103, %c0_104, %c0_105] : memref<12x128x384xbf16, #tpu.memory_space<vmem>>, vector<1x128x384xbf16>
    %283 = vector.shape_cast %282 : vector<1x128x384xbf16> to vector<128x384xbf16>
    %cst_106 = arith.constant dense<0.000000e+00> : vector<16x384xf32>
    %284 = tpu.matmul %281, %283, %cst_106 {dimension_numbers = #tpu.dot_dimension_numbers<[1], [0], [0], [1], [0, 0, 1, 1], [], []>} : vector<16x128xbf16>, vector<128x384xbf16>, vector<16x384xf32> -> vector<16x384xf32>
    %285 = vector.extract_strided_slice %284 {offsets = [0, 128], sizes = [16, 3], strides = [1, 1]} : vector<16x384xf32> to vector<16x3xf32>
    %286 = tpu.iota {dimensions = array<i32: 0>} : vector<16x1xi32>
    %c8_i32_107 = arith.constant 8 : i32
    %c0_i32_108 = arith.constant 0 : i32
    %287 = arith.cmpi eq, %c8_i32_107, %c0_i32_108 : i32
    %c1_i32_109 = arith.constant 1 : i32
    %288 = arith.select %287, %c1_i32_109, %c8_i32_107 : i32
    %289 = vector.broadcast %288 : i32 to vector<16x1xi32>
    %290 = arith.remsi %286, %289 : vector<16x1xi32>
    %c0_i32_110 = arith.constant 0 : i32
    %291 = vector.broadcast %c0_i32_110 : i32 to vector<16x1xi32>
    %292 = arith.cmpi ne, %290, %291 : vector<16x1xi32>
    %c0_i32_111 = arith.constant 0 : i32
    %293 = vector.broadcast %c0_i32_111 : i32 to vector<16x1xi32>
    %294 = arith.cmpi slt, %290, %293 : vector<16x1xi32>
    %c0_i32_112 = arith.constant 0 : i32
    %295 = arith.cmpi slt, %288, %c0_i32_112 : i32
    %296 = vector.broadcast %295 : i1 to vector<16x1xi1>
    %297 = vector.broadcast %296 : vector<16x1xi1> to vector<16x1xi1>
    %298 = arith.xori %294, %297 : vector<16x1xi1>
    %299 = arith.andi %298, %292 : vector<16x1xi1>
    %300 = vector.broadcast %288 : i32 to vector<16x1xi32>
    %301 = arith.addi %290, %300 : vector<16x1xi32>
    %302 = arith.select %299, %301, %290 : vector<16x1xi1>, vector<16x1xi32>
    %303 = vector.extract_strided_slice %284 {offsets = [0, 0], sizes = [16, 3], strides = [1, 1]} : vector<16x384xf32> to vector<16x3xf32>
    %c1_i32_113 = arith.constant 1 : i32
    %304 = tpu.dynamic_rotate %303 by %c1_i32_113 dim 0 : vector<16x3xf32>, i32 -> vector<16x3xf32>
    %c1_i32_114 = arith.constant 1 : i32
    %305 = vector.broadcast %c1_i32_114 : i32 to vector<16x1xi32>
    %306 = arith.cmpi sge, %302, %305 : vector<16x1xi32>
    %cst_115 = arith.constant 0.000000e+00 : f32
    %307 = vector.shape_cast %306 : vector<16x1xi1> to vector<16x1xi1>
    %308 = vector.broadcast %307 : vector<16x1xi1> to vector<16x3xi1>
    %309 = vector.broadcast %cst_115 : f32 to vector<16x3xf32>
    %310 = arith.select %308, %304, %309 : vector<16x3xi1>, vector<16x3xf32>
    %311 = arith.addf %285, %310 : vector<16x3xf32>
    %312 = vector.extract_strided_slice %284 {offsets = [0, 256], sizes = [16, 3], strides = [1, 1]} : vector<16x384xf32> to vector<16x3xf32>
    %c15_i32_116 = arith.constant 15 : i32
    %313 = tpu.dynamic_rotate %312 by %c15_i32_116 dim 0 : vector<16x3xf32>, i32 -> vector<16x3xf32>
    %c6_i32_117 = arith.constant 6 : i32
    %314 = vector.broadcast %c6_i32_117 : i32 to vector<16x1xi32>
    %315 = arith.cmpi sle, %302, %314 : vector<16x1xi32>
    %cst_118 = arith.constant 0.000000e+00 : f32
    %316 = vector.shape_cast %315 : vector<16x1xi1> to vector<16x1xi1>
    %317 = vector.broadcast %316 : vector<16x1xi1> to vector<16x3xi1>
    %318 = vector.broadcast %cst_118 : f32 to vector<16x3xf32>
    %319 = arith.select %317, %313, %318 : vector<16x3xi1>, vector<16x3xf32>
    %320 = arith.addf %311, %319 : vector<16x3xf32>
    %321 = vector.extract_strided_slice %272 {offsets = [2, 0], sizes = [1, 3], strides = [1, 1]} : vector<3x128xf32> to vector<1x3xf32>
    %322 = vector.broadcast %321 : vector<1x3xf32> to vector<16x3xf32>
    %323 = arith.addf %320, %322 : vector<16x3xf32>
    %c6 = arith.constant 6 : index
    %c0_119 = arith.constant 0 : index
    %c0_120 = arith.constant 0 : index
    %324 = vector.load %arg2[%c6, %c0_119, %c0_120] : memref<12x3x128xf32, #tpu.memory_space<vmem>>, vector<1x3x128xf32>
    %325 = vector.shape_cast %324 : vector<1x3x128xf32> to vector<3x128xf32>
    %326 = vector.extract_strided_slice %325 {offsets = [0, 0], sizes = [1, 128], strides = [1, 1]} : vector<3x128xf32> to vector<1x128xf32>
    %327 = vector.broadcast %326 : vector<1x128xf32> to vector<16x128xf32>
    %328 = arith.mulf %160, %327 : vector<16x128xf32>
    %329 = vector.extract_strided_slice %325 {offsets = [1, 0], sizes = [1, 128], strides = [1, 1]} : vector<3x128xf32> to vector<1x128xf32>
    %330 = vector.broadcast %329 : vector<1x128xf32> to vector<16x128xf32>
    %331 = arith.addf %328, %330 : vector<16x128xf32>
    %cst_121 = arith.constant 0.000000e+00 : f32
    %332 = vector.broadcast %cst_121 : f32 to vector<16x128xf32>
    %333 = arith.maximumf %331, %332 : vector<16x128xf32>
    %334 = arith.truncf %333 : vector<16x128xf32> to vector<16x128xbf16>
    %c6_122 = arith.constant 6 : index
    %c0_123 = arith.constant 0 : index
    %c0_124 = arith.constant 0 : index
    %335 = vector.load %arg1[%c6_122, %c0_123, %c0_124] : memref<12x128x384xbf16, #tpu.memory_space<vmem>>, vector<1x128x384xbf16>
    %336 = vector.shape_cast %335 : vector<1x128x384xbf16> to vector<128x384xbf16>
    %cst_125 = arith.constant dense<0.000000e+00> : vector<16x384xf32>
    %337 = tpu.matmul %334, %336, %cst_125 {dimension_numbers = #tpu.dot_dimension_numbers<[1], [0], [0], [1], [0, 0, 1, 1], [], []>} : vector<16x128xbf16>, vector<128x384xbf16>, vector<16x384xf32> -> vector<16x384xf32>
    %338 = vector.extract_strided_slice %337 {offsets = [0, 128], sizes = [16, 128], strides = [1, 1]} : vector<16x384xf32> to vector<16x128xf32>
    %339 = tpu.iota {dimensions = array<i32: 0>} : vector<16x1xi32>
    %c8_i32_126 = arith.constant 8 : i32
    %c0_i32_127 = arith.constant 0 : i32
    %340 = arith.cmpi eq, %c8_i32_126, %c0_i32_127 : i32
    %c1_i32_128 = arith.constant 1 : i32
    %341 = arith.select %340, %c1_i32_128, %c8_i32_126 : i32
    %342 = vector.broadcast %341 : i32 to vector<16x1xi32>
    %343 = arith.remsi %339, %342 : vector<16x1xi32>
    %c0_i32_129 = arith.constant 0 : i32
    %344 = vector.broadcast %c0_i32_129 : i32 to vector<16x1xi32>
    %345 = arith.cmpi ne, %343, %344 : vector<16x1xi32>
    %c0_i32_130 = arith.constant 0 : i32
    %346 = vector.broadcast %c0_i32_130 : i32 to vector<16x1xi32>
    %347 = arith.cmpi slt, %343, %346 : vector<16x1xi32>
    %c0_i32_131 = arith.constant 0 : i32
    %348 = arith.cmpi slt, %341, %c0_i32_131 : i32
    %349 = vector.broadcast %348 : i1 to vector<16x1xi1>
    %350 = vector.broadcast %349 : vector<16x1xi1> to vector<16x1xi1>
    %351 = arith.xori %347, %350 : vector<16x1xi1>
    %352 = arith.andi %351, %345 : vector<16x1xi1>
    %353 = vector.broadcast %341 : i32 to vector<16x1xi32>
    %354 = arith.addi %343, %353 : vector<16x1xi32>
    %355 = arith.select %352, %354, %343 : vector<16x1xi1>, vector<16x1xi32>
    %356 = vector.extract_strided_slice %337 {offsets = [0, 0], sizes = [16, 128], strides = [1, 1]} : vector<16x384xf32> to vector<16x128xf32>
    %c1_i32_132 = arith.constant 1 : i32
    %357 = tpu.dynamic_rotate %356 by %c1_i32_132 dim 0 : vector<16x128xf32>, i32 -> vector<16x128xf32>
    %c1_i32_133 = arith.constant 1 : i32
    %358 = vector.broadcast %c1_i32_133 : i32 to vector<16x1xi32>
    %359 = arith.cmpi sge, %355, %358 : vector<16x1xi32>
    %cst_134 = arith.constant 0.000000e+00 : f32
    %360 = vector.shape_cast %359 : vector<16x1xi1> to vector<16x1xi1>
    %361 = vector.broadcast %360 : vector<16x1xi1> to vector<16x128xi1>
    %362 = vector.broadcast %cst_134 : f32 to vector<16x128xf32>
    %363 = arith.select %361, %357, %362 : vector<16x128xi1>, vector<16x128xf32>
    %364 = arith.addf %338, %363 : vector<16x128xf32>
    %365 = vector.extract_strided_slice %337 {offsets = [0, 256], sizes = [16, 128], strides = [1, 1]} : vector<16x384xf32> to vector<16x128xf32>
    %c15_i32_135 = arith.constant 15 : i32
    %366 = tpu.dynamic_rotate %365 by %c15_i32_135 dim 0 : vector<16x128xf32>, i32 -> vector<16x128xf32>
    %c6_i32_136 = arith.constant 6 : i32
    %367 = vector.broadcast %c6_i32_136 : i32 to vector<16x1xi32>
    %368 = arith.cmpi sle, %355, %367 : vector<16x1xi32>
    %cst_137 = arith.constant 0.000000e+00 : f32
    %369 = vector.shape_cast %368 : vector<16x1xi1> to vector<16x1xi1>
    %370 = vector.broadcast %369 : vector<16x1xi1> to vector<16x128xi1>
    %371 = vector.broadcast %cst_137 : f32 to vector<16x128xf32>
    %372 = arith.select %370, %366, %371 : vector<16x128xi1>, vector<16x128xf32>
    %373 = arith.addf %364, %372 : vector<16x128xf32>
    %374 = vector.extract_strided_slice %325 {offsets = [2, 0], sizes = [1, 128], strides = [1, 1]} : vector<3x128xf32> to vector<1x128xf32>
    %375 = vector.broadcast %374 : vector<1x128xf32> to vector<16x128xf32>
    %376 = arith.addf %373, %375 : vector<16x128xf32>
    %c7 = arith.constant 7 : index
    %c0_138 = arith.constant 0 : index
    %c0_139 = arith.constant 0 : index
    %377 = vector.load %arg2[%c7, %c0_138, %c0_139] : memref<12x3x128xf32, #tpu.memory_space<vmem>>, vector<1x3x128xf32>
    %378 = vector.shape_cast %377 : vector<1x3x128xf32> to vector<3x128xf32>
    %379 = vector.extract_strided_slice %378 {offsets = [0, 0], sizes = [1, 128], strides = [1, 1]} : vector<3x128xf32> to vector<1x128xf32>
    %380 = vector.broadcast %379 : vector<1x128xf32> to vector<16x128xf32>
    %381 = arith.mulf %376, %380 : vector<16x128xf32>
    %382 = vector.extract_strided_slice %378 {offsets = [1, 0], sizes = [1, 128], strides = [1, 1]} : vector<3x128xf32> to vector<1x128xf32>
    %383 = vector.broadcast %382 : vector<1x128xf32> to vector<16x128xf32>
    %384 = arith.addf %381, %383 : vector<16x128xf32>
    %cst_140 = arith.constant 0.000000e+00 : f32
    %385 = vector.broadcast %cst_140 : f32 to vector<16x128xf32>
    %386 = arith.maximumf %384, %385 : vector<16x128xf32>
    %387 = arith.truncf %386 : vector<16x128xf32> to vector<16x128xbf16>
    %c7_141 = arith.constant 7 : index
    %c0_142 = arith.constant 0 : index
    %c0_143 = arith.constant 0 : index
    %388 = vector.load %arg1[%c7_141, %c0_142, %c0_143] : memref<12x128x384xbf16, #tpu.memory_space<vmem>>, vector<1x128x384xbf16>
    %389 = vector.shape_cast %388 : vector<1x128x384xbf16> to vector<128x384xbf16>
    %cst_144 = arith.constant dense<0.000000e+00> : vector<16x384xf32>
    %390 = tpu.matmul %387, %389, %cst_144 {dimension_numbers = #tpu.dot_dimension_numbers<[1], [0], [0], [1], [0, 0, 1, 1], [], []>} : vector<16x128xbf16>, vector<128x384xbf16>, vector<16x384xf32> -> vector<16x384xf32>
    %391 = vector.extract_strided_slice %390 {offsets = [0, 128], sizes = [16, 6], strides = [1, 1]} : vector<16x384xf32> to vector<16x6xf32>
    %392 = tpu.iota {dimensions = array<i32: 0>} : vector<16x1xi32>
    %c8_i32_145 = arith.constant 8 : i32
    %c0_i32_146 = arith.constant 0 : i32
    %393 = arith.cmpi eq, %c8_i32_145, %c0_i32_146 : i32
    %c1_i32_147 = arith.constant 1 : i32
    %394 = arith.select %393, %c1_i32_147, %c8_i32_145 : i32
    %395 = vector.broadcast %394 : i32 to vector<16x1xi32>
    %396 = arith.remsi %392, %395 : vector<16x1xi32>
    %c0_i32_148 = arith.constant 0 : i32
    %397 = vector.broadcast %c0_i32_148 : i32 to vector<16x1xi32>
    %398 = arith.cmpi ne, %396, %397 : vector<16x1xi32>
    %c0_i32_149 = arith.constant 0 : i32
    %399 = vector.broadcast %c0_i32_149 : i32 to vector<16x1xi32>
    %400 = arith.cmpi slt, %396, %399 : vector<16x1xi32>
    %c0_i32_150 = arith.constant 0 : i32
    %401 = arith.cmpi slt, %394, %c0_i32_150 : i32
    %402 = vector.broadcast %401 : i1 to vector<16x1xi1>
    %403 = vector.broadcast %402 : vector<16x1xi1> to vector<16x1xi1>
    %404 = arith.xori %400, %403 : vector<16x1xi1>
    %405 = arith.andi %404, %398 : vector<16x1xi1>
    %406 = vector.broadcast %394 : i32 to vector<16x1xi32>
    %407 = arith.addi %396, %406 : vector<16x1xi32>
    %408 = arith.select %405, %407, %396 : vector<16x1xi1>, vector<16x1xi32>
    %409 = vector.extract_strided_slice %390 {offsets = [0, 0], sizes = [16, 6], strides = [1, 1]} : vector<16x384xf32> to vector<16x6xf32>
    %c1_i32_151 = arith.constant 1 : i32
    %410 = tpu.dynamic_rotate %409 by %c1_i32_151 dim 0 : vector<16x6xf32>, i32 -> vector<16x6xf32>
    %c1_i32_152 = arith.constant 1 : i32
    %411 = vector.broadcast %c1_i32_152 : i32 to vector<16x1xi32>
    %412 = arith.cmpi sge, %408, %411 : vector<16x1xi32>
    %cst_153 = arith.constant 0.000000e+00 : f32
    %413 = vector.shape_cast %412 : vector<16x1xi1> to vector<16x1xi1>
    %414 = vector.broadcast %413 : vector<16x1xi1> to vector<16x6xi1>
    %415 = vector.broadcast %cst_153 : f32 to vector<16x6xf32>
    %416 = arith.select %414, %410, %415 : vector<16x6xi1>, vector<16x6xf32>
    %417 = arith.addf %391, %416 : vector<16x6xf32>
    %418 = vector.extract_strided_slice %390 {offsets = [0, 256], sizes = [16, 6], strides = [1, 1]} : vector<16x384xf32> to vector<16x6xf32>
    %c15_i32_154 = arith.constant 15 : i32
    %419 = tpu.dynamic_rotate %418 by %c15_i32_154 dim 0 : vector<16x6xf32>, i32 -> vector<16x6xf32>
    %c6_i32_155 = arith.constant 6 : i32
    %420 = vector.broadcast %c6_i32_155 : i32 to vector<16x1xi32>
    %421 = arith.cmpi sle, %408, %420 : vector<16x1xi32>
    %cst_156 = arith.constant 0.000000e+00 : f32
    %422 = vector.shape_cast %421 : vector<16x1xi1> to vector<16x1xi1>
    %423 = vector.broadcast %422 : vector<16x1xi1> to vector<16x6xi1>
    %424 = vector.broadcast %cst_156 : f32 to vector<16x6xf32>
    %425 = arith.select %423, %419, %424 : vector<16x6xi1>, vector<16x6xf32>
    %426 = arith.addf %417, %425 : vector<16x6xf32>
    %427 = vector.extract_strided_slice %378 {offsets = [2, 0], sizes = [1, 6], strides = [1, 1]} : vector<3x128xf32> to vector<1x6xf32>
    %428 = vector.broadcast %427 : vector<1x6xf32> to vector<16x6xf32>
    %429 = arith.addf %426, %428 : vector<16x6xf32>
    %430 = math.tanh %429 : vector<16x6xf32>
    %c0_157 = arith.constant 0 : index
    %c0_158 = arith.constant 0 : index
    %431 = vector.load %arg3[%c0_157, %c0_158] : memref<16x9xf32, #tpu.memory_space<vmem>>, vector<16x3xf32>
    tpu.vector_store %arg3[%c0_157, %c0_158], %323 {strides = array<i32>} : memref<16x9xf32, #tpu.memory_space<vmem>>, vector<16x3xf32>,
    %c0_159 = arith.constant 0 : index
    %c3_160 = arith.constant 3 : index
    %432 = vector.load %arg3[%c0_159, %c3_160] : memref<16x9xf32, #tpu.memory_space<vmem>>, vector<16x6xf32>
    tpu.vector_store %arg3[%c0_159, %c3_160], %430 {strides = array<i32>} : memref<16x9xf32, #tpu.memory_space<vmem>>, vector<16x6xf32>,
    %c8_161 = arith.constant 8 : index
    %c0_162 = arith.constant 0 : index
    %c0_163 = arith.constant 0 : index
    %433 = vector.load %arg2[%c8_161, %c0_162, %c0_163] : memref<12x3x128xf32, #tpu.memory_space<vmem>>, vector<1x3x128xf32>
    %434 = vector.shape_cast %433 : vector<1x3x128xf32> to vector<3x128xf32>
    %435 = vector.extract_strided_slice %434 {offsets = [0, 0], sizes = [1, 128], strides = [1, 1]} : vector<3x128xf32> to vector<1x128xf32>
    %436 = vector.broadcast %435 : vector<1x128xf32> to vector<8x128xf32>
    %437 = arith.mulf %217, %436 : vector<8x128xf32>
    %438 = vector.extract_strided_slice %434 {offsets = [1, 0], sizes = [1, 128], strides = [1, 1]} : vector<3x128xf32> to vector<1x128xf32>
    %439 = vector.broadcast %438 : vector<1x128xf32> to vector<8x128xf32>
    %440 = arith.addf %437, %439 : vector<8x128xf32>
    %cst_164 = arith.constant 0.000000e+00 : f32
    %441 = vector.broadcast %cst_164 : f32 to vector<8x128xf32>
    %442 = arith.maximumf %440, %441 : vector<8x128xf32>
    %443 = arith.truncf %442 : vector<8x128xf32> to vector<8x128xbf16>
    %c8_165 = arith.constant 8 : index
    %c0_166 = arith.constant 0 : index
    %c0_167 = arith.constant 0 : index
    %444 = vector.load %arg1[%c8_165, %c0_166, %c0_167] : memref<12x128x384xbf16, #tpu.memory_space<vmem>>, vector<1x128x384xbf16>
    %445 = vector.shape_cast %444 : vector<1x128x384xbf16> to vector<128x384xbf16>
    %cst_168 = arith.constant dense<0.000000e+00> : vector<8x384xf32>
    %446 = tpu.matmul %443, %445, %cst_168 {dimension_numbers = #tpu.dot_dimension_numbers<[1], [0], [0], [1], [0, 0, 1, 1], [], []>} : vector<8x128xbf16>, vector<128x384xbf16>, vector<8x384xf32> -> vector<8x384xf32>
    %447 = vector.extract_strided_slice %446 {offsets = [0, 128], sizes = [8, 128], strides = [1, 1]} : vector<8x384xf32> to vector<8x128xf32>
    %448 = tpu.iota {dimensions = array<i32: 0>} : vector<8x1xi32>
    %c4_i32 = arith.constant 4 : i32
    %c0_i32_169 = arith.constant 0 : i32
    %449 = arith.cmpi eq, %c4_i32, %c0_i32_169 : i32
    %c1_i32_170 = arith.constant 1 : i32
    %450 = arith.select %449, %c1_i32_170, %c4_i32 : i32
    %451 = vector.broadcast %450 : i32 to vector<8x1xi32>
    %452 = arith.remsi %448, %451 : vector<8x1xi32>
    %c0_i32_171 = arith.constant 0 : i32
    %453 = vector.broadcast %c0_i32_171 : i32 to vector<8x1xi32>
    %454 = arith.cmpi ne, %452, %453 : vector<8x1xi32>
    %c0_i32_172 = arith.constant 0 : i32
    %455 = vector.broadcast %c0_i32_172 : i32 to vector<8x1xi32>
    %456 = arith.cmpi slt, %452, %455 : vector<8x1xi32>
    %c0_i32_173 = arith.constant 0 : i32
    %457 = arith.cmpi slt, %450, %c0_i32_173 : i32
    %458 = vector.broadcast %457 : i1 to vector<8x1xi1>
    %459 = vector.broadcast %458 : vector<8x1xi1> to vector<8x1xi1>
    %460 = arith.xori %456, %459 : vector<8x1xi1>
    %461 = arith.andi %460, %454 : vector<8x1xi1>
    %462 = vector.broadcast %450 : i32 to vector<8x1xi32>
    %463 = arith.addi %452, %462 : vector<8x1xi32>
    %464 = arith.select %461, %463, %452 : vector<8x1xi1>, vector<8x1xi32>
    %465 = vector.extract_strided_slice %446 {offsets = [0, 0], sizes = [8, 128], strides = [1, 1]} : vector<8x384xf32> to vector<8x128xf32>
    %c1_i32_174 = arith.constant 1 : i32
    %466 = tpu.dynamic_rotate %465 by %c1_i32_174 dim 0 : vector<8x128xf32>, i32 -> vector<8x128xf32>
    %c1_i32_175 = arith.constant 1 : i32
    %467 = vector.broadcast %c1_i32_175 : i32 to vector<8x1xi32>
    %468 = arith.cmpi sge, %464, %467 : vector<8x1xi32>
    %cst_176 = arith.constant 0.000000e+00 : f32
    %469 = vector.shape_cast %468 : vector<8x1xi1> to vector<8x1xi1>
    %470 = vector.broadcast %469 : vector<8x1xi1> to vector<8x128xi1>
    %471 = vector.broadcast %cst_176 : f32 to vector<8x128xf32>
    %472 = arith.select %470, %466, %471 : vector<8x128xi1>, vector<8x128xf32>
    %473 = arith.addf %447, %472 : vector<8x128xf32>
    %474 = vector.extract_strided_slice %446 {offsets = [0, 256], sizes = [8, 128], strides = [1, 1]} : vector<8x384xf32> to vector<8x128xf32>
    %c7_i32 = arith.constant 7 : i32
    %475 = tpu.dynamic_rotate %474 by %c7_i32 dim 0 : vector<8x128xf32>, i32 -> vector<8x128xf32>
    %c2_i32 = arith.constant 2 : i32
    %476 = vector.broadcast %c2_i32 : i32 to vector<8x1xi32>
    %477 = arith.cmpi sle, %464, %476 : vector<8x1xi32>
    %cst_177 = arith.constant 0.000000e+00 : f32
    %478 = vector.shape_cast %477 : vector<8x1xi1> to vector<8x1xi1>
    %479 = vector.broadcast %478 : vector<8x1xi1> to vector<8x128xi1>
    %480 = vector.broadcast %cst_177 : f32 to vector<8x128xf32>
    %481 = arith.select %479, %475, %480 : vector<8x128xi1>, vector<8x128xf32>
    %482 = arith.addf %473, %481 : vector<8x128xf32>
    %483 = vector.extract_strided_slice %434 {offsets = [2, 0], sizes = [1, 128], strides = [1, 1]} : vector<3x128xf32> to vector<1x128xf32>
    %484 = vector.broadcast %483 : vector<1x128xf32> to vector<8x128xf32>
    %485 = arith.addf %482, %484 : vector<8x128xf32>
    %c9 = arith.constant 9 : index
    %c0_178 = arith.constant 0 : index
    %c0_179 = arith.constant 0 : index
    %486 = vector.load %arg2[%c9, %c0_178, %c0_179] : memref<12x3x128xf32, #tpu.memory_space<vmem>>, vector<1x3x128xf32>
    %487 = vector.shape_cast %486 : vector<1x3x128xf32> to vector<3x128xf32>
    %488 = vector.extract_strided_slice %487 {offsets = [0, 0], sizes = [1, 128], strides = [1, 1]} : vector<3x128xf32> to vector<1x128xf32>
    %489 = vector.broadcast %488 : vector<1x128xf32> to vector<8x128xf32>
    %490 = arith.mulf %485, %489 : vector<8x128xf32>
    %491 = vector.extract_strided_slice %487 {offsets = [1, 0], sizes = [1, 128], strides = [1, 1]} : vector<3x128xf32> to vector<1x128xf32>
    %492 = vector.broadcast %491 : vector<1x128xf32> to vector<8x128xf32>
    %493 = arith.addf %490, %492 : vector<8x128xf32>
    %cst_180 = arith.constant 0.000000e+00 : f32
    %494 = vector.broadcast %cst_180 : f32 to vector<8x128xf32>
    %495 = arith.maximumf %493, %494 : vector<8x128xf32>
    %496 = arith.truncf %495 : vector<8x128xf32> to vector<8x128xbf16>
    %c9_181 = arith.constant 9 : index
    %c0_182 = arith.constant 0 : index
    %c0_183 = arith.constant 0 : index
    %497 = vector.load %arg1[%c9_181, %c0_182, %c0_183] : memref<12x128x384xbf16, #tpu.memory_space<vmem>>, vector<1x128x384xbf16>
    %498 = vector.shape_cast %497 : vector<1x128x384xbf16> to vector<128x384xbf16>
    %cst_184 = arith.constant dense<0.000000e+00> : vector<8x384xf32>
    %499 = tpu.matmul %496, %498, %cst_184 {dimension_numbers = #tpu.dot_dimension_numbers<[1], [0], [0], [1], [0, 0, 1, 1], [], []>} : vector<8x128xbf16>, vector<128x384xbf16>, vector<8x384xf32> -> vector<8x384xf32>
    %500 = vector.extract_strided_slice %499 {offsets = [0, 128], sizes = [8, 3], strides = [1, 1]} : vector<8x384xf32> to vector<8x3xf32>
    %501 = tpu.iota {dimensions = array<i32: 0>} : vector<8x1xi32>
    %c4_i32_185 = arith.constant 4 : i32
    %c0_i32_186 = arith.constant 0 : i32
    %502 = arith.cmpi eq, %c4_i32_185, %c0_i32_186 : i32
    %c1_i32_187 = arith.constant 1 : i32
    %503 = arith.select %502, %c1_i32_187, %c4_i32_185 : i32
    %504 = vector.broadcast %503 : i32 to vector<8x1xi32>
    %505 = arith.remsi %501, %504 : vector<8x1xi32>
    %c0_i32_188 = arith.constant 0 : i32
    %506 = vector.broadcast %c0_i32_188 : i32 to vector<8x1xi32>
    %507 = arith.cmpi ne, %505, %506 : vector<8x1xi32>
    %c0_i32_189 = arith.constant 0 : i32
    %508 = vector.broadcast %c0_i32_189 : i32 to vector<8x1xi32>
    %509 = arith.cmpi slt, %505, %508 : vector<8x1xi32>
    %c0_i32_190 = arith.constant 0 : i32
    %510 = arith.cmpi slt, %503, %c0_i32_190 : i32
    %511 = vector.broadcast %510 : i1 to vector<8x1xi1>
    %512 = vector.broadcast %511 : vector<8x1xi1> to vector<8x1xi1>
    %513 = arith.xori %509, %512 : vector<8x1xi1>
    %514 = arith.andi %513, %507 : vector<8x1xi1>
    %515 = vector.broadcast %503 : i32 to vector<8x1xi32>
    %516 = arith.addi %505, %515 : vector<8x1xi32>
    %517 = arith.select %514, %516, %505 : vector<8x1xi1>, vector<8x1xi32>
    %518 = vector.extract_strided_slice %499 {offsets = [0, 0], sizes = [8, 3], strides = [1, 1]} : vector<8x384xf32> to vector<8x3xf32>
    %c1_i32_191 = arith.constant 1 : i32
    %519 = tpu.dynamic_rotate %518 by %c1_i32_191 dim 0 : vector<8x3xf32>, i32 -> vector<8x3xf32>
    %c1_i32_192 = arith.constant 1 : i32
    %520 = vector.broadcast %c1_i32_192 : i32 to vector<8x1xi32>
    %521 = arith.cmpi sge, %517, %520 : vector<8x1xi32>
    %cst_193 = arith.constant 0.000000e+00 : f32
    %522 = vector.shape_cast %521 : vector<8x1xi1> to vector<8x1xi1>
    %523 = vector.broadcast %522 : vector<8x1xi1> to vector<8x3xi1>
    %524 = vector.broadcast %cst_193 : f32 to vector<8x3xf32>
    %525 = arith.select %523, %519, %524 : vector<8x3xi1>, vector<8x3xf32>
    %526 = arith.addf %500, %525 : vector<8x3xf32>
    %527 = vector.extract_strided_slice %499 {offsets = [0, 256], sizes = [8, 3], strides = [1, 1]} : vector<8x384xf32> to vector<8x3xf32>
    %c7_i32_194 = arith.constant 7 : i32
    %528 = tpu.dynamic_rotate %527 by %c7_i32_194 dim 0 : vector<8x3xf32>, i32 -> vector<8x3xf32>
    %c2_i32_195 = arith.constant 2 : i32
    %529 = vector.broadcast %c2_i32_195 : i32 to vector<8x1xi32>
    %530 = arith.cmpi sle, %517, %529 : vector<8x1xi32>
    %cst_196 = arith.constant 0.000000e+00 : f32
    %531 = vector.shape_cast %530 : vector<8x1xi1> to vector<8x1xi1>
    %532 = vector.broadcast %531 : vector<8x1xi1> to vector<8x3xi1>
    %533 = vector.broadcast %cst_196 : f32 to vector<8x3xf32>
    %534 = arith.select %532, %528, %533 : vector<8x3xi1>, vector<8x3xf32>
    %535 = arith.addf %526, %534 : vector<8x3xf32>
    %536 = vector.extract_strided_slice %487 {offsets = [2, 0], sizes = [1, 3], strides = [1, 1]} : vector<3x128xf32> to vector<1x3xf32>
    %537 = vector.broadcast %536 : vector<1x3xf32> to vector<8x3xf32>
    %538 = arith.addf %535, %537 : vector<8x3xf32>
    %c10 = arith.constant 10 : index
    %c0_197 = arith.constant 0 : index
    %c0_198 = arith.constant 0 : index
    %539 = vector.load %arg2[%c10, %c0_197, %c0_198] : memref<12x3x128xf32, #tpu.memory_space<vmem>>, vector<1x3x128xf32>
    %540 = vector.shape_cast %539 : vector<1x3x128xf32> to vector<3x128xf32>
    %541 = vector.extract_strided_slice %540 {offsets = [0, 0], sizes = [1, 128], strides = [1, 1]} : vector<3x128xf32> to vector<1x128xf32>
    %542 = vector.broadcast %541 : vector<1x128xf32> to vector<8x128xf32>
    %543 = arith.mulf %217, %542 : vector<8x128xf32>
    %544 = vector.extract_strided_slice %540 {offsets = [1, 0], sizes = [1, 128], strides = [1, 1]} : vector<3x128xf32> to vector<1x128xf32>
    %545 = vector.broadcast %544 : vector<1x128xf32> to vector<8x128xf32>
    %546 = arith.addf %543, %545 : vector<8x128xf32>
    %cst_199 = arith.constant 0.000000e+00 : f32
    %547 = vector.broadcast %cst_199 : f32 to vector<8x128xf32>
    %548 = arith.maximumf %546, %547 : vector<8x128xf32>
    %549 = arith.truncf %548 : vector<8x128xf32> to vector<8x128xbf16>
    %c10_200 = arith.constant 10 : index
    %c0_201 = arith.constant 0 : index
    %c0_202 = arith.constant 0 : index
    %550 = vector.load %arg1[%c10_200, %c0_201, %c0_202] : memref<12x128x384xbf16, #tpu.memory_space<vmem>>, vector<1x128x384xbf16>
    %551 = vector.shape_cast %550 : vector<1x128x384xbf16> to vector<128x384xbf16>
    %cst_203 = arith.constant dense<0.000000e+00> : vector<8x384xf32>
    %552 = tpu.matmul %549, %551, %cst_203 {dimension_numbers = #tpu.dot_dimension_numbers<[1], [0], [0], [1], [0, 0, 1, 1], [], []>} : vector<8x128xbf16>, vector<128x384xbf16>, vector<8x384xf32> -> vector<8x384xf32>
    %553 = vector.extract_strided_slice %552 {offsets = [0, 128], sizes = [8, 128], strides = [1, 1]} : vector<8x384xf32> to vector<8x128xf32>
    %554 = tpu.iota {dimensions = array<i32: 0>} : vector<8x1xi32>
    %c4_i32_204 = arith.constant 4 : i32
    %c0_i32_205 = arith.constant 0 : i32
    %555 = arith.cmpi eq, %c4_i32_204, %c0_i32_205 : i32
    %c1_i32_206 = arith.constant 1 : i32
    %556 = arith.select %555, %c1_i32_206, %c4_i32_204 : i32
    %557 = vector.broadcast %556 : i32 to vector<8x1xi32>
    %558 = arith.remsi %554, %557 : vector<8x1xi32>
    %c0_i32_207 = arith.constant 0 : i32
    %559 = vector.broadcast %c0_i32_207 : i32 to vector<8x1xi32>
    %560 = arith.cmpi ne, %558, %559 : vector<8x1xi32>
    %c0_i32_208 = arith.constant 0 : i32
    %561 = vector.broadcast %c0_i32_208 : i32 to vector<8x1xi32>
    %562 = arith.cmpi slt, %558, %561 : vector<8x1xi32>
    %c0_i32_209 = arith.constant 0 : i32
    %563 = arith.cmpi slt, %556, %c0_i32_209 : i32
    %564 = vector.broadcast %563 : i1 to vector<8x1xi1>
    %565 = vector.broadcast %564 : vector<8x1xi1> to vector<8x1xi1>
    %566 = arith.xori %562, %565 : vector<8x1xi1>
    %567 = arith.andi %566, %560 : vector<8x1xi1>
    %568 = vector.broadcast %556 : i32 to vector<8x1xi32>
    %569 = arith.addi %558, %568 : vector<8x1xi32>
    %570 = arith.select %567, %569, %558 : vector<8x1xi1>, vector<8x1xi32>
    %571 = vector.extract_strided_slice %552 {offsets = [0, 0], sizes = [8, 128], strides = [1, 1]} : vector<8x384xf32> to vector<8x128xf32>
    %c1_i32_210 = arith.constant 1 : i32
    %572 = tpu.dynamic_rotate %571 by %c1_i32_210 dim 0 : vector<8x128xf32>, i32 -> vector<8x128xf32>
    %c1_i32_211 = arith.constant 1 : i32
    %573 = vector.broadcast %c1_i32_211 : i32 to vector<8x1xi32>
    %574 = arith.cmpi sge, %570, %573 : vector<8x1xi32>
    %cst_212 = arith.constant 0.000000e+00 : f32
    %575 = vector.shape_cast %574 : vector<8x1xi1> to vector<8x1xi1>
    %576 = vector.broadcast %575 : vector<8x1xi1> to vector<8x128xi1>
    %577 = vector.broadcast %cst_212 : f32 to vector<8x128xf32>
    %578 = arith.select %576, %572, %577 : vector<8x128xi1>, vector<8x128xf32>
    %579 = arith.addf %553, %578 : vector<8x128xf32>
    %580 = vector.extract_strided_slice %552 {offsets = [0, 256], sizes = [8, 128], strides = [1, 1]} : vector<8x384xf32> to vector<8x128xf32>
    %c7_i32_213 = arith.constant 7 : i32
    %581 = tpu.dynamic_rotate %580 by %c7_i32_213 dim 0 : vector<8x128xf32>, i32 -> vector<8x128xf32>
    %c2_i32_214 = arith.constant 2 : i32
    %582 = vector.broadcast %c2_i32_214 : i32 to vector<8x1xi32>
    %583 = arith.cmpi sle, %570, %582 : vector<8x1xi32>
    %cst_215 = arith.constant 0.000000e+00 : f32
    %584 = vector.shape_cast %583 : vector<8x1xi1> to vector<8x1xi1>
    %585 = vector.broadcast %584 : vector<8x1xi1> to vector<8x128xi1>
    %586 = vector.broadcast %cst_215 : f32 to vector<8x128xf32>
    %587 = arith.select %585, %581, %586 : vector<8x128xi1>, vector<8x128xf32>
    %588 = arith.addf %579, %587 : vector<8x128xf32>
    %589 = vector.extract_strided_slice %540 {offsets = [2, 0], sizes = [1, 128], strides = [1, 1]} : vector<3x128xf32> to vector<1x128xf32>
    %590 = vector.broadcast %589 : vector<1x128xf32> to vector<8x128xf32>
    %591 = arith.addf %588, %590 : vector<8x128xf32>
    %c11 = arith.constant 11 : index
    %c0_216 = arith.constant 0 : index
    %c0_217 = arith.constant 0 : index
    %592 = vector.load %arg2[%c11, %c0_216, %c0_217] : memref<12x3x128xf32, #tpu.memory_space<vmem>>, vector<1x3x128xf32>
    %593 = vector.shape_cast %592 : vector<1x3x128xf32> to vector<3x128xf32>
    %594 = vector.extract_strided_slice %593 {offsets = [0, 0], sizes = [1, 128], strides = [1, 1]} : vector<3x128xf32> to vector<1x128xf32>
    %595 = vector.broadcast %594 : vector<1x128xf32> to vector<8x128xf32>
    %596 = arith.mulf %591, %595 : vector<8x128xf32>
    %597 = vector.extract_strided_slice %593 {offsets = [1, 0], sizes = [1, 128], strides = [1, 1]} : vector<3x128xf32> to vector<1x128xf32>
    %598 = vector.broadcast %597 : vector<1x128xf32> to vector<8x128xf32>
    %599 = arith.addf %596, %598 : vector<8x128xf32>
    %cst_218 = arith.constant 0.000000e+00 : f32
    %600 = vector.broadcast %cst_218 : f32 to vector<8x128xf32>
    %601 = arith.maximumf %599, %600 : vector<8x128xf32>
    %602 = arith.truncf %601 : vector<8x128xf32> to vector<8x128xbf16>
    %c11_219 = arith.constant 11 : index
    %c0_220 = arith.constant 0 : index
    %c0_221 = arith.constant 0 : index
    %603 = vector.load %arg1[%c11_219, %c0_220, %c0_221] : memref<12x128x384xbf16, #tpu.memory_space<vmem>>, vector<1x128x384xbf16>
    %604 = vector.shape_cast %603 : vector<1x128x384xbf16> to vector<128x384xbf16>
    %cst_222 = arith.constant dense<0.000000e+00> : vector<8x384xf32>
    %605 = tpu.matmul %602, %604, %cst_222 {dimension_numbers = #tpu.dot_dimension_numbers<[1], [0], [0], [1], [0, 0, 1, 1], [], []>} : vector<8x128xbf16>, vector<128x384xbf16>, vector<8x384xf32> -> vector<8x384xf32>
    %606 = vector.extract_strided_slice %605 {offsets = [0, 128], sizes = [8, 6], strides = [1, 1]} : vector<8x384xf32> to vector<8x6xf32>
    %607 = tpu.iota {dimensions = array<i32: 0>} : vector<8x1xi32>
    %c4_i32_223 = arith.constant 4 : i32
    %c0_i32_224 = arith.constant 0 : i32
    %608 = arith.cmpi eq, %c4_i32_223, %c0_i32_224 : i32
    %c1_i32_225 = arith.constant 1 : i32
    %609 = arith.select %608, %c1_i32_225, %c4_i32_223 : i32
    %610 = vector.broadcast %609 : i32 to vector<8x1xi32>
    %611 = arith.remsi %607, %610 : vector<8x1xi32>
    %c0_i32_226 = arith.constant 0 : i32
    %612 = vector.broadcast %c0_i32_226 : i32 to vector<8x1xi32>
    %613 = arith.cmpi ne, %611, %612 : vector<8x1xi32>
    %c0_i32_227 = arith.constant 0 : i32
    %614 = vector.broadcast %c0_i32_227 : i32 to vector<8x1xi32>
    %615 = arith.cmpi slt, %611, %614 : vector<8x1xi32>
    %c0_i32_228 = arith.constant 0 : i32
    %616 = arith.cmpi slt, %609, %c0_i32_228 : i32
    %617 = vector.broadcast %616 : i1 to vector<8x1xi1>
    %618 = vector.broadcast %617 : vector<8x1xi1> to vector<8x1xi1>
    %619 = arith.xori %615, %618 : vector<8x1xi1>
    %620 = arith.andi %619, %613 : vector<8x1xi1>
    %621 = vector.broadcast %609 : i32 to vector<8x1xi32>
    %622 = arith.addi %611, %621 : vector<8x1xi32>
    %623 = arith.select %620, %622, %611 : vector<8x1xi1>, vector<8x1xi32>
    %624 = vector.extract_strided_slice %605 {offsets = [0, 0], sizes = [8, 6], strides = [1, 1]} : vector<8x384xf32> to vector<8x6xf32>
    %c1_i32_229 = arith.constant 1 : i32
    %625 = tpu.dynamic_rotate %624 by %c1_i32_229 dim 0 : vector<8x6xf32>, i32 -> vector<8x6xf32>
    %c1_i32_230 = arith.constant 1 : i32
    %626 = vector.broadcast %c1_i32_230 : i32 to vector<8x1xi32>
    %627 = arith.cmpi sge, %623, %626 : vector<8x1xi32>
    %cst_231 = arith.constant 0.000000e+00 : f32
    %628 = vector.shape_cast %627 : vector<8x1xi1> to vector<8x1xi1>
    %629 = vector.broadcast %628 : vector<8x1xi1> to vector<8x6xi1>
    %630 = vector.broadcast %cst_231 : f32 to vector<8x6xf32>
    %631 = arith.select %629, %625, %630 : vector<8x6xi1>, vector<8x6xf32>
    %632 = arith.addf %606, %631 : vector<8x6xf32>
    %633 = vector.extract_strided_slice %605 {offsets = [0, 256], sizes = [8, 6], strides = [1, 1]} : vector<8x384xf32> to vector<8x6xf32>
    %c7_i32_232 = arith.constant 7 : i32
    %634 = tpu.dynamic_rotate %633 by %c7_i32_232 dim 0 : vector<8x6xf32>, i32 -> vector<8x6xf32>
    %c2_i32_233 = arith.constant 2 : i32
    %635 = vector.broadcast %c2_i32_233 : i32 to vector<8x1xi32>
    %636 = arith.cmpi sle, %623, %635 : vector<8x1xi32>
    %cst_234 = arith.constant 0.000000e+00 : f32
    %637 = vector.shape_cast %636 : vector<8x1xi1> to vector<8x1xi1>
    %638 = vector.broadcast %637 : vector<8x1xi1> to vector<8x6xi1>
    %639 = vector.broadcast %cst_234 : f32 to vector<8x6xf32>
    %640 = arith.select %638, %634, %639 : vector<8x6xi1>, vector<8x6xf32>
    %641 = arith.addf %632, %640 : vector<8x6xf32>
    %642 = vector.extract_strided_slice %593 {offsets = [2, 0], sizes = [1, 6], strides = [1, 1]} : vector<3x128xf32> to vector<1x6xf32>
    %643 = vector.broadcast %642 : vector<1x6xf32> to vector<8x6xf32>
    %644 = arith.addf %641, %643 : vector<8x6xf32>
    %645 = math.tanh %644 : vector<8x6xf32>
    %c0_235 = arith.constant 0 : index
    %c0_236 = arith.constant 0 : index
    %646 = vector.load %arg4[%c0_235, %c0_236] : memref<8x9xf32, #tpu.memory_space<vmem>>, vector<8x3xf32>
    tpu.vector_store %arg4[%c0_235, %c0_236], %538 {strides = array<i32>} : memref<8x9xf32, #tpu.memory_space<vmem>>, vector<8x3xf32>,
    %c0_237 = arith.constant 0 : index
    %c3_238 = arith.constant 3 : index
    %647 = vector.load %arg4[%c0_237, %c3_238] : memref<8x9xf32, #tpu.memory_space<vmem>>, vector<8x6xf32>
    tpu.vector_store %arg4[%c0_237, %c3_238], %645 {strides = array<i32>} : memref<8x9xf32, #tpu.memory_space<vmem>>, vector<8x6xf32>,
    return
  }
}

</mosaic_0001>

<llo_original>
// kernel: _lambda_.1
$region0: #{_lambda_.1}
  #allocation0 [shape = 'u32[]', space=smem, size = 0x4, offset = 0x4, fixed_abs, tag = 'smem constant byte address 0x4 - core index']
  #allocation1 [shape = 'u32[72,128]{1,0:T(1,128)}', space=vmem, size = 0x9000, scoped, tag = 'internal scratch']
  #allocation2 [shape = 'f32[64,128]{1,0:T(8,128)}', space=vmem, size = 0x8000, scoped, tag = 'scratch operand']
  %s0 = inlined_call_operand.vmem [shape: bf16[64,128], index: 0, kind: input, shape index: {}]
  %s1 = inlined_call_operand.hbm [shape: bf16[12,128,384], index: 1, kind: input, shape index: {}]
  %s2 = inlined_call_operand.hbm [shape: f32[12,3,128], index: 2, kind: input, shape index: {}]
  %s3 = inlined_call_operand.vmem [shape: f32[16,9], index: 3, kind: output, shape index: {0}]
  %s4 = inlined_call_operand.vmem [shape: f32[8,9], index: 4, kind: output, shape index: {1}]
  %5 = xla_tuple %s3, %s4
  %s6 = sld [smem:[#allocation0]]
  $region38: #{_lambda_.1} parent=0
    _
  %s8 = ssub.s32 1, %s6
  %s9 = scalar_select 0, %s8, %s6
  $region1: #{_lambda_.1} parent=0
    #allocation3 [shape = 'u8[1179648]{0}', space=vmem, size = 0x120000, scoped, tag = 'input window, operand 1, single buffered']
    #allocation4 [shape = 's32[1]{0}', space=sflag, size = 0x4, scoped, tag = 'scoped memory for _lambda_.1']
    #allocation5 [shape = 'u8[24576]{0}', space=vmem, size = 0x6000, scoped, tag = 'input window, operand 2, single buffered']
    #allocation6 [shape = 's32[1]{0}', space=sflag, size = 0x4, scoped, tag = 'scoped memory for _lambda_.1']
    %10 = vsyncpa [#allocation4], 0
    %11 = vsyncpa [#allocation6], 0
    // Predicated region
    $region2: #{_lambda_.1} parent=1 // pred_check
      _
    $region3: #{_lambda_.1} parent=1 // pred_check_branch
      %13 = sbr.rel (0) target = $region5
    $region4: #{_lambda_.1} parent=1 // pred_region
      _
    $region5: #{_lambda_.1} parent=1 // pred_fallthru
      _
    // Predicated region
    $region6: #{_lambda_.1} parent=1 // pred_check
      _
    $region7: #{_lambda_.1} parent=1 // pred_check_branch
      %15 = sbr.rel (0) target = $region9
    $region8: #{_lambda_.1} parent=1 // pred_region
      %17 = vsyncadd [#allocation4], 0
      %s18 = sshll.u32 %s1, 4
      %s19 = int_to_ptr.hbm [resolvable:$true] %s18
      %s20 = sshll.u32 [#allocation3], 4
      %s21 = int_to_ptr.vmem [resolvable:$true] %s20
      %26 = dma.hbm_to_vmem [thread:$0]  %s19, 36864, %s21, [#allocation4], 192, 192, 12
    $region9: #{_lambda_.1} parent=1 // pred_fallthru
      _
    // Predicated region
    $region10: #{_lambda_.1} parent=1 // pred_check
      _
    $region11: #{_lambda_.1} parent=1 // pred_check_branch
      %28 = sbr.rel (0) target = $region13
    $region12: #{_lambda_.1} parent=1 // pred_region
      %30 = vsyncadd [#allocation6], 0
      %s31 = sshll.u32 %s2, 4
      %s32 = int_to_ptr.hbm [resolvable:$true] %s31
      %s33 = sshll.u32 [#allocation5], 4
      %s34 = int_to_ptr.vmem [resolvable:$true] %s33
      %39 = dma.hbm_to_vmem [thread:$0]  %s32, 768, %s34, [#allocation6], 64, 64, 4
    $region13: #{_lambda_.1} parent=1 // pred_fallthru
      _
    // Predicated region
    $region14: #{_lambda_.1} parent=1 // pred_check
      _
    $region15: #{_lambda_.1} parent=1 // pred_check_branch
      %41 = sbr.rel (0) target = $region17
    $region16: #{_lambda_.1} parent=1 // pred_region
      %43 = dma.done [#allocation4], 36864
    $region17: #{_lambda_.1} parent=1 // pred_fallthru
      _
    // Predicated region
    $region18: #{_lambda_.1} parent=1 // pred_check
      _
    $region19: #{_lambda_.1} parent=1 // pred_check_branch
      %45 = sbr.rel (0) target = $region21
    $region20: #{_lambda_.1} parent=1 // pred_region
      %47 = dma.done [#allocation6], 768
    $region21: #{_lambda_.1} parent=1 // pred_fallthru
      _
    %v48 = vld [vmem:[%s0] sm:$0xf]
    %v49 = vld [vmem:[%s0 + $0x4] sm:$0xf]
    %v50 = vld [vmem:[%s0 + $0x8] sm:$0xf]
    %v51 = vld [vmem:[%s0 + $0xc] sm:$0xf]
    %v52 = vld [vmem:[%s0 + $0x10] sm:$0xf]
    %v53 = vld [vmem:[%s0 + $0x14] sm:$0xf]
    %v54 = vld [vmem:[%s0 + $0x18] sm:$0xf]
    %v55 = vld [vmem:[%s0 + $0x1c] sm:$0xf]
    %v56 = vld [vmem:[#allocation5] sm:$0x7]
    %v57 = vld [vmem:[#allocation3] sm:$0xff]
    %v58 = vld [vmem:[#allocation3 + $0x8] sm:$0xf]
    %v59 = vld [vmem:[#allocation3 + $0xc] sm:$0xff]
    %v60 = vld [vmem:[#allocation3 + $0x14] sm:$0xf]
    %v61 = vld [vmem:[#allocation3 + $0x18] sm:$0xff]
    %v62 = vld [vmem:[#allocation3 + $0x20] sm:$0xf]
    %v63 = vld [vmem:[#allocation3 + $0x24] sm:$0xff]
    %v64 = vld [vmem:[#allocation3 + $0x2c] sm:$0xf]
    %v65 = vld [vmem:[#allocation3 + $0x30] sm:$0xff]
    %v66 = vld [vmem:[#allocation3 + $0x38] sm:$0xf]
    %v67 = vld [vmem:[#allocation3 + $0x3c] sm:$0xff]
    %v68 = vld [vmem:[#allocation3 + $0x44] sm:$0xf]
    %v69 = vld [vmem:[#allocation3 + $0x48] sm:$0xff]
    %v70 = vld [vmem:[#allocation3 + $0x50] sm:$0xf]
    %v71 = vld [vmem:[#allocation3 + $0x54] sm:$0xff]
    %v72 = vld [vmem:[#allocation3 + $0x5c] sm:$0xf]
    %v73 = vld [vmem:[#allocation3 + $0x60] sm:$0xff]
    %v74 = vld [vmem:[#allocation3 + $0x68] sm:$0xf]
    %v75 = vld [vmem:[#allocation3 + $0x6c] sm:$0xff]
    %v76 = vld [vmem:[#allocation3 + $0x74] sm:$0xf]
    %v77 = vld [vmem:[#allocation3 + $0x78] sm:$0xff]
    %v78 = vld [vmem:[#allocation3 + $0x80] sm:$0xf]
    %v79 = vld [vmem:[#allocation3 + $0x84] sm:$0xff]
    %v80 = vld [vmem:[#allocation3 + $0x8c] sm:$0xf]
    %v81 = vld [vmem:[#allocation3 + $0x90] sm:$0xff]
    %v82 = vld [vmem:[#allocation3 + $0x98] sm:$0xf]
    %v83 = vld [vmem:[#allocation3 + $0x9c] sm:$0xff]
    %v84 = vld [vmem:[#allocation3 + $0xa4] sm:$0xf]
    %v85 = vld [vmem:[#allocation3 + $0xa8] sm:$0xff]
    %v86 = vld [vmem:[#allocation3 + $0xb0] sm:$0xf]
    %v87 = vld [vmem:[#allocation3 + $0xb4] sm:$0xff]
    %v88 = vld [vmem:[#allocation3 + $0xbc] sm:$0xf]
    %v97 = vunpack.c.l.b16 %v48
    %v98 = vunpack.c.l.b16 %v49
    %v99 = vunpack.c.l.b16 %v50
    %v100 = vunpack.c.l.b16 %v51
    %v101 = vunpack.c.l.b16 %v52
    %v102 = vunpack.c.l.b16 %v53
    %v103 = vunpack.c.l.b16 %v54
    %v104 = vunpack.c.l.b16 %v55
    %v105 = vpack.c.b16 %v98, %v97
    %v106 = vpack.c.b16 %v100, %v99
    %v107 = vpack.c.b16 %v102, %v101
    %v108 = vpack.c.b16 %v104, %v103
    %v145 = vunpack.c.l.b16 %v57
    %v146 = vunpack.c.h.b16 %v57
    %v147 = vunpack.c.l.b16 %v58
    %v148 = vunpack.c.l.b16 %v59
    %v149 = vunpack.c.h.b16 %v59
    %v150 = vunpack.c.l.b16 %v60
    %v151 = vunpack.c.l.b16 %v61
    %v152 = vunpack.c.h.b16 %v61
    %v153 = vunpack.c.l.b16 %v62
    %v154 = vunpack.c.l.b16 %v63
    %v155 = vunpack.c.h.b16 %v63
    %v156 = vunpack.c.l.b16 %v64
    %v157 = vunpack.c.l.b16 %v65
    %v158 = vunpack.c.h.b16 %v65
    %v159 = vunpack.c.l.b16 %v66
    %v160 = vunpack.c.l.b16 %v67
    %v161 = vunpack.c.h.b16 %v67
    %v162 = vunpack.c.l.b16 %v68
    %v163 = vunpack.c.l.b16 %v69
    %v164 = vunpack.c.h.b16 %v69
    %v165 = vunpack.c.l.b16 %v70
    %v166 = vunpack.c.l.b16 %v71
    %v167 = vunpack.c.h.b16 %v71
    %v168 = vunpack.c.l.b16 %v72
    %v169 = vunpack.c.l.b16 %v73
    %v170 = vunpack.c.h.b16 %v73
    %v171 = vunpack.c.l.b16 %v74
    %v172 = vunpack.c.l.b16 %v75
    %v173 = vunpack.c.h.b16 %v75
    %v174 = vunpack.c.l.b16 %v76
    %v175 = vunpack.c.l.b16 %v77
    %v176 = vunpack.c.h.b16 %v77
    %v177 = vunpack.c.l.b16 %v78
    %v178 = vunpack.c.l.b16 %v79
    %v179 = vunpack.c.h.b16 %v79
    %v180 = vunpack.c.l.b16 %v80
    %v181 = vunpack.c.l.b16 %v81
    %v182 = vunpack.c.h.b16 %v81
    %v183 = vunpack.c.l.b16 %v82
    %v184 = vunpack.c.l.b16 %v83
    %v185 = vunpack.c.h.b16 %v83
    %v186 = vunpack.c.l.b16 %v84
    %v187 = vunpack.c.l.b16 %v85
    %v188 = vunpack.c.h.b16 %v85
    %v189 = vunpack.c.l.b16 %v86
    %v190 = vunpack.c.l.b16 %v87
    %v191 = vunpack.c.h.b16 %v87
    %v192 = vunpack.c.l.b16 %v88
    %v193 = vpack.c.b16 %v148, %v145
    %v194 = vpack.c.b16 %v149, %v146
    %v195 = vpack.c.b16 %v150, %v147
    %v196 = vpack.c.b16 %v154, %v151
    %v197 = vpack.c.b16 %v155, %v152
    %v198 = vpack.c.b16 %v156, %v153
    %v199 = vpack.c.b16 %v160, %v157
    %v200 = vpack.c.b16 %v161, %v158
    %v201 = vpack.c.b16 %v162, %v159
    %v202 = vpack.c.b16 %v166, %v163
    %v203 = vpack.c.b16 %v167, %v164
    %v204 = vpack.c.b16 %v168, %v165
    %v205 = vpack.c.b16 %v172, %v169
    %v206 = vpack.c.b16 %v173, %v170
    %v207 = vpack.c.b16 %v174, %v171
    %v208 = vpack.c.b16 %v178, %v175
    %v209 = vpack.c.b16 %v179, %v176
    %v210 = vpack.c.b16 %v180, %v177
    %v211 = vpack.c.b16 %v184, %v181
    %v212 = vpack.c.b16 %v185, %v182
    %v213 = vpack.c.b16 %v186, %v183
    %v214 = vpack.c.b16 %v190, %v187
    %v215 = vpack.c.b16 %v191, %v188
    %v216 = vpack.c.b16 %v192, %v189
    %241 = vmatpush.bf16.msra.mxu0 %v214
    %242 = vmatpush.bf16.msra.mxu0 %v211
    %243 = vmatpush.bf16.msra.mxu0 %v208
    %244 = vmatpush.bf16.msra.mxu0 %v205
    %245 = vmatpush.bf16.msra.mxu0 %v202
    %246 = vmatpush.bf16.msra.mxu0 %v199
    %247 = vmatpush.bf16.msra.mxu0 %v196
    %248 = vmatpush.bf16.msra.mxu0 %v193
    %249 = vmatmul.bf16.gmra.mxu0 %v105
    %v250 = vpop.f32.mrf.mxu0
    %v251 = vadd.f32 0.0, %v250
    %v252 = vpop.f32.mrf.mxu0
    %v253 = vadd.f32 0.0, %v252
    %254 = vmatmul.bf16.gmra.mxu0 %v106
    %v255 = vpop.f32.mrf.mxu0
    %v256 = vadd.f32 0.0, %v255
    %v257 = vpop.f32.mrf.mxu0
    %v258 = vadd.f32 0.0, %v257
    %259 = vmatmul.bf16.gmra.mxu0 %v107
    %v260 = vpop.f32.mrf.mxu0
    %v261 = vadd.f32 0.0, %v260
    %v262 = vpop.f32.mrf.mxu0
    %v263 = vadd.f32 0.0, %v262
    %264 = vmatmul.bf16.gmra.mxu0 %v108
    %v265 = vpop.f32.mrf.mxu0
    %v266 = vadd.f32 0.0, %v265
    %v267 = vpop.f32.mrf.mxu0
    %v268 = vadd.f32 0.0, %v267
    %269 = vdwg.mxu0
    %270 = vmatpush.bf16.msra.mxu0 %v215
    %271 = vmatpush.bf16.msra.mxu0 %v212
    %272 = vmatpush.bf16.msra.mxu0 %v209
    %273 = vmatpush.bf16.msra.mxu0 %v206
    %274 = vmatpush.bf16.msra.mxu0 %v203
    %275 = vmatpush.bf16.msra.mxu0 %v200
    %276 = vmatpush.bf16.msra.mxu0 %v197
    %277 = vmatpush.bf16.msra.mxu0 %v194
    %278 = vmatmul.bf16.gmra.mxu0 %v105
    %v279 = vpop.f32.mrf.mxu0
    %v280 = vadd.f32 0.0, %v279
    %v281 = vpop.f32.mrf.mxu0
    %v282 = vadd.f32 0.0, %v281
    %283 = vmatmul.bf16.gmra.mxu0 %v106
    %v284 = vpop.f32.mrf.mxu0
    %v285 = vadd.f32 0.0, %v284
    %v286 = vpop.f32.mrf.mxu0
    %v287 = vadd.f32 0.0, %v286
    %288 = vmatmul.bf16.gmra.mxu0 %v107
    %v289 = vpop.f32.mrf.mxu0
    %v290 = vadd.f32 0.0, %v289
    %v291 = vpop.f32.mrf.mxu0
    %v292 = vadd.f32 0.0, %v291
    %293 = vmatmul.bf16.gmra.mxu0 %v108
    %v294 = vpop.f32.mrf.mxu0
    %v295 = vadd.f32 0.0, %v294
    %v296 = vpop.f32.mrf.mxu0
    %v297 = vadd.f32 0.0, %v296
    %298 = vdwg.mxu0
    %299 = vmatpush.bf16.msra.mxu0 %v216
    %300 = vmatpush.bf16.msra.mxu0 %v213
    %301 = vmatpush.bf16.msra.mxu0 %v210
    %302 = vmatpush.bf16.msra.mxu0 %v207
    %303 = vmatpush.bf16.msra.mxu0 %v204
    %304 = vmatpush.bf16.msra.mxu0 %v201
    %305 = vmatpush.bf16.msra.mxu0 %v198
    %306 = vmatpush.bf16.msra.mxu0 %v195
    %307 = vmatmul.bf16.gmra.mxu0 %v105
    %v308 = vpop.f32.mrf.mxu0
    %v309 = vadd.f32 0.0, %v308
    %v310 = vpop.f32.mrf.mxu0
    %v311 = vadd.f32 0.0, %v310
    %312 = vmatmul.bf16.gmra.mxu0 %v106
    %v313 = vpop.f32.mrf.mxu0
    %v314 = vadd.f32 0.0, %v313
    %v315 = vpop.f32.mrf.mxu0
    %v316 = vadd.f32 0.0, %v315
    %317 = vmatmul.bf16.gmra.mxu0 %v107
    %v318 = vpop.f32.mrf.mxu0
    %v319 = vadd.f32 0.0, %v318
    %v320 = vpop.f32.mrf.mxu0
    %v321 = vadd.f32 0.0, %v320
    %322 = vmatmul.bf16.gmra.mxu0 %v108
    %v323 = vpop.f32.mrf.mxu0
    %v324 = vadd.f32 0.0, %v323
    %v325 = vpop.f32.mrf.mxu0
    %v326 = vadd.f32 0.0, %v325
    %327 = vdwg.mxu0
    %v328 = vlaneseq
    %v329 = vshrl.u32 %v328, 7
    %v330 = vadd.s32 %v329, 8
    %v331 = vadd.s32 %v329, 16
    %v332 = vadd.s32 %v329, 24
    %v333 = vadd.s32 %v329, 32
    %v334 = vadd.s32 %v329, 40
    %v335 = vadd.s32 %v329, 48
    %v336 = vadd.s32 %v329, 56
    %vm337 = vcmp.lt.s32.totalorder %v329, 0
    %v338 = vsub.s32 0, %v329
    %v339 = vsel %vm337, %v338, %v329
    %v340 = vshrl.u32 %v339, 5
    %v341 = vand.u32 %v339, 31
    %v342 = vsub.s32 0, %v341
    %v343 = vsel %vm337, %v342, %v341
    %vm344 = vcmp.lt.s32.totalorder %v330, 0
    %v345 = vsub.s32 0, %v330
    %v346 = vsel %vm344, %v345, %v330
    %v347 = vshrl.u32 %v346, 5
    %v348 = vand.u32 %v346, 31
    %v349 = vsub.s32 0, %v348
    %v350 = vsel %vm344, %v349, %v348
    %vm351 = vcmp.lt.s32.totalorder %v331, 0
    %v352 = vsub.s32 0, %v331
    %v353 = vsel %vm351, %v352, %v331
    %v354 = vshrl.u32 %v353, 5
    %v355 = vand.u32 %v353, 31
    %v356 = vsub.s32 0, %v355
    %v357 = vsel %vm351, %v356, %v355
    %vm358 = vcmp.lt.s32.totalorder %v332, 0
    %v359 = vsub.s32 0, %v332
    %v360 = vsel %vm358, %v359, %v332
    %v361 = vshrl.u32 %v360, 5
    %v362 = vand.u32 %v360, 31
    %v363 = vsub.s32 0, %v362
    %v364 = vsel %vm358, %v363, %v362
    %vm365 = vcmp.lt.s32.totalorder %v333, 0
    %v366 = vsub.s32 0, %v333
    %v367 = vsel %vm365, %v366, %v333
    %v368 = vshrl.u32 %v367, 5
    %v369 = vand.u32 %v367, 31
    %v370 = vsub.s32 0, %v369
    %v371 = vsel %vm365, %v370, %v369
    %vm372 = vcmp.lt.s32.totalorder %v334, 0
    %v373 = vsub.s32 0, %v334
    %v374 = vsel %vm372, %v373, %v334
    %v375 = vshrl.u32 %v374, 5
    %v376 = vand.u32 %v374, 31
    %v377 = vsub.s32 0, %v376
    %v378 = vsel %vm372, %v377, %v376
    %vm379 = vcmp.lt.s32.totalorder %v335, 0
    %v380 = vsub.s32 0, %v335
    %v381 = vsel %vm379, %v380, %v335
    %v382 = vshrl.u32 %v381, 5
    %v383 = vand.u32 %v381, 31
    %v384 = vsub.s32 0, %v383
    %v385 = vsel %vm379, %v384, %v383
    %vm386 = vcmp.lt.s32.totalorder %v336, 0
    %v387 = vsub.s32 0, %v336
    %v388 = vsel %vm386, %v387, %v336
    %v389 = vshrl.u32 %v388, 5
    %v390 = vand.u32 %v388, 31
    %v391 = vsub.s32 0, %v390
    %v392 = vsel %vm386, %v391, %v390
    %vm393 = vcmp.ne.s32.totalorder %v343, 0
    %vm394 = vcmp.ne.s32.totalorder %v350, 0
    %vm395 = vcmp.ne.s32.totalorder %v357, 0
    %vm396 = vcmp.ne.s32.totalorder %v364, 0
    %vm397 = vcmp.ne.s32.totalorder %v371, 0
    %vm398 = vcmp.ne.s32.totalorder %v378, 0
    %vm399 = vcmp.ne.s32.totalorder %v385, 0
    %vm400 = vcmp.ne.s32.totalorder %v392, 0
    %vm401 = vcmp.lt.s32.totalorder %v343, 0
    %vm402 = vcmp.lt.s32.totalorder %v350, 0
    %vm403 = vcmp.lt.s32.totalorder %v357, 0
    %vm404 = vcmp.lt.s32.totalorder %v364, 0
    %vm405 = vcmp.lt.s32.totalorder %v371, 0
    %vm406 = vcmp.lt.s32.totalorder %v378, 0
    %vm407 = vcmp.lt.s32.totalorder %v385, 0
    %vm408 = vcmp.lt.s32.totalorder %v392, 0
    %vm409 = vmand %vm401, %vm393
    %vm410 = vmand %vm402, %vm394
    %vm411 = vmand %vm403, %vm395
    %vm412 = vmand %vm404, %vm396
    %vm413 = vmand %vm405, %vm397
    %vm414 = vmand %vm406, %vm398
    %vm415 = vmand %vm407, %vm399
    %vm416 = vmand %vm408, %vm400
    %v417 = vadd.s32 %v343, 32
    %v418 = vadd.s32 %v350, 32
    %v419 = vadd.s32 %v357, 32
    %v420 = vadd.s32 %v364, 32
    %v421 = vadd.s32 %v371, 32
    %v422 = vadd.s32 %v378, 32
    %v423 = vadd.s32 %v385, 32
    %v424 = vadd.s32 %v392, 32
    %v425 = vsel %vm409, %v417, %v343
    %v426 = vsel %vm410, %v418, %v350
    %v427 = vsel %vm411, %v419, %v357
    %v428 = vsel %vm412, %v420, %v364
    %v429 = vsel %vm413, %v421, %v371
    %v430 = vsel %vm414, %v422, %v378
    %v431 = vsel %vm415, %v423, %v385
    %v432 = vsel %vm416, %v424, %v392
    %v433 = vrot.slane %v251, 7
    %v434 = vrot.slane %v253, 7
    %v435 = vrot.slane %v256, 7
    %v436 = vrot.slane %v258, 7
    %v437 = vrot.slane %v261, 7
    %v438 = vrot.slane %v263, 7
    %v439 = vrot.slane %v266, 7
    %v440 = vrot.slane %v268, 7
    %vm441 = vcmp.lt.s32.totalorder %v329, 1
    %v442 = vsel %vm441, %v439, %v440
    %v443 = vsel %vm441, %v438, %v439
    %v444 = vsel %vm441, %v437, %v438
    %v445 = vsel %vm441, %v436, %v437
    %v446 = vsel %vm441, %v435, %v436
    %v447 = vsel %vm441, %v434, %v435
    %v448 = vsel %vm441, %v433, %v434
    %v449 = vsel %vm441, %v440, %v433
    %vm450 = vcmp.ge.s32.totalorder %v425, 1
    %vm451 = vcmp.ge.s32.totalorder %v426, 1
    %vm452 = vcmp.ge.s32.totalorder %v427, 1
    %vm453 = vcmp.ge.s32.totalorder %v428, 1
    %vm454 = vcmp.ge.s32.totalorder %v429, 1
    %vm455 = vcmp.ge.s32.totalorder %v430, 1
    %vm456 = vcmp.ge.s32.totalorder %v431, 1
    %vm457 = vcmp.ge.s32.totalorder %v432, 1
    %v458 = vsel %vm450, 1, 0
    %v459 = vsel %vm451, 1, 0
    %v460 = vsel %vm452, 1, 0
    %v461 = vsel %vm453, 1, 0
    %v462 = vsel %vm454, 1, 0
    %v463 = vsel %vm455, 1, 0
    %v464 = vsel %vm456, 1, 0
    %v465 = vsel %vm457, 1, 0
    %vm466 = vcmp.eq.s32.totalorder %v458, 1
    %vm467 = vcmp.eq.s32.totalorder %v459, 1
    %vm468 = vcmp.eq.s32.totalorder %v460, 1
    %vm469 = vcmp.eq.s32.totalorder %v461, 1
    %vm470 = vcmp.eq.s32.totalorder %v462, 1
    %vm471 = vcmp.eq.s32.totalorder %v463, 1
    %vm472 = vcmp.eq.s32.totalorder %v464, 1
    %vm473 = vcmp.eq.s32.totalorder %v465, 1
    %v474 = vsel %vm466, %v449, 0.0
    %v475 = vsel %vm467, %v448, 0.0
    %v476 = vsel %vm468, %v447, 0.0
    %v477 = vsel %vm469, %v446, 0.0
    %v478 = vsel %vm470, %v445, 0.0
    %v479 = vsel %vm471, %v444, 0.0
    %v480 = vsel %vm472, %v443, 0.0
    %v481 = vsel %vm473, %v442, 0.0
    %v482 = vadd.f32 %v280, %v474
    %v483 = vadd.f32 %v282, %v475
    %v484 = vadd.f32 %v285, %v476
    %v485 = vadd.f32 %v287, %v477
    %v486 = vadd.f32 %v290, %v478
    %v487 = vadd.f32 %v292, %v479
    %v488 = vadd.f32 %v295, %v480
    %v489 = vadd.f32 %v297, %v481
    %v490 = vrot.slane %v309, 1
    %v491 = vrot.slane %v311, 1
    %v492 = vrot.slane %v314, 1
    %v493 = vrot.slane %v316, 1
    %v494 = vrot.slane %v319, 1
    %v495 = vrot.slane %v321, 1
    %v496 = vrot.slane %v324, 1
    %v497 = vrot.slane %v326, 1
    %vm498 = vcmp.lt.s32.totalorder %v329, 7
    %v499 = vsel %vm498, %v496, %v497
    %v500 = vsel %vm498, %v495, %v496
    %v501 = vsel %vm498, %v494, %v495
    %v502 = vsel %vm498, %v493, %v494
    %v503 = vsel %vm498, %v492, %v493
    %v504 = vsel %vm498, %v491, %v492
    %v505 = vsel %vm498, %v490, %v491
    %v506 = vsel %vm498, %v497, %v490
    %vm507 = vcmp.le.s32.totalorder %v425, 30
    %vm508 = vcmp.le.s32.totalorder %v426, 30
    %vm509 = vcmp.le.s32.totalorder %v427, 30
    %vm510 = vcmp.le.s32.totalorder %v428, 30
    %vm511 = vcmp.le.s32.totalorder %v429, 30
    %vm512 = vcmp.le.s32.totalorder %v430, 30
    %vm513 = vcmp.le.s32.totalorder %v431, 30
    %vm514 = vcmp.le.s32.totalorder %v432, 30
    %v515 = vsel %vm507, 1, 0
    %v516 = vsel %vm508, 1, 0
    %v517 = vsel %vm509, 1, 0
    %v518 = vsel %vm510, 1, 0
    %v519 = vsel %vm511, 1, 0
    %v520 = vsel %vm512, 1, 0
    %v521 = vsel %vm513, 1, 0
    %v522 = vsel %vm514, 1, 0
    %vm523 = vcmp.eq.s32.totalorder %v515, 1
    %vm524 = vcmp.eq.s32.totalorder %v516, 1
    %vm525 = vcmp.eq.s32.totalorder %v517, 1
    %vm526 = vcmp.eq.s32.totalorder %v518, 1
    %vm527 = vcmp.eq.s32.totalorder %v519, 1
    %vm528 = vcmp.eq.s32.totalorder %v520, 1
    %vm529 = vcmp.eq.s32.totalorder %v521, 1
    %vm530 = vcmp.eq.s32.totalorder %v522, 1
    %v531 = vsel %vm523, %v505, 0.0
    %v532 = vsel %vm524, %v504, 0.0
    %v533 = vsel %vm525, %v503, 0.0
    %v534 = vsel %vm526, %v502, 0.0
    %v535 = vsel %vm527, %v501, 0.0
    %v536 = vsel %vm528, %v500, 0.0
    %v537 = vsel %vm529, %v499, 0.0
    %v538 = vsel %vm530, %v506, 0.0
    %v539 = vadd.f32 %v482, %v531
    %v540 = vadd.f32 %v483, %v532
    %v541 = vadd.f32 %v484, %v533
    %v542 = vadd.f32 %v485, %v534
    %v543 = vadd.f32 %v486, %v535
    %v544 = vadd.f32 %v487, %v536
    %v545 = vadd.f32 %v488, %v537
    %v546 = vadd.f32 %v489, %v538
    %v547 = vperm.slane %v56, 2
    %v548 = vadd.f32 %v539, %v547
    %v549 = vadd.f32 %v540, %v547
    %v550 = vadd.f32 %v541, %v547
    %v551 = vadd.f32 %v542, %v547
    %v552 = vadd.f32 %v543, %v547
    %v553 = vadd.f32 %v544, %v547
    %v554 = vadd.f32 %v545, %v547
    %v555 = vadd.f32 %v546, %v547
    %s556 = scalar_lea.vmem [#allocation5], 4
    %v557 = vld [vmem:[%s556] sm:$0x7]
    %v558 = vperm.slane %v557, 0
    %v559 = vmul.f32 %v548, %v558
    %v560 = vmul.f32 %v549, %v558
    %v561 = vmul.f32 %v550, %v558
    %v562 = vmul.f32 %v551, %v558
    %v563 = vmul.f32 %v552, %v558
    %v564 = vmul.f32 %v553, %v558
    %v565 = vmul.f32 %v554, %v558
    %v566 = vmul.f32 %v555, %v558
    %v567 = vperm.slane %v557, 1
    %v568 = vadd.f32 %v559, %v567
    %v569 = vadd.f32 %v560, %v567
    %v570 = vadd.f32 %v561, %v567
    %v571 = vadd.f32 %v562, %v567
    %v572 = vadd.f32 %v563, %v567
    %v573 = vadd.f32 %v564, %v567
    %v574 = vadd.f32 %v565, %v567
    %v575 = vadd.f32 %v566, %v567
    %v576 = vmax.f32 %v568, 0.0
    %v577 = vmax.f32 %v569, 0.0
    %v578 = vmax.f32 %v570, 0.0
    %v579 = vmax.f32 %v571, 0.0
    %v580 = vmax.f32 %v572, 0.0
    %v581 = vmax.f32 %v573, 0.0
    %v582 = vmax.f32 %v574, 0.0
    %v583 = vmax.f32 %v575, 0.0
    %v584 = vpack.c.bf16 %v577, %v576
    %v585 = vpack.c.bf16 %v579, %v578
    %v586 = vpack.c.bf16 %v581, %v580
    %v587 = vpack.c.bf16 %v583, %v582
    %s588 = scalar_lea.vmem [#allocation3], 192
    %v589 = vld [vmem:[%s588] sm:$0xff]
    %v590 = vld [vmem:[%s588 + $0x8] sm:$0xf]
    %v591 = vld [vmem:[%s588 + $0xc] sm:$0xff]
    %v592 = vld [vmem:[%s588 + $0x14] sm:$0xf]
    %v593 = vld [vmem:[%s588 + $0x18] sm:$0xff]
    %v594 = vld [vmem:[%s588 + $0x20] sm:$0xf]
    %v595 = vld [vmem:[%s588 + $0x24] sm:$0xff]
    %v596 = vld [vmem:[%s588 + $0x2c] sm:$0xf]
    %v597 = vld [vmem:[%s588 + $0x30] sm:$0xff]
    %v598 = vld [vmem:[%s588 + $0x38] sm:$0xf]
    %v599 = vld [vmem:[%s588 + $0x3c] sm:$0xff]
    %v600 = vld [vmem:[%s588 + $0x44] sm:$0xf]
    %v601 = vld [vmem:[%s588 + $0x48] sm:$0xff]
    %v602 = vld [vmem:[%s588 + $0x50] sm:$0xf]
    %v603 = vld [vmem:[%s588 + $0x54] sm:$0xff]
    %v604 = vld [vmem:[%s588 + $0x5c] sm:$0xf]
    %v605 = vld [vmem:[%s588 + $0x60] sm:$0xff]
    %v606 = vld [vmem:[%s588 + $0x68] sm:$0xf]
    %v607 = vld [vmem:[%s588 + $0x6c] sm:$0xff]
    %v608 = vld [vmem:[%s588 + $0x74] sm:$0xf]
    %v609 = vld [vmem:[%s588 + $0x78] sm:$0xff]
    %v610 = vld [vmem:[%s588 + $0x80] sm:$0xf]
    %v611 = vld [vmem:[%s588 + $0x84] sm:$0xff]
    %v612 = vld [vmem:[%s588 + $0x8c] sm:$0xf]
    %v613 = vld [vmem:[%s588 + $0x90] sm:$0xff]
    %v614 = vld [vmem:[%s588 + $0x98] sm:$0xf]
    %v615 = vld [vmem:[%s588 + $0x9c] sm:$0xff]
    %v616 = vld [vmem:[%s588 + $0xa4] sm:$0xf]
    %v617 = vld [vmem:[%s588 + $0xa8] sm:$0xff]
    %v618 = vld [vmem:[%s588 + $0xb0] sm:$0xf]
    %v619 = vld [vmem:[%s588 + $0xb4] sm:$0xff]
    %v620 = vld [vmem:[%s588 + $0xbc] sm:$0xf]
    %v653 = vunpack.c.l.b16 %v589
    %v654 = vunpack.c.h.b16 %v589
    %v655 = vunpack.c.l.b16 %v590
    %v656 = vunpack.c.l.b16 %v591
    %v657 = vunpack.c.h.b16 %v591
    %v658 = vunpack.c.l.b16 %v592
    %v659 = vunpack.c.l.b16 %v593
    %v660 = vunpack.c.h.b16 %v593
    %v661 = vunpack.c.l.b16 %v594
    %v662 = vunpack.c.l.b16 %v595
    %v663 = vunpack.c.h.b16 %v595
    %v664 = vunpack.c.l.b16 %v596
    %v665 = vunpack.c.l.b16 %v597
    %v666 = vunpack.c.h.b16 %v597
    %v667 = vunpack.c.l.b16 %v598
    %v668 = vunpack.c.l.b16 %v599
    %v669 = vunpack.c.h.b16 %v599
    %v670 = vunpack.c.l.b16 %v600
    %v671 = vunpack.c.l.b16 %v601
    %v672 = vunpack.c.h.b16 %v601
    %v673 = vunpack.c.l.b16 %v602
    %v674 = vunpack.c.l.b16 %v603
    %v675 = vunpack.c.h.b16 %v603
    %v676 = vunpack.c.l.b16 %v604
    %v677 = vunpack.c.l.b16 %v605
    %v678 = vunpack.c.h.b16 %v605
    %v679 = vunpack.c.l.b16 %v606
    %v680 = vunpack.c.l.b16 %v607
    %v681 = vunpack.c.h.b16 %v607
    %v682 = vunpack.c.l.b16 %v608
    %v683 = vunpack.c.l.b16 %v609
    %v684 = vunpack.c.h.b16 %v609
    %v685 = vunpack.c.l.b16 %v610
    %v686 = vunpack.c.l.b16 %v611
    %v687 = vunpack.c.h.b16 %v611
    %v688 = vunpack.c.l.b16 %v612
    %v689 = vunpack.c.l.b16 %v613
    %v690 = vunpack.c.h.b16 %v613
    %v691 = vunpack.c.l.b16 %v614
    %v692 = vunpack.c.l.b16 %v615
    %v693 = vunpack.c.h.b16 %v615
    %v694 = vunpack.c.l.b16 %v616
    %v695 = vunpack.c.l.b16 %v617
    %v696 = vunpack.c.h.b16 %v617
    %v697 = vunpack.c.l.b16 %v618
    %v698 = vunpack.c.l.b16 %v619
    %v699 = vunpack.c.h.b16 %v619
    %v700 = vunpack.c.l.b16 %v620
    %v701 = vpack.c.b16 %v656, %v653
    %v702 = vpack.c.b16 %v657, %v654
    %v703 = vpack.c.b16 %v658, %v655
    %v704 = vpack.c.b16 %v662, %v659
    %v705 = vpack.c.b16 %v663, %v660
    %v706 = vpack.c.b16 %v664, %v661
    %v707 = vpack.c.b16 %v668, %v665
    %v708 = vpack.c.b16 %v669, %v666
    %v709 = vpack.c.b16 %v670, %v667
    %v710 = vpack.c.b16 %v674, %v671
    %v711 = vpack.c.b16 %v675, %v672
    %v712 = vpack.c.b16 %v676, %v673
    %v713 = vpack.c.b16 %v680, %v677
    %v714 = vpack.c.b16 %v681, %v678
    %v715 = vpack.c.b16 %v682, %v679
    %v716 = vpack.c.b16 %v686, %v683
    %v717 = vpack.c.b16 %v687, %v684
    %v718 = vpack.c.b16 %v688, %v685
    %v719 = vpack.c.b16 %v692, %v689
    %v720 = vpack.c.b16 %v693, %v690
    %v721 = vpack.c.b16 %v694, %v691
    %v722 = vpack.c.b16 %v698, %v695
    %v723 = vpack.c.b16 %v699, %v696
    %v724 = vpack.c.b16 %v700, %v697
    %749 = vmatpush.bf16.msra.mxu0 %v722
    %750 = vmatpush.bf16.msra.mxu0 %v719
    %751 = vmatpush.bf16.msra.mxu0 %v716
    %752 = vmatpush.bf16.msra.mxu0 %v713
    %753 = vmatpush.bf16.msra.mxu0 %v710
    %754 = vmatpush.bf16.msra.mxu0 %v707
    %755 = vmatpush.bf16.msra.mxu0 %v704
    %756 = vmatpush.bf16.msra.mxu0 %v701
    %757 = vmatmul.bf16.gmra.mxu0 %v584
    %v758 = vpop.f32.mrf.mxu0
    %v759 = vadd.f32 0.0, %v758
    %v760 = vpop.f32.mrf.mxu0
    %v761 = vadd.f32 0.0, %v760
    %762 = vmatmul.bf16.gmra.mxu0 %v585
    %v763 = vpop.f32.mrf.mxu0
    %v764 = vadd.f32 0.0, %v763
    %v765 = vpop.f32.mrf.mxu0
    %v766 = vadd.f32 0.0, %v765
    %767 = vmatmul.bf16.gmra.mxu0 %v586
    %v768 = vpop.f32.mrf.mxu0
    %v769 = vadd.f32 0.0, %v768
    %v770 = vpop.f32.mrf.mxu0
    %v771 = vadd.f32 0.0, %v770
    %772 = vmatmul.bf16.gmra.mxu0 %v587
    %v773 = vpop.f32.mrf.mxu0
    %v774 = vadd.f32 0.0, %v773
    %v775 = vpop.f32.mrf.mxu0
    %v776 = vadd.f32 0.0, %v775
    %777 = vdwg.mxu0
    %778 = vmatpush.bf16.msra.mxu0 %v723
    %779 = vmatpush.bf16.msra.mxu0 %v720
    %780 = vmatpush.bf16.msra.mxu0 %v717
    %781 = vmatpush.bf16.msra.mxu0 %v714
    %782 = vmatpush.bf16.msra.mxu0 %v711
    %783 = vmatpush.bf16.msra.mxu0 %v708
    %784 = vmatpush.bf16.msra.mxu0 %v705
    %785 = vmatpush.bf16.msra.mxu0 %v702
    %786 = vmatmul.bf16.gmra.mxu0 %v584
    %v787 = vpop.f32.mrf.mxu0
    %v788 = vadd.f32 0.0, %v787
    %v789 = vpop.f32.mrf.mxu0
    %v790 = vadd.f32 0.0, %v789
    %791 = vmatmul.bf16.gmra.mxu0 %v585
    %v792 = vpop.f32.mrf.mxu0
    %v793 = vadd.f32 0.0, %v792
    %v794 = vpop.f32.mrf.mxu0
    %v795 = vadd.f32 0.0, %v794
    %796 = vmatmul.bf16.gmra.mxu0 %v586
    %v797 = vpop.f32.mrf.mxu0
    %v798 = vadd.f32 0.0, %v797
    %v799 = vpop.f32.mrf.mxu0
    %v800 = vadd.f32 0.0, %v799
    %801 = vmatmul.bf16.gmra.mxu0 %v587
    %v802 = vpop.f32.mrf.mxu0
    %v803 = vadd.f32 0.0, %v802
    %v804 = vpop.f32.mrf.mxu0
    %v805 = vadd.f32 0.0, %v804
    %806 = vdwg.mxu0
    %807 = vmatpush.bf16.msra.mxu0 %v724
    %808 = vmatpush.bf16.msra.mxu0 %v721
    %809 = vmatpush.bf16.msra.mxu0 %v718
    %810 = vmatpush.bf16.msra.mxu0 %v715
    %811 = vmatpush.bf16.msra.mxu0 %v712
    %812 = vmatpush.bf16.msra.mxu0 %v709
    %813 = vmatpush.bf16.msra.mxu0 %v706
    %814 = vmatpush.bf16.msra.mxu0 %v703
    %815 = vmatmul.bf16.gmra.mxu0 %v584
    %v816 = vpop.f32.mrf.mxu0
    %v817 = vadd.f32 0.0, %v816
    %v818 = vpop.f32.mrf.mxu0
    %v819 = vadd.f32 0.0, %v818
    %820 = vmatmul.bf16.gmra.mxu0 %v585
    %v821 = vpop.f32.mrf.mxu0
    %v822 = vadd.f32 0.0, %v821
    %v823 = vpop.f32.mrf.mxu0
    %v824 = vadd.f32 0.0, %v823
    %825 = vmatmul.bf16.gmra.mxu0 %v586
    %v826 = vpop.f32.mrf.mxu0
    %v827 = vadd.f32 0.0, %v826
    %v828 = vpop.f32.mrf.mxu0
    %v829 = vadd.f32 0.0, %v828
    %830 = vmatmul.bf16.gmra.mxu0 %v587
    %v831 = vpop.f32.mrf.mxu0
    %v832 = vadd.f32 0.0, %v831
    %v833 = vpop.f32.mrf.mxu0
    %v834 = vadd.f32 0.0, %v833
    %835 = vdwg.mxu0
    %v836 = vrot.slane %v759, 7
    %v837 = vrot.slane %v761, 7
    %v838 = vrot.slane %v764, 7
    %v839 = vrot.slane %v766, 7
    %v840 = vrot.slane %v769, 7
    %v841 = vrot.slane %v771, 7
    %v842 = vrot.slane %v774, 7
    %v843 = vrot.slane %v776, 7
    %v844 = vsel %vm441, %v842, %v843
    %v845 = vsel %vm441, %v841, %v842
    %v846 = vsel %vm441, %v840, %v841
    %v847 = vsel %vm441, %v839, %v840
    %v848 = vsel %vm441, %v838, %v839
    %v849 = vsel %vm441, %v837, %v838
    %v850 = vsel %vm441, %v836, %v837
    %v851 = vsel %vm441, %v843, %v836
    %v852 = vsel %vm466, %v851, 0.0
    %v853 = vsel %vm467, %v850, 0.0
    %v854 = vsel %vm468, %v849, 0.0
    %v855 = vsel %vm469, %v848, 0.0
    %v856 = vsel %vm470, %v847, 0.0
    %v857 = vsel %vm471, %v846, 0.0
    %v858 = vsel %vm472, %v845, 0.0
    %v859 = vsel %vm473, %v844, 0.0
    %v860 = vadd.f32 %v788, %v852
    %v861 = vadd.f32 %v790, %v853
    %v862 = vadd.f32 %v793, %v854
    %v863 = vadd.f32 %v795, %v855
    %v864 = vadd.f32 %v798, %v856
    %v865 = vadd.f32 %v800, %v857
    %v866 = vadd.f32 %v803, %v858
    %v867 = vadd.f32 %v805, %v859
    %v868 = vrot.slane %v817, 1
    %v869 = vrot.slane %v819, 1
    %v870 = vrot.slane %v822, 1
    %v871 = vrot.slane %v824, 1
    %v872 = vrot.slane %v827, 1
    %v873 = vrot.slane %v829, 1
    %v874 = vrot.slane %v832, 1
    %v875 = vrot.slane %v834, 1
    %v876 = vsel %vm498, %v874, %v875
    %v877 = vsel %vm498, %v873, %v874
    %v878 = vsel %vm498, %v872, %v873
    %v879 = vsel %vm498, %v871, %v872
    %v880 = vsel %vm498, %v870, %v871
    %v881 = vsel %vm498, %v869, %v870
    %v882 = vsel %vm498, %v868, %v869
    %v883 = vsel %vm498, %v875, %v868
    %v884 = vsel %vm523, %v882, 0.0
    %v885 = vsel %vm524, %v881, 0.0
    %v886 = vsel %vm525, %v880, 0.0
    %v887 = vsel %vm526, %v879, 0.0
    %v888 = vsel %vm527, %v878, 0.0
    %v889 = vsel %vm528, %v877, 0.0
    %v890 = vsel %vm529, %v876, 0.0
    %v891 = vsel %vm530, %v883, 0.0
    %v892 = vadd.f32 %v860, %v884
    %v893 = vadd.f32 %v861, %v885
    %v894 = vadd.f32 %v862, %v886
    %v895 = vadd.f32 %v863, %v887
    %v896 = vadd.f32 %v864, %v888
    %v897 = vadd.f32 %v865, %v889
    %v898 = vadd.f32 %v866, %v890
    %v899 = vadd.f32 %v867, %v891
    %v900 = vperm.slane %v557, 2
    %v901 = vadd.f32 %v892, %v900
    %v902 = vadd.f32 %v893, %v900
    %v903 = vadd.f32 %v894, %v900
    %v904 = vadd.f32 %v895, %v900
    %v905 = vadd.f32 %v896, %v900
    %v906 = vadd.f32 %v897, %v900
    %v907 = vadd.f32 %v898, %v900
    %v908 = vadd.f32 %v899, %v900
    %v909 = vrot.slane %v901, 1
    %v910 = vrot.slane %v902, 1
    %v911 = vrot.slane %v903, 1
    %v912 = vrot.slane %v904, 1
    %v913 = vrot.slane %v905, 1
    %v914 = vrot.slane %v906, 1
    %v915 = vrot.slane %v907, 1
    %v916 = vrot.slane %v908, 1
    %v917 = vsel %vm498, %v915, %v916
    %v918 = vsel %vm498, %v914, %v915
    %v919 = vsel %vm498, %v913, %v914
    %v920 = vsel %vm498, %v912, %v913
    %v921 = vsel %vm498, %v911, %v912
    %v922 = vsel %vm498, %v910, %v911
    %v923 = vsel %vm498, %v909, %v910
    %v924 = vsel %vm498, %v916, %v909
    %v925 = vmax.f32 %v901, %v923
    %v926 = vmax.f32 %v902, %v922
    %v927 = vmax.f32 %v903, %v921
    %v928 = vmax.f32 %v904, %v920
    %v929 = vmax.f32 %v905, %v919
    %v930 = vmax.f32 %v906, %v918
    %v931 = vmax.f32 %v907, %v917
    %v932 = vmax.f32 %v908, %v924
    %933 = vst [vmem:[#allocation2] sm:$0xff] %v925
    %934 = vst [vmem:[#allocation2 + $0x8] sm:$0xff] %v926
    %935 = vst [vmem:[#allocation2 + $0x10] sm:$0xff] %v927
    %936 = vst [vmem:[#allocation2 + $0x18] sm:$0xff] %v928
    %937 = vst [vmem:[#allocation2 + $0x20] sm:$0xff] %v929
    %938 = vst [vmem:[#allocation2 + $0x28] sm:$0xff] %v930
    %939 = vst [vmem:[#allocation2 + $0x30] sm:$0xff] %v931
    %940 = vst [vmem:[#allocation2 + $0x38] sm:$0xff] %v932
    %v941 = vld [vmem:[#allocation2] ss:$2 sm:$0xff]
    %s942 = scalar_lea.vmem [#allocation2], 16
    %v943 = vld [vmem:[%s942] ss:$2 sm:$0xff]
    %s944 = scalar_lea.vmem [#allocation2], 32
    %v945 = vld [vmem:[%s944] ss:$2 sm:$0xff]
    %s946 = scalar_lea.vmem [#allocation2], 48
    %v947 = vld [vmem:[%s946] ss:$2 sm:$0xff]
    %s948 = scalar_lea.vmem [#allocation5], 8
    %v949 = vld [vmem:[%s948] sm:$0x7]
    %v950 = vperm.slane %v949, 0
    %v951 = vmul.f32 %v941, %v950
    %v952 = vmul.f32 %v943, %v950
    %v953 = vmul.f32 %v945, %v950
    %v954 = vmul.f32 %v947, %v950
    %v955 = vperm.slane %v949, 1
    %v956 = vadd.f32 %v951, %v955
    %v957 = vadd.f32 %v952, %v955
    %v958 = vadd.f32 %v953, %v955
    %v959 = vadd.f32 %v954, %v955
    %v960 = vmax.f32 %v956, 0.0
    %v961 = vmax.f32 %v957, 0.0
    %v962 = vmax.f32 %v958, 0.0
    %v963 = vmax.f32 %v959, 0.0
    %v964 = vpack.c.bf16 %v961, %v960
    %v965 = vpack.c.bf16 %v963, %v962
    %s966 = scalar_lea.vmem [#allocation3], 384
    %v967 = vld [vmem:[%s966] sm:$0xff]
    %v968 = vld [vmem:[%s966 + $0x8] sm:$0xf]
    %v969 = vld [vmem:[%s966 + $0xc] sm:$0xff]
    %v970 = vld [vmem:[%s966 + $0x14] sm:$0xf]
    %v971 = vld [vmem:[%s966 + $0x18] sm:$0xff]
    %v972 = vld [vmem:[%s966 + $0x20] sm:$0xf]
    %v973 = vld [vmem:[%s966 + $0x24] sm:$0xff]
    %v974 = vld [vmem:[%s966 + $0x2c] sm:$0xf]
    %v975 = vld [vmem:[%s966 + $0x30] sm:$0xff]
    %v976 = vld [vmem:[%s966 + $0x38] sm:$0xf]
    %v977 = vld [vmem:[%s966 + $0x3c] sm:$0xff]
    %v978 = vld [vmem:[%s966 + $0x44] sm:$0xf]
    %v979 = vld [vmem:[%s966 + $0x48] sm:$0xff]
    %v980 = vld [vmem:[%s966 + $0x50] sm:$0xf]
    %v981 = vld [vmem:[%s966 + $0x54] sm:$0xff]
    %v982 = vld [vmem:[%s966 + $0x5c] sm:$0xf]
    %v983 = vld [vmem:[%s966 + $0x60] sm:$0xff]
    %v984 = vld [vmem:[%s966 + $0x68] sm:$0xf]
    %v985 = vld [vmem:[%s966 + $0x6c] sm:$0xff]
    %v986 = vld [vmem:[%s966 + $0x74] sm:$0xf]
    %v987 = vld [vmem:[%s966 + $0x78] sm:$0xff]
    %v988 = vld [vmem:[%s966 + $0x80] sm:$0xf]
    %v989 = vld [vmem:[%s966 + $0x84] sm:$0xff]
    %v990 = vld [vmem:[%s966 + $0x8c] sm:$0xf]
    %v991 = vld [vmem:[%s966 + $0x90] sm:$0xff]
    %v992 = vld [vmem:[%s966 + $0x98] sm:$0xf]
    %v993 = vld [vmem:[%s966 + $0x9c] sm:$0xff]
    %v994 = vld [vmem:[%s966 + $0xa4] sm:$0xf]
    %v995 = vld [vmem:[%s966 + $0xa8] sm:$0xff]
    %v996 = vld [vmem:[%s966 + $0xb0] sm:$0xf]
    %v997 = vld [vmem:[%s966 + $0xb4] sm:$0xff]
    %v998 = vld [vmem:[%s966 + $0xbc] sm:$0xf]
    %v1031 = vunpack.c.l.b16 %v967
    %v1032 = vunpack.c.h.b16 %v967
    %v1033 = vunpack.c.l.b16 %v968
    %v1034 = vunpack.c.l.b16 %v969
    %v1035 = vunpack.c.h.b16 %v969
    %v1036 = vunpack.c.l.b16 %v970
    %v1037 = vunpack.c.l.b16 %v971
    %v1038 = vunpack.c.h.b16 %v971
    %v1039 = vunpack.c.l.b16 %v972
    %v1040 = vunpack.c.l.b16 %v973
    %v1041 = vunpack.c.h.b16 %v973
    %v1042 = vunpack.c.l.b16 %v974
    %v1043 = vunpack.c.l.b16 %v975
    %v1044 = vunpack.c.h.b16 %v975
    %v1045 = vunpack.c.l.b16 %v976
    %v1046 = vunpack.c.l.b16 %v977
    %v1047 = vunpack.c.h.b16 %v977
    %v1048 = vunpack.c.l.b16 %v978
    %v1049 = vunpack.c.l.b16 %v979
    %v1050 = vunpack.c.h.b16 %v979
    %v1051 = vunpack.c.l.b16 %v980
    %v1052 = vunpack.c.l.b16 %v981
    %v1053 = vunpack.c.h.b16 %v981
    %v1054 = vunpack.c.l.b16 %v982
    %v1055 = vunpack.c.l.b16 %v983
    %v1056 = vunpack.c.h.b16 %v983
    %v1057 = vunpack.c.l.b16 %v984
    %v1058 = vunpack.c.l.b16 %v985
    %v1059 = vunpack.c.h.b16 %v985
    %v1060 = vunpack.c.l.b16 %v986
    %v1061 = vunpack.c.l.b16 %v987
    %v1062 = vunpack.c.h.b16 %v987
    %v1063 = vunpack.c.l.b16 %v988
    %v1064 = vunpack.c.l.b16 %v989
    %v1065 = vunpack.c.h.b16 %v989
    %v1066 = vunpack.c.l.b16 %v990
    %v1067 = vunpack.c.l.b16 %v991
    %v1068 = vunpack.c.h.b16 %v991
    %v1069 = vunpack.c.l.b16 %v992
    %v1070 = vunpack.c.l.b16 %v993
    %v1071 = vunpack.c.h.b16 %v993
    %v1072 = vunpack.c.l.b16 %v994
    %v1073 = vunpack.c.l.b16 %v995
    %v1074 = vunpack.c.h.b16 %v995
    %v1075 = vunpack.c.l.b16 %v996
    %v1076 = vunpack.c.l.b16 %v997
    %v1077 = vunpack.c.h.b16 %v997
    %v1078 = vunpack.c.l.b16 %v998
    %v1079 = vpack.c.b16 %v1034, %v1031
    %v1080 = vpack.c.b16 %v1035, %v1032
    %v1081 = vpack.c.b16 %v1036, %v1033
    %v1082 = vpack.c.b16 %v1040, %v1037
    %v1083 = vpack.c.b16 %v1041, %v1038
    %v1084 = vpack.c.b16 %v1042, %v1039
    %v1085 = vpack.c.b16 %v1046, %v1043
    %v1086 = vpack.c.b16 %v1047, %v1044
    %v1087 = vpack.c.b16 %v1048, %v1045
    %v1088 = vpack.c.b16 %v1052, %v1049
    %v1089 = vpack.c.b16 %v1053, %v1050
    %v1090 = vpack.c.b16 %v1054, %v1051
    %v1091 = vpack.c.b16 %v1058, %v1055
    %v1092 = vpack.c.b16 %v1059, %v1056
    %v1093 = vpack.c.b16 %v1060, %v1057
    %v1094 = vpack.c.b16 %v1064, %v1061
    %v1095 = vpack.c.b16 %v1065, %v1062
    %v1096 = vpack.c.b16 %v1066, %v1063
    %v1097 = vpack.c.b16 %v1070, %v1067
    %v1098 = vpack.c.b16 %v1071, %v1068
    %v1099 = vpack.c.b16 %v1072, %v1069
    %v1100 = vpack.c.b16 %v1076, %v1073
    %v1101 = vpack.c.b16 %v1077, %v1074
    %v1102 = vpack.c.b16 %v1078, %v1075
    %1127 = vmatpush.bf16.msra.mxu0 %v1100
    %1128 = vmatpush.bf16.msra.mxu0 %v1097
    %1129 = vmatpush.bf16.msra.mxu0 %v1094
    %1130 = vmatpush.bf16.msra.mxu0 %v1091
    %1131 = vmatpush.bf16.msra.mxu0 %v1088
    %1132 = vmatpush.bf16.msra.mxu0 %v1085
    %1133 = vmatpush.bf16.msra.mxu0 %v1082
    %1134 = vmatpush.bf16.msra.mxu0 %v1079
    %1135 = vmatmul.bf16.gmra.mxu0 %v964
    %v1136 = vpop.f32.mrf.mxu0
    %v1137 = vadd.f32 0.0, %v1136
    %v1138 = vpop.f32.mrf.mxu0
    %v1139 = vadd.f32 0.0, %v1138
    %1140 = vmatmul.bf16.gmra.mxu0 %v965
    %v1141 = vpop.f32.mrf.mxu0
    %v1142 = vadd.f32 0.0, %v1141
    %v1143 = vpop.f32.mrf.mxu0
    %v1144 = vadd.f32 0.0, %v1143
    %1145 = vdwg.mxu0
    %1146 = vmatpush.bf16.msra.mxu0 %v1101
    %1147 = vmatpush.bf16.msra.mxu0 %v1098
    %1148 = vmatpush.bf16.msra.mxu0 %v1095
    %1149 = vmatpush.bf16.msra.mxu0 %v1092
    %1150 = vmatpush.bf16.msra.mxu0 %v1089
    %1151 = vmatpush.bf16.msra.mxu0 %v1086
    %1152 = vmatpush.bf16.msra.mxu0 %v1083
    %1153 = vmatpush.bf16.msra.mxu0 %v1080
    %1154 = vmatmul.bf16.gmra.mxu0 %v964
    %v1155 = vpop.f32.mrf.mxu0
    %v1156 = vadd.f32 0.0, %v1155
    %v1157 = vpop.f32.mrf.mxu0
    %v1158 = vadd.f32 0.0, %v1157
    %1159 = vmatmul.bf16.gmra.mxu0 %v965
    %v1160 = vpop.f32.mrf.mxu0
    %v1161 = vadd.f32 0.0, %v1160
    %v1162 = vpop.f32.mrf.mxu0
    %v1163 = vadd.f32 0.0, %v1162
    %1164 = vdwg.mxu0
    %1165 = vmatpush.bf16.msra.mxu0 %v1102
    %1166 = vmatpush.bf16.msra.mxu0 %v1099
    %1167 = vmatpush.bf16.msra.mxu0 %v1096
    %1168 = vmatpush.bf16.msra.mxu0 %v1093
    %1169 = vmatpush.bf16.msra.mxu0 %v1090
    %1170 = vmatpush.bf16.msra.mxu0 %v1087
    %1171 = vmatpush.bf16.msra.mxu0 %v1084
    %1172 = vmatpush.bf16.msra.mxu0 %v1081
    %1173 = vmatmul.bf16.gmra.mxu0 %v964
    %v1174 = vpop.f32.mrf.mxu0
    %v1175 = vadd.f32 0.0, %v1174
    %v1176 = vpop.f32.mrf.mxu0
    %v1177 = vadd.f32 0.0, %v1176
    %1178 = vmatmul.bf16.gmra.mxu0 %v965
    %v1179 = vpop.f32.mrf.mxu0
    %v1180 = vadd.f32 0.0, %v1179
    %v1181 = vpop.f32.mrf.mxu0
    %v1182 = vadd.f32 0.0, %v1181
    %1183 = vdwg.mxu0
    %vm1184 = vcmp.lt.s32.totalorder %v329, 0
    %v1185 = vsub.s32 0, %v329
    %v1186 = vsel %vm1184, %v1185, %v329
    %v1187 = vshrl.u32 %v1186, 4
    %v1188 = vand.u32 %v1186, 15
    %v1189 = vsub.s32 0, %v1188
    %v1190 = vsel %vm1184, %v1189, %v1188
    %vm1191 = vcmp.lt.s32.totalorder %v330, 0
    %v1192 = vsub.s32 0, %v330
    %v1193 = vsel %vm1191, %v1192, %v330
    %v1194 = vshrl.u32 %v1193, 4
    %v1195 = vand.u32 %v1193, 15
    %v1196 = vsub.s32 0, %v1195
    %v1197 = vsel %vm1191, %v1196, %v1195
    %vm1198 = vcmp.lt.s32.totalorder %v331, 0
    %v1199 = vsub.s32 0, %v331
    %v1200 = vsel %vm1198, %v1199, %v331
    %v1201 = vshrl.u32 %v1200, 4
    %v1202 = vand.u32 %v1200, 15
    %v1203 = vsub.s32 0, %v1202
    %v1204 = vsel %vm1198, %v1203, %v1202
    %vm1205 = vcmp.lt.s32.totalorder %v332, 0
    %v1206 = vsub.s32 0, %v332
    %v1207 = vsel %vm1205, %v1206, %v332
    %v1208 = vshrl.u32 %v1207, 4
    %v1209 = vand.u32 %v1207, 15
    %v1210 = vsub.s32 0, %v1209
    %v1211 = vsel %vm1205, %v1210, %v1209
    %vm1212 = vcmp.ne.s32.totalorder %v1190, 0
    %vm1213 = vcmp.ne.s32.totalorder %v1197, 0
    %vm1214 = vcmp.ne.s32.totalorder %v1204, 0
    %vm1215 = vcmp.ne.s32.totalorder %v1211, 0
    %vm1216 = vcmp.lt.s32.totalorder %v1190, 0
    %vm1217 = vcmp.lt.s32.totalorder %v1197, 0
    %vm1218 = vcmp.lt.s32.totalorder %v1204, 0
    %vm1219 = vcmp.lt.s32.totalorder %v1211, 0
    %vm1220 = vmand %vm1216, %vm1212
    %vm1221 = vmand %vm1217, %vm1213
    %vm1222 = vmand %vm1218, %vm1214
    %vm1223 = vmand %vm1219, %vm1215
    %v1224 = vadd.s32 %v1190, 16
    %v1225 = vadd.s32 %v1197, 16
    %v1226 = vadd.s32 %v1204, 16
    %v1227 = vadd.s32 %v1211, 16
    %v1228 = vsel %vm1220, %v1224, %v1190
    %v1229 = vsel %vm1221, %v1225, %v1197
    %v1230 = vsel %vm1222, %v1226, %v1204
    %v1231 = vsel %vm1223, %v1227, %v1211
    %v1232 = vrot.slane %v1137, 7
    %v1233 = vrot.slane %v1139, 7
    %v1234 = vrot.slane %v1142, 7
    %v1235 = vrot.slane %v1144, 7
    %v1236 = vsel %vm441, %v1234, %v1235
    %v1237 = vsel %vm441, %v1233, %v1234
    %v1238 = vsel %vm441, %v1232, %v1233
    %v1239 = vsel %vm441, %v1235, %v1232
    %vm1240 = vcmp.ge.s32.totalorder %v1228, 1
    %vm1241 = vcmp.ge.s32.totalorder %v1229, 1
    %vm1242 = vcmp.ge.s32.totalorder %v1230, 1
    %vm1243 = vcmp.ge.s32.totalorder %v1231, 1
    %v1244 = vsel %vm1240, 1, 0
    %v1245 = vsel %vm1241, 1, 0
    %v1246 = vsel %vm1242, 1, 0
    %v1247 = vsel %vm1243, 1, 0
    %vm1248 = vcmp.eq.s32.totalorder %v1244, 1
    %vm1249 = vcmp.eq.s32.totalorder %v1245, 1
    %vm1250 = vcmp.eq.s32.totalorder %v1246, 1
    %vm1251 = vcmp.eq.s32.totalorder %v1247, 1
    %v1252 = vsel %vm1248, %v1239, 0.0
    %v1253 = vsel %vm1249, %v1238, 0.0
    %v1254 = vsel %vm1250, %v1237, 0.0
    %v1255 = vsel %vm1251, %v1236, 0.0
    %v1256 = vadd.f32 %v1156, %v1252
    %v1257 = vadd.f32 %v1158, %v1253
    %v1258 = vadd.f32 %v1161, %v1254
    %v1259 = vadd.f32 %v1163, %v1255
    %v1260 = vrot.slane %v1175, 1
    %v1261 = vrot.slane %v1177, 1
    %v1262 = vrot.slane %v1180, 1
    %v1263 = vrot.slane %v1182, 1
    %v1264 = vsel %vm498, %v1262, %v1263
    %v1265 = vsel %vm498, %v1261, %v1262
    %v1266 = vsel %vm498, %v1260, %v1261
    %v1267 = vsel %vm498, %v1263, %v1260
    %vm1268 = vcmp.le.s32.totalorder %v1228, 14
    %vm1269 = vcmp.le.s32.totalorder %v1229, 14
    %vm1270 = vcmp.le.s32.totalorder %v1230, 14
    %vm1271 = vcmp.le.s32.totalorder %v1231, 14
    %v1272 = vsel %vm1268, 1, 0
    %v1273 = vsel %vm1269, 1, 0
    %v1274 = vsel %vm1270, 1, 0
    %v1275 = vsel %vm1271, 1, 0
    %vm1276 = vcmp.eq.s32.totalorder %v1272, 1
    %vm1277 = vcmp.eq.s32.totalorder %v1273, 1
    %vm1278 = vcmp.eq.s32.totalorder %v1274, 1
    %vm1279 = vcmp.eq.s32.totalorder %v1275, 1
    %v1280 = vsel %vm1276, %v1266, 0.0
    %v1281 = vsel %vm1277, %v1265, 0.0
    %v1282 = vsel %vm1278, %v1264, 0.0
    %v1283 = vsel %vm1279, %v1267, 0.0
    %v1284 = vadd.f32 %v1256, %v1280
    %v1285 = vadd.f32 %v1257, %v1281
    %v1286 = vadd.f32 %v1258, %v1282
    %v1287 = vadd.f32 %v1259, %v1283
    %v1288 = vperm.slane %v949, 2
    %v1289 = vadd.f32 %v1284, %v1288
    %v1290 = vadd.f32 %v1285, %v1288
    %v1291 = vadd.f32 %v1286, %v1288
    %v1292 = vadd.f32 %v1287, %v1288
    %1293 = vst [vmem:[#allocation2] sm:$0xff] %v1289
    %1294 = vst [vmem:[#allocation2 + $0x8] sm:$0xff] %v1290
    %1295 = vst [vmem:[#allocation2 + $0x10] sm:$0xff] %v1291
    %1296 = vst [vmem:[#allocation2 + $0x18] sm:$0xff] %v1292
    %v1297 = vld [vmem:[#allocation2] ss:$2 sm:$0xff]
    %v1298 = vld [vmem:[%s942] ss:$2 sm:$0xff]
    %s1299 = scalar_lea.vmem [#allocation5], 12
    %v1300 = vld [vmem:[%s1299] sm:$0x7]
    %v1301 = vperm.slane %v1300, 0
    %v1302 = vmul.f32 %v1297, %v1301
    %v1303 = vmul.f32 %v1298, %v1301
    %v1304 = vperm.slane %v1300, 1
    %v1305 = vadd.f32 %v1302, %v1304
    %v1306 = vadd.f32 %v1303, %v1304
    %v1307 = vmax.f32 %v1305, 0.0
    %v1308 = vmax.f32 %v1306, 0.0
    %v1309 = vpack.c.bf16 %v1308, %v1307
    %s1310 = scalar_lea.vmem [#allocation3], 576
    %v1311 = vld [vmem:[%s1310] sm:$0xff]
    %v1312 = vld [vmem:[%s1310 + $0x8] sm:$0xf]
    %v1313 = vld [vmem:[%s1310 + $0xc] sm:$0xff]
    %v1314 = vld [vmem:[%s1310 + $0x14] sm:$0xf]
    %v1315 = vld [vmem:[%s1310 + $0x18] sm:$0xff]
    %v1316 = vld [vmem:[%s1310 + $0x20] sm:$0xf]
    %v1317 = vld [vmem:[%s1310 + $0x24] sm:$0xff]
    %v1318 = vld [vmem:[%s1310 + $0x2c] sm:$0xf]
    %v1319 = vld [vmem:[%s1310 + $0x30] sm:$0xff]
    %v1320 = vld [vmem:[%s1310 + $0x38] sm:$0xf]
    %v1321 = vld [vmem:[%s1310 + $0x3c] sm:$0xff]
    %v1322 = vld [vmem:[%s1310 + $0x44] sm:$0xf]
    %v1323 = vld [vmem:[%s1310 + $0x48] sm:$0xff]
    %v1324 = vld [vmem:[%s1310 + $0x50] sm:$0xf]
    %v1325 = vld [vmem:[%s1310 + $0x54] sm:$0xff]
    %v1326 = vld [vmem:[%s1310 + $0x5c] sm:$0xf]
    %v1327 = vld [vmem:[%s1310 + $0x60] sm:$0xff]
    %v1328 = vld [vmem:[%s1310 + $0x68] sm:$0xf]
    %v1329 = vld [vmem:[%s1310 + $0x6c] sm:$0xff]
    %v1330 = vld [vmem:[%s1310 + $0x74] sm:$0xf]
    %v1331 = vld [vmem:[%s1310 + $0x78] sm:$0xff]
    %v1332 = vld [vmem:[%s1310 + $0x80] sm:$0xf]
    %v1333 = vld [vmem:[%s1310 + $0x84] sm:$0xff]
    %v1334 = vld [vmem:[%s1310 + $0x8c] sm:$0xf]
    %v1335 = vld [vmem:[%s1310 + $0x90] sm:$0xff]
    %v1336 = vld [vmem:[%s1310 + $0x98] sm:$0xf]
    %v1337 = vld [vmem:[%s1310 + $0x9c] sm:$0xff]
    %v1338 = vld [vmem:[%s1310 + $0xa4] sm:$0xf]
    %v1339 = vld [vmem:[%s1310 + $0xa8] sm:$0xff]
    %v1340 = vld [vmem:[%s1310 + $0xb0] sm:$0xf]
    %v1341 = vld [vmem:[%s1310 + $0xb4] sm:$0xff]
    %v1342 = vld [vmem:[%s1310 + $0xbc] sm:$0xf]
    %v1375 = vunpack.c.l.b16 %v1311
    %v1376 = vunpack.c.h.b16 %v1311
    %v1377 = vunpack.c.l.b16 %v1312
    %v1378 = vunpack.c.l.b16 %v1313
    %v1379 = vunpack.c.h.b16 %v1313
    %v1380 = vunpack.c.l.b16 %v1314
    %v1381 = vunpack.c.l.b16 %v1315
    %v1382 = vunpack.c.h.b16 %v1315
    %v1383 = vunpack.c.l.b16 %v1316
    %v1384 = vunpack.c.l.b16 %v1317
    %v1385 = vunpack.c.h.b16 %v1317
    %v1386 = vunpack.c.l.b16 %v1318
    %v1387 = vunpack.c.l.b16 %v1319
    %v1388 = vunpack.c.h.b16 %v1319
    %v1389 = vunpack.c.l.b16 %v1320
    %v1390 = vunpack.c.l.b16 %v1321
    %v1391 = vunpack.c.h.b16 %v1321
    %v1392 = vunpack.c.l.b16 %v1322
    %v1393 = vunpack.c.l.b16 %v1323
    %v1394 = vunpack.c.h.b16 %v1323
    %v1395 = vunpack.c.l.b16 %v1324
    %v1396 = vunpack.c.l.b16 %v1325
    %v1397 = vunpack.c.h.b16 %v1325
    %v1398 = vunpack.c.l.b16 %v1326
    %v1399 = vunpack.c.l.b16 %v1327
    %v1400 = vunpack.c.h.b16 %v1327
    %v1401 = vunpack.c.l.b16 %v1328
    %v1402 = vunpack.c.l.b16 %v1329
    %v1403 = vunpack.c.h.b16 %v1329
    %v1404 = vunpack.c.l.b16 %v1330
    %v1405 = vunpack.c.l.b16 %v1331
    %v1406 = vunpack.c.h.b16 %v1331
    %v1407 = vunpack.c.l.b16 %v1332
    %v1408 = vunpack.c.l.b16 %v1333
    %v1409 = vunpack.c.h.b16 %v1333
    %v1410 = vunpack.c.l.b16 %v1334
    %v1411 = vunpack.c.l.b16 %v1335
    %v1412 = vunpack.c.h.b16 %v1335
    %v1413 = vunpack.c.l.b16 %v1336
    %v1414 = vunpack.c.l.b16 %v1337
    %v1415 = vunpack.c.h.b16 %v1337
    %v1416 = vunpack.c.l.b16 %v1338
    %v1417 = vunpack.c.l.b16 %v1339
    %v1418 = vunpack.c.h.b16 %v1339
    %v1419 = vunpack.c.l.b16 %v1340
    %v1420 = vunpack.c.l.b16 %v1341
    %v1421 = vunpack.c.h.b16 %v1341
    %v1422 = vunpack.c.l.b16 %v1342
    %v1423 = vpack.c.b16 %v1378, %v1375
    %v1424 = vpack.c.b16 %v1379, %v1376
    %v1425 = vpack.c.b16 %v1380, %v1377
    %v1426 = vpack.c.b16 %v1384, %v1381
    %v1427 = vpack.c.b16 %v1385, %v1382
    %v1428 = vpack.c.b16 %v1386, %v1383
    %v1429 = vpack.c.b16 %v1390, %v1387
    %v1430 = vpack.c.b16 %v1391, %v1388
    %v1431 = vpack.c.b16 %v1392, %v1389
    %v1432 = vpack.c.b16 %v1396, %v1393
    %v1433 = vpack.c.b16 %v1397, %v1394
    %v1434 = vpack.c.b16 %v1398, %v1395
    %v1435 = vpack.c.b16 %v1402, %v1399
    %v1436 = vpack.c.b16 %v1403, %v1400
    %v1437 = vpack.c.b16 %v1404, %v1401
    %v1438 = vpack.c.b16 %v1408, %v1405
    %v1439 = vpack.c.b16 %v1409, %v1406
    %v1440 = vpack.c.b16 %v1410, %v1407
    %v1441 = vpack.c.b16 %v1414, %v1411
    %v1442 = vpack.c.b16 %v1415, %v1412
    %v1443 = vpack.c.b16 %v1416, %v1413
    %v1444 = vpack.c.b16 %v1420, %v1417
    %v1445 = vpack.c.b16 %v1421, %v1418
    %v1446 = vpack.c.b16 %v1422, %v1419
    %1471 = vmatpush.bf16.msra.mxu0 %v1444
    %1472 = vmatpush.bf16.msra.mxu0 %v1441
    %1473 = vmatpush.bf16.msra.mxu0 %v1438
    %1474 = vmatpush.bf16.msra.mxu0 %v1435
    %1475 = vmatpush.bf16.msra.mxu0 %v1432
    %1476 = vmatpush.bf16.msra.mxu0 %v1429
    %1477 = vmatpush.bf16.msra.mxu0 %v1426
    %1478 = vmatpush.bf16.msra.mxu0 %v1423
    %1479 = vmatmul.bf16.gmra.mxu0 %v1309
    %v1480 = vpop.f32.mrf.mxu0
    %v1481 = vadd.f32 0.0, %v1480
    %v1482 = vpop.f32.mrf.mxu0
    %v1483 = vadd.f32 0.0, %v1482
    %1484 = vdwg.mxu0
    %1485 = vmatpush.bf16.msra.mxu0 %v1445
    %1486 = vmatpush.bf16.msra.mxu0 %v1442
    %1487 = vmatpush.bf16.msra.mxu0 %v1439
    %1488 = vmatpush.bf16.msra.mxu0 %v1436
    %1489 = vmatpush.bf16.msra.mxu0 %v1433
    %1490 = vmatpush.bf16.msra.mxu0 %v1430
    %1491 = vmatpush.bf16.msra.mxu0 %v1427
    %1492 = vmatpush.bf16.msra.mxu0 %v1424
    %1493 = vmatmul.bf16.gmra.mxu0 %v1309
    %v1494 = vpop.f32.mrf.mxu0
    %v1495 = vadd.f32 0.0, %v1494
    %v1496 = vpop.f32.mrf.mxu0
    %v1497 = vadd.f32 0.0, %v1496
    %1498 = vdwg.mxu0
    %1499 = vmatpush.bf16.msra.mxu0 %v1446
    %1500 = vmatpush.bf16.msra.mxu0 %v1443
    %1501 = vmatpush.bf16.msra.mxu0 %v1440
    %1502 = vmatpush.bf16.msra.mxu0 %v1437
    %1503 = vmatpush.bf16.msra.mxu0 %v1434
    %1504 = vmatpush.bf16.msra.mxu0 %v1431
    %1505 = vmatpush.bf16.msra.mxu0 %v1428
    %1506 = vmatpush.bf16.msra.mxu0 %v1425
    %1507 = vmatmul.bf16.gmra.mxu0 %v1309
    %v1508 = vpop.f32.mrf.mxu0
    %v1509 = vadd.f32 0.0, %v1508
    %v1510 = vpop.f32.mrf.mxu0
    %v1511 = vadd.f32 0.0, %v1510
    %1512 = vdwg.mxu0
    %vm1513 = vcmp.lt.s32.totalorder %v329, 0
    %v1514 = vsub.s32 0, %v329
    %v1515 = vsel %vm1513, %v1514, %v329
    %v1516 = vshrl.u32 %v1515, 3
    %v1517 = vand.u32 %v1515, 7
    %v1518 = vsub.s32 0, %v1517
    %v1519 = vsel %vm1513, %v1518, %v1517
    %vm1520 = vcmp.lt.s32.totalorder %v330, 0
    %v1521 = vsub.s32 0, %v330
    %v1522 = vsel %vm1520, %v1521, %v330
    %v1523 = vshrl.u32 %v1522, 3
    %v1524 = vand.u32 %v1522, 7
    %v1525 = vsub.s32 0, %v1524
    %v1526 = vsel %vm1520, %v1525, %v1524
    %vm1527 = vcmp.ne.s32.totalorder %v1519, 0
    %vm1528 = vcmp.ne.s32.totalorder %v1526, 0
    %vm1529 = vcmp.lt.s32.totalorder %v1519, 0
    %vm1530 = vcmp.lt.s32.totalorder %v1526, 0
    %vm1531 = vmand %vm1529, %vm1527
    %vm1532 = vmand %vm1530, %vm1528
    %v1533 = vadd.s32 %v1519, 8
    %v1534 = vadd.s32 %v1526, 8
    %v1535 = vsel %vm1531, %v1533, %v1519
    %v1536 = vsel %vm1532, %v1534, %v1526
    %v1537 = vrot.slane %v1481, 7
    %v1538 = vrot.slane %v1483, 7
    %v1539 = vsel %vm441, %v1537, %v1538
    %v1540 = vsel %vm441, %v1538, %v1537
    %vm1541 = vcmp.ge.s32.totalorder %v1535, 1
    %vm1542 = vcmp.ge.s32.totalorder %v1536, 1
    %v1543 = vsel %vm1541, 1, 0
    %v1544 = vsel %vm1542, 1, 0
    %vm1545 = vcmp.eq.s32.totalorder %v1543, 1
    %vm1546 = vcmp.eq.s32.totalorder %v1544, 1
    %v1547 = vsel %vm1545, %v1540, 0.0
    %v1548 = vsel %vm1546, %v1539, 0.0
    %v1549 = vadd.f32 %v1495, %v1547
    %v1550 = vadd.f32 %v1497, %v1548
    %v1551 = vrot.slane %v1509, 1
    %v1552 = vrot.slane %v1511, 1
    %v1553 = vsel %vm498, %v1551, %v1552
    %v1554 = vsel %vm498, %v1552, %v1551
    %vm1555 = vcmp.le.s32.totalorder %v1535, 6
    %vm1556 = vcmp.le.s32.totalorder %v1536, 6
    %v1557 = vsel %vm1555, 1, 0
    %v1558 = vsel %vm1556, 1, 0
    %vm1559 = vcmp.eq.s32.totalorder %v1557, 1
    %vm1560 = vcmp.eq.s32.totalorder %v1558, 1
    %v1561 = vsel %vm1559, %v1553, 0.0
    %v1562 = vsel %vm1560, %v1554, 0.0
    %v1563 = vadd.f32 %v1549, %v1561
    %v1564 = vadd.f32 %v1550, %v1562
    %v1565 = vperm.slane %v1300, 2
    %v1566 = vadd.f32 %v1563, %v1565
    %v1567 = vadd.f32 %v1564, %v1565
    %1568 = vst [vmem:[#allocation2] sm:$0xff] %v1566
    %1569 = vst [vmem:[#allocation2 + $0x8] sm:$0xff] %v1567
    %v1570 = vld [vmem:[#allocation2] ss:$2 sm:$0xf]
    %s1571 = scalar_lea.vmem [#allocation2], 8
    %v1572 = vld [vmem:[%s1571] ss:$2 sm:$0xf]
    %v1574 = vrot.slane %v1572, 4
    %vm1576 = vcmask 1043456
    %v1577 = vsel %vm1576, %v1570, %v1574
    %s1578 = scalar_lea.vmem [#allocation5], 16
    %v1579 = vld [vmem:[%s1578] sm:$0x7]
    %v1580 = vperm.slane %v1579, 0
    %v1581 = vmul.f32 %v1297, %v1580
    %v1582 = vmul.f32 %v1298, %v1580
    %v1583 = vperm.slane %v1579, 1
    %v1584 = vadd.f32 %v1581, %v1583
    %v1585 = vadd.f32 %v1582, %v1583
    %v1586 = vmax.f32 %v1584, 0.0
    %v1587 = vmax.f32 %v1585, 0.0
    %v1588 = vpack.c.bf16 %v1587, %v1586
    %s1589 = scalar_lea.vmem [#allocation3], 768
    %v1590 = vld [vmem:[%s1589] sm:$0xff]
    %v1591 = vld [vmem:[%s1589 + $0x8] sm:$0xf]
    %v1592 = vld [vmem:[%s1589 + $0xc] sm:$0xff]
    %v1593 = vld [vmem:[%s1589 + $0x14] sm:$0xf]
    %v1594 = vld [vmem:[%s1589 + $0x18] sm:$0xff]
    %v1595 = vld [vmem:[%s1589 + $0x20] sm:$0xf]
    %v1596 = vld [vmem:[%s1589 + $0x24] sm:$0xff]
    %v1597 = vld [vmem:[%s1589 + $0x2c] sm:$0xf]
    %v1598 = vld [vmem:[%s1589 + $0x30] sm:$0xff]
    %v1599 = vld [vmem:[%s1589 + $0x38] sm:$0xf]
    %v1600 = vld [vmem:[%s1589 + $0x3c] sm:$0xff]
    %v1601 = vld [vmem:[%s1589 + $0x44] sm:$0xf]
    %v1602 = vld [vmem:[%s1589 + $0x48] sm:$0xff]
    %v1603 = vld [vmem:[%s1589 + $0x50] sm:$0xf]
    %v1604 = vld [vmem:[%s1589 + $0x54] sm:$0xff]
    %v1605 = vld [vmem:[%s1589 + $0x5c] sm:$0xf]
    %v1606 = vld [vmem:[%s1589 + $0x60] sm:$0xff]
    %v1607 = vld [vmem:[%s1589 + $0x68] sm:$0xf]
    %v1608 = vld [vmem:[%s1589 + $0x6c] sm:$0xff]
    %v1609 = vld [vmem:[%s1589 + $0x74] sm:$0xf]
    %v1610 = vld [vmem:[%s1589 + $0x78] sm:$0xff]
    %v1611 = vld [vmem:[%s1589 + $0x80] sm:$0xf]
    %v1612 = vld [vmem:[%s1589 + $0x84] sm:$0xff]
    %v1613 = vld [vmem:[%s1589 + $0x8c] sm:$0xf]
    %v1614 = vld [vmem:[%s1589 + $0x90] sm:$0xff]
    %v1615 = vld [vmem:[%s1589 + $0x98] sm:$0xf]
    %v1616 = vld [vmem:[%s1589 + $0x9c] sm:$0xff]
    %v1617 = vld [vmem:[%s1589 + $0xa4] sm:$0xf]
    %v1618 = vld [vmem:[%s1589 + $0xa8] sm:$0xff]
    %v1619 = vld [vmem:[%s1589 + $0xb0] sm:$0xf]
    %v1620 = vld [vmem:[%s1589 + $0xb4] sm:$0xff]
    %v1621 = vld [vmem:[%s1589 + $0xbc] sm:$0xf]
    %v1654 = vunpack.c.l.b16 %v1590
    %v1655 = vunpack.c.h.b16 %v1590
    %v1656 = vunpack.c.l.b16 %v1591
    %v1657 = vunpack.c.l.b16 %v1592
    %v1658 = vunpack.c.h.b16 %v1592
    %v1659 = vunpack.c.l.b16 %v1593
    %v1660 = vunpack.c.l.b16 %v1594
    %v1661 = vunpack.c.h.b16 %v1594
    %v1662 = vunpack.c.l.b16 %v1595
    %v1663 = vunpack.c.l.b16 %v1596
    %v1664 = vunpack.c.h.b16 %v1596
    %v1665 = vunpack.c.l.b16 %v1597
    %v1666 = vunpack.c.l.b16 %v1598
    %v1667 = vunpack.c.h.b16 %v1598
    %v1668 = vunpack.c.l.b16 %v1599
    %v1669 = vunpack.c.l.b16 %v1600
    %v1670 = vunpack.c.h.b16 %v1600
    %v1671 = vunpack.c.l.b16 %v1601
    %v1672 = vunpack.c.l.b16 %v1602
    %v1673 = vunpack.c.h.b16 %v1602
    %v1674 = vunpack.c.l.b16 %v1603
    %v1675 = vunpack.c.l.b16 %v1604
    %v1676 = vunpack.c.h.b16 %v1604
    %v1677 = vunpack.c.l.b16 %v1605
    %v1678 = vunpack.c.l.b16 %v1606
    %v1679 = vunpack.c.h.b16 %v1606
    %v1680 = vunpack.c.l.b16 %v1607
    %v1681 = vunpack.c.l.b16 %v1608
    %v1682 = vunpack.c.h.b16 %v1608
    %v1683 = vunpack.c.l.b16 %v1609
    %v1684 = vunpack.c.l.b16 %v1610
    %v1685 = vunpack.c.h.b16 %v1610
    %v1686 = vunpack.c.l.b16 %v1611
    %v1687 = vunpack.c.l.b16 %v1612
    %v1688 = vunpack.c.h.b16 %v1612
    %v1689 = vunpack.c.l.b16 %v1613
    %v1690 = vunpack.c.l.b16 %v1614
    %v1691 = vunpack.c.h.b16 %v1614
    %v1692 = vunpack.c.l.b16 %v1615
    %v1693 = vunpack.c.l.b16 %v1616
    %v1694 = vunpack.c.h.b16 %v1616
    %v1695 = vunpack.c.l.b16 %v1617
    %v1696 = vunpack.c.l.b16 %v1618
    %v1697 = vunpack.c.h.b16 %v1618
    %v1698 = vunpack.c.l.b16 %v1619
    %v1699 = vunpack.c.l.b16 %v1620
    %v1700 = vunpack.c.h.b16 %v1620
    %v1701 = vunpack.c.l.b16 %v1621
    %v1702 = vpack.c.b16 %v1657, %v1654
    %v1703 = vpack.c.b16 %v1658, %v1655
    %v1704 = vpack.c.b16 %v1659, %v1656
    %v1705 = vpack.c.b16 %v1663, %v1660
    %v1706 = vpack.c.b16 %v1664, %v1661
    %v1707 = vpack.c.b16 %v1665, %v1662
    %v1708 = vpack.c.b16 %v1669, %v1666
    %v1709 = vpack.c.b16 %v1670, %v1667
    %v1710 = vpack.c.b16 %v1671, %v1668
    %v1711 = vpack.c.b16 %v1675, %v1672
    %v1712 = vpack.c.b16 %v1676, %v1673
    %v1713 = vpack.c.b16 %v1677, %v1674
    %v1714 = vpack.c.b16 %v1681, %v1678
    %v1715 = vpack.c.b16 %v1682, %v1679
    %v1716 = vpack.c.b16 %v1683, %v1680
    %v1717 = vpack.c.b16 %v1687, %v1684
    %v1718 = vpack.c.b16 %v1688, %v1685
    %v1719 = vpack.c.b16 %v1689, %v1686
    %v1720 = vpack.c.b16 %v1693, %v1690
    %v1721 = vpack.c.b16 %v1694, %v1691
    %v1722 = vpack.c.b16 %v1695, %v1692
    %v1723 = vpack.c.b16 %v1699, %v1696
    %v1724 = vpack.c.b16 %v1700, %v1697
    %v1725 = vpack.c.b16 %v1701, %v1698
    %1750 = vmatpush.bf16.msra.mxu0 %v1723
    %1751 = vmatpush.bf16.msra.mxu0 %v1720
    %1752 = vmatpush.bf16.msra.mxu0 %v1717
    %1753 = vmatpush.bf16.msra.mxu0 %v1714
    %1754 = vmatpush.bf16.msra.mxu0 %v1711
    %1755 = vmatpush.bf16.msra.mxu0 %v1708
    %1756 = vmatpush.bf16.msra.mxu0 %v1705
    %1757 = vmatpush.bf16.msra.mxu0 %v1702
    %1758 = vmatmul.bf16.gmra.mxu0 %v1588
    %v1759 = vpop.f32.mrf.mxu0
    %v1760 = vadd.f32 0.0, %v1759
    %v1761 = vpop.f32.mrf.mxu0
    %v1762 = vadd.f32 0.0, %v1761
    %1763 = vdwg.mxu0
    %1764 = vmatpush.bf16.msra.mxu0 %v1724
    %1765 = vmatpush.bf16.msra.mxu0 %v1721
    %1766 = vmatpush.bf16.msra.mxu0 %v1718
    %1767 = vmatpush.bf16.msra.mxu0 %v1715
    %1768 = vmatpush.bf16.msra.mxu0 %v1712
    %1769 = vmatpush.bf16.msra.mxu0 %v1709
    %1770 = vmatpush.bf16.msra.mxu0 %v1706
    %1771 = vmatpush.bf16.msra.mxu0 %v1703
    %1772 = vmatmul.bf16.gmra.mxu0 %v1588
    %v1773 = vpop.f32.mrf.mxu0
    %v1774 = vadd.f32 0.0, %v1773
    %v1775 = vpop.f32.mrf.mxu0
    %v1776 = vadd.f32 0.0, %v1775
    %1777 = vdwg.mxu0
    %1778 = vmatpush.bf16.msra.mxu0 %v1725
    %1779 = vmatpush.bf16.msra.mxu0 %v1722
    %1780 = vmatpush.bf16.msra.mxu0 %v1719
    %1781 = vmatpush.bf16.msra.mxu0 %v1716
    %1782 = vmatpush.bf16.msra.mxu0 %v1713
    %1783 = vmatpush.bf16.msra.mxu0 %v1710
    %1784 = vmatpush.bf16.msra.mxu0 %v1707
    %1785 = vmatpush.bf16.msra.mxu0 %v1704
    %1786 = vmatmul.bf16.gmra.mxu0 %v1588
    %v1787 = vpop.f32.mrf.mxu0
    %v1788 = vadd.f32 0.0, %v1787
    %v1789 = vpop.f32.mrf.mxu0
    %v1790 = vadd.f32 0.0, %v1789
    %1791 = vdwg.mxu0
    %v1792 = vrot.slane %v1760, 7
    %v1793 = vrot.slane %v1762, 7
    %v1794 = vsel %vm441, %v1792, %v1793
    %v1795 = vsel %vm441, %v1793, %v1792
    %v1796 = vsel %vm1545, %v1795, 0.0
    %v1797 = vsel %vm1546, %v1794, 0.0
    %v1798 = vadd.f32 %v1774, %v1796
    %v1799 = vadd.f32 %v1776, %v1797
    %v1800 = vrot.slane %v1788, 1
    %v1801 = vrot.slane %v1790, 1
    %v1802 = vsel %vm498, %v1800, %v1801
    %v1803 = vsel %vm498, %v1801, %v1800
    %v1804 = vsel %vm1559, %v1802, 0.0
    %v1805 = vsel %vm1560, %v1803, 0.0
    %v1806 = vadd.f32 %v1798, %v1804
    %v1807 = vadd.f32 %v1799, %v1805
    %v1808 = vperm.slane %v1579, 2
    %v1809 = vadd.f32 %v1806, %v1808
    %v1810 = vadd.f32 %v1807, %v1808
    %s1811 = scalar_lea.vmem [#allocation5], 20
    %v1812 = vld [vmem:[%s1811] sm:$0x7]
    %v1813 = vperm.slane %v1812, 0
    %v1814 = vmul.f32 %v1809, %v1813
    %v1815 = vmul.f32 %v1810, %v1813
    %v1816 = vperm.slane %v1812, 1
    %v1817 = vadd.f32 %v1814, %v1816
    %v1818 = vadd.f32 %v1815, %v1816
    %v1819 = vmax.f32 %v1817, 0.0
    %v1820 = vmax.f32 %v1818, 0.0
    %v1821 = vpack.c.bf16 %v1820, %v1819
    %s1822 = scalar_lea.vmem [#allocation3], 960
    %v1823 = vld [vmem:[%s1822] sm:$0xff]
    %v1824 = vld [vmem:[%s1822 + $0x8] sm:$0xf]
    %v1825 = vld [vmem:[%s1822 + $0xc] sm:$0xff]
    %v1826 = vld [vmem:[%s1822 + $0x14] sm:$0xf]
    %v1827 = vld [vmem:[%s1822 + $0x18] sm:$0xff]
    %v1828 = vld [vmem:[%s1822 + $0x20] sm:$0xf]
    %v1829 = vld [vmem:[%s1822 + $0x24] sm:$0xff]
    %v1830 = vld [vmem:[%s1822 + $0x2c] sm:$0xf]
    %v1831 = vld [vmem:[%s1822 + $0x30] sm:$0xff]
    %v1832 = vld [vmem:[%s1822 + $0x38] sm:$0xf]
    %v1833 = vld [vmem:[%s1822 + $0x3c] sm:$0xff]
    %v1834 = vld [vmem:[%s1822 + $0x44] sm:$0xf]
    %v1835 = vld [vmem:[%s1822 + $0x48] sm:$0xff]
    %v1836 = vld [vmem:[%s1822 + $0x50] sm:$0xf]
    %v1837 = vld [vmem:[%s1822 + $0x54] sm:$0xff]
    %v1838 = vld [vmem:[%s1822 + $0x5c] sm:$0xf]
    %v1839 = vld [vmem:[%s1822 + $0x60] sm:$0xff]
    %v1840 = vld [vmem:[%s1822 + $0x68] sm:$0xf]
    %v1841 = vld [vmem:[%s1822 + $0x6c] sm:$0xff]
    %v1842 = vld [vmem:[%s1822 + $0x74] sm:$0xf]
    %v1843 = vld [vmem:[%s1822 + $0x78] sm:$0xff]
    %v1844 = vld [vmem:[%s1822 + $0x80] sm:$0xf]
    %v1845 = vld [vmem:[%s1822 + $0x84] sm:$0xff]
    %v1846 = vld [vmem:[%s1822 + $0x8c] sm:$0xf]
    %v1847 = vld [vmem:[%s1822 + $0x90] sm:$0xff]
    %v1848 = vld [vmem:[%s1822 + $0x98] sm:$0xf]
    %v1849 = vld [vmem:[%s1822 + $0x9c] sm:$0xff]
    %v1850 = vld [vmem:[%s1822 + $0xa4] sm:$0xf]
    %v1851 = vld [vmem:[%s1822 + $0xa8] sm:$0xff]
    %v1852 = vld [vmem:[%s1822 + $0xb0] sm:$0xf]
    %v1853 = vld [vmem:[%s1822 + $0xb4] sm:$0xff]
    %v1854 = vld [vmem:[%s1822 + $0xbc] sm:$0xf]
    %v1887 = vunpack.c.l.b16 %v1823
    %v1888 = vunpack.c.h.b16 %v1823
    %v1889 = vunpack.c.l.b16 %v1824
    %v1890 = vunpack.c.l.b16 %v1825
    %v1891 = vunpack.c.h.b16 %v1825
    %v1892 = vunpack.c.l.b16 %v1826
    %v1893 = vunpack.c.l.b16 %v1827
    %v1894 = vunpack.c.h.b16 %v1827
    %v1895 = vunpack.c.l.b16 %v1828
    %v1896 = vunpack.c.l.b16 %v1829
    %v1897 = vunpack.c.h.b16 %v1829
    %v1898 = vunpack.c.l.b16 %v1830
    %v1899 = vunpack.c.l.b16 %v1831
    %v1900 = vunpack.c.h.b16 %v1831
    %v1901 = vunpack.c.l.b16 %v1832
    %v1902 = vunpack.c.l.b16 %v1833
    %v1903 = vunpack.c.h.b16 %v1833
    %v1904 = vunpack.c.l.b16 %v1834
    %v1905 = vunpack.c.l.b16 %v1835
    %v1906 = vunpack.c.h.b16 %v1835
    %v1907 = vunpack.c.l.b16 %v1836
    %v1908 = vunpack.c.l.b16 %v1837
    %v1909 = vunpack.c.h.b16 %v1837
    %v1910 = vunpack.c.l.b16 %v1838
    %v1911 = vunpack.c.l.b16 %v1839
    %v1912 = vunpack.c.h.b16 %v1839
    %v1913 = vunpack.c.l.b16 %v1840
    %v1914 = vunpack.c.l.b16 %v1841
    %v1915 = vunpack.c.h.b16 %v1841
    %v1916 = vunpack.c.l.b16 %v1842
    %v1917 = vunpack.c.l.b16 %v1843
    %v1918 = vunpack.c.h.b16 %v1843
    %v1919 = vunpack.c.l.b16 %v1844
    %v1920 = vunpack.c.l.b16 %v1845
    %v1921 = vunpack.c.h.b16 %v1845
    %v1922 = vunpack.c.l.b16 %v1846
    %v1923 = vunpack.c.l.b16 %v1847
    %v1924 = vunpack.c.h.b16 %v1847
    %v1925 = vunpack.c.l.b16 %v1848
    %v1926 = vunpack.c.l.b16 %v1849
    %v1927 = vunpack.c.h.b16 %v1849
    %v1928 = vunpack.c.l.b16 %v1850
    %v1929 = vunpack.c.l.b16 %v1851
    %v1930 = vunpack.c.h.b16 %v1851
    %v1931 = vunpack.c.l.b16 %v1852
    %v1932 = vunpack.c.l.b16 %v1853
    %v1933 = vunpack.c.h.b16 %v1853
    %v1934 = vunpack.c.l.b16 %v1854
    %v1935 = vpack.c.b16 %v1890, %v1887
    %v1936 = vpack.c.b16 %v1891, %v1888
    %v1937 = vpack.c.b16 %v1892, %v1889
    %v1938 = vpack.c.b16 %v1896, %v1893
    %v1939 = vpack.c.b16 %v1897, %v1894
    %v1940 = vpack.c.b16 %v1898, %v1895
    %v1941 = vpack.c.b16 %v1902, %v1899
    %v1942 = vpack.c.b16 %v1903, %v1900
    %v1943 = vpack.c.b16 %v1904, %v1901
    %v1944 = vpack.c.b16 %v1908, %v1905
    %v1945 = vpack.c.b16 %v1909, %v1906
    %v1946 = vpack.c.b16 %v1910, %v1907
    %v1947 = vpack.c.b16 %v1914, %v1911
    %v1948 = vpack.c.b16 %v1915, %v1912
    %v1949 = vpack.c.b16 %v1916, %v1913
    %v1950 = vpack.c.b16 %v1920, %v1917
    %v1951 = vpack.c.b16 %v1921, %v1918
    %v1952 = vpack.c.b16 %v1922, %v1919
    %v1953 = vpack.c.b16 %v1926, %v1923
    %v1954 = vpack.c.b16 %v1927, %v1924
    %v1955 = vpack.c.b16 %v1928, %v1925
    %v1956 = vpack.c.b16 %v1932, %v1929
    %v1957 = vpack.c.b16 %v1933, %v1930
    %v1958 = vpack.c.b16 %v1934, %v1931
    %1983 = vmatpush.bf16.msra.mxu0 %v1956
    %1984 = vmatpush.bf16.msra.mxu0 %v1953
    %1985 = vmatpush.bf16.msra.mxu0 %v1950
    %1986 = vmatpush.bf16.msra.mxu0 %v1947
    %1987 = vmatpush.bf16.msra.mxu0 %v1944
    %1988 = vmatpush.bf16.msra.mxu0 %v1941
    %1989 = vmatpush.bf16.msra.mxu0 %v1938
    %1990 = vmatpush.bf16.msra.mxu0 %v1935
    %1991 = vmatmul.bf16.gmra.mxu0 %v1821
    %v1992 = vpop.f32.mrf.mxu0
    %v1993 = vadd.f32 0.0, %v1992
    %v1994 = vpop.f32.mrf.mxu0
    %v1995 = vadd.f32 0.0, %v1994
    %1996 = vdwg.mxu0
    %1997 = vmatpush.bf16.msra.mxu0 %v1957
    %1998 = vmatpush.bf16.msra.mxu0 %v1954
    %1999 = vmatpush.bf16.msra.mxu0 %v1951
    %2000 = vmatpush.bf16.msra.mxu0 %v1948
    %2001 = vmatpush.bf16.msra.mxu0 %v1945
    %2002 = vmatpush.bf16.msra.mxu0 %v1942
    %2003 = vmatpush.bf16.msra.mxu0 %v1939
    %2004 = vmatpush.bf16.msra.mxu0 %v1936
    %2005 = vmatmul.bf16.gmra.mxu0 %v1821
    %v2006 = vpop.f32.mrf.mxu0
    %v2007 = vadd.f32 0.0, %v2006
    %v2008 = vpop.f32.mrf.mxu0
    %v2009 = vadd.f32 0.0, %v2008
    %2010 = vdwg.mxu0
    %2011 = vmatpush.bf16.msra.mxu0 %v1958
    %2012 = vmatpush.bf16.msra.mxu0 %v1955
    %2013 = vmatpush.bf16.msra.mxu0 %v1952
    %2014 = vmatpush.bf16.msra.mxu0 %v1949
    %2015 = vmatpush.bf16.msra.mxu0 %v1946
    %2016 = vmatpush.bf16.msra.mxu0 %v1943
    %2017 = vmatpush.bf16.msra.mxu0 %v1940
    %2018 = vmatpush.bf16.msra.mxu0 %v1937
    %2019 = vmatmul.bf16.gmra.mxu0 %v1821
    %v2020 = vpop.f32.mrf.mxu0
    %v2021 = vadd.f32 0.0, %v2020
    %v2022 = vpop.f32.mrf.mxu0
    %v2023 = vadd.f32 0.0, %v2022
    %2024 = vdwg.mxu0
    %v2025 = vrot.slane %v1993, 7
    %v2026 = vrot.slane %v1995, 7
    %v2027 = vsel %vm441, %v2025, %v2026
    %v2028 = vsel %vm441, %v2026, %v2025
    %v2029 = vsel %vm1545, %v2028, 0.0
    %v2030 = vsel %vm1546, %v2027, 0.0
    %v2031 = vadd.f32 %v2007, %v2029
    %v2032 = vadd.f32 %v2009, %v2030
    %v2033 = vrot.slane %v2021, 1
    %v2034 = vrot.slane %v2023, 1
    %v2035 = vsel %vm498, %v2033, %v2034
    %v2036 = vsel %vm498, %v2034, %v2033
    %v2037 = vsel %vm1559, %v2035, 0.0
    %v2038 = vsel %vm1560, %v2036, 0.0
    %v2039 = vadd.f32 %v2031, %v2037
    %v2040 = vadd.f32 %v2032, %v2038
    %v2041 = vperm.slane %v1812, 2
    %v2042 = vadd.f32 %v2039, %v2041
    %v2043 = vadd.f32 %v2040, %v2041
    %s2044 = scalar_lea.vmem [#allocation5], 24
    %v2045 = vld [vmem:[%s2044] sm:$0x7]
    %v2046 = vperm.slane %v2045, 0
    %v2047 = vmul.f32 %v1297, %v2046
    %v2048 = vmul.f32 %v1298, %v2046
    %v2049 = vperm.slane %v2045, 1
    %v2050 = vadd.f32 %v2047, %v2049
    %v2051 = vadd.f32 %v2048, %v2049
    %v2052 = vmax.f32 %v2050, 0.0
    %v2053 = vmax.f32 %v2051, 0.0
    %v2054 = vpack.c.bf16 %v2053, %v2052
    %s2055 = scalar_lea.vmem [#allocation3], 1152
    %v2056 = vld [vmem:[%s2055] sm:$0xff]
    %v2057 = vld [vmem:[%s2055 + $0x8] sm:$0xf]
    %v2058 = vld [vmem:[%s2055 + $0xc] sm:$0xff]
    %v2059 = vld [vmem:[%s2055 + $0x14] sm:$0xf]
    %v2060 = vld [vmem:[%s2055 + $0x18] sm:$0xff]
    %v2061 = vld [vmem:[%s2055 + $0x20] sm:$0xf]
    %v2062 = vld [vmem:[%s2055 + $0x24] sm:$0xff]
    %v2063 = vld [vmem:[%s2055 + $0x2c] sm:$0xf]
    %v2064 = vld [vmem:[%s2055 + $0x30] sm:$0xff]
    %v2065 = vld [vmem:[%s2055 + $0x38] sm:$0xf]
    %v2066 = vld [vmem:[%s2055 + $0x3c] sm:$0xff]
    %v2067 = vld [vmem:[%s2055 + $0x44] sm:$0xf]
    %v2068 = vld [vmem:[%s2055 + $0x48] sm:$0xff]
    %v2069 = vld [vmem:[%s2055 + $0x50] sm:$0xf]
    %v2070 = vld [vmem:[%s2055 + $0x54] sm:$0xff]
    %v2071 = vld [vmem:[%s2055 + $0x5c] sm:$0xf]
    %v2072 = vld [vmem:[%s2055 + $0x60] sm:$0xff]
    %v2073 = vld [vmem:[%s2055 + $0x68] sm:$0xf]
    %v2074 = vld [vmem:[%s2055 + $0x6c] sm:$0xff]
    %v2075 = vld [vmem:[%s2055 + $0x74] sm:$0xf]
    %v2076 = vld [vmem:[%s2055 + $0x78] sm:$0xff]
    %v2077 = vld [vmem:[%s2055 + $0x80] sm:$0xf]
    %v2078 = vld [vmem:[%s2055 + $0x84] sm:$0xff]
    %v2079 = vld [vmem:[%s2055 + $0x8c] sm:$0xf]
    %v2080 = vld [vmem:[%s2055 + $0x90] sm:$0xff]
    %v2081 = vld [vmem:[%s2055 + $0x98] sm:$0xf]
    %v2082 = vld [vmem:[%s2055 + $0x9c] sm:$0xff]
    %v2083 = vld [vmem:[%s2055 + $0xa4] sm:$0xf]
    %v2084 = vld [vmem:[%s2055 + $0xa8] sm:$0xff]
    %v2085 = vld [vmem:[%s2055 + $0xb0] sm:$0xf]
    %v2086 = vld [vmem:[%s2055 + $0xb4] sm:$0xff]
    %v2087 = vld [vmem:[%s2055 + $0xbc] sm:$0xf]
    %v2120 = vunpack.c.l.b16 %v2056
    %v2121 = vunpack.c.h.b16 %v2056
    %v2122 = vunpack.c.l.b16 %v2057
    %v2123 = vunpack.c.l.b16 %v2058
    %v2124 = vunpack.c.h.b16 %v2058
    %v2125 = vunpack.c.l.b16 %v2059
    %v2126 = vunpack.c.l.b16 %v2060
    %v2127 = vunpack.c.h.b16 %v2060
    %v2128 = vunpack.c.l.b16 %v2061
    %v2129 = vunpack.c.l.b16 %v2062
    %v2130 = vunpack.c.h.b16 %v2062
    %v2131 = vunpack.c.l.b16 %v2063
    %v2132 = vunpack.c.l.b16 %v2064
    %v2133 = vunpack.c.h.b16 %v2064
    %v2134 = vunpack.c.l.b16 %v2065
    %v2135 = vunpack.c.l.b16 %v2066
    %v2136 = vunpack.c.h.b16 %v2066
    %v2137 = vunpack.c.l.b16 %v2067
    %v2138 = vunpack.c.l.b16 %v2068
    %v2139 = vunpack.c.h.b16 %v2068
    %v2140 = vunpack.c.l.b16 %v2069
    %v2141 = vunpack.c.l.b16 %v2070
    %v2142 = vunpack.c.h.b16 %v2070
    %v2143 = vunpack.c.l.b16 %v2071
    %v2144 = vunpack.c.l.b16 %v2072
    %v2145 = vunpack.c.h.b16 %v2072
    %v2146 = vunpack.c.l.b16 %v2073
    %v2147 = vunpack.c.l.b16 %v2074
    %v2148 = vunpack.c.h.b16 %v2074
    %v2149 = vunpack.c.l.b16 %v2075
    %v2150 = vunpack.c.l.b16 %v2076
    %v2151 = vunpack.c.h.b16 %v2076
    %v2152 = vunpack.c.l.b16 %v2077
    %v2153 = vunpack.c.l.b16 %v2078
    %v2154 = vunpack.c.h.b16 %v2078
    %v2155 = vunpack.c.l.b16 %v2079
    %v2156 = vunpack.c.l.b16 %v2080
    %v2157 = vunpack.c.h.b16 %v2080
    %v2158 = vunpack.c.l.b16 %v2081
    %v2159 = vunpack.c.l.b16 %v2082
    %v2160 = vunpack.c.h.b16 %v2082
    %v2161 = vunpack.c.l.b16 %v2083
    %v2162 = vunpack.c.l.b16 %v2084
    %v2163 = vunpack.c.h.b16 %v2084
    %v2164 = vunpack.c.l.b16 %v2085
    %v2165 = vunpack.c.l.b16 %v2086
    %v2166 = vunpack.c.h.b16 %v2086
    %v2167 = vunpack.c.l.b16 %v2087
    %v2168 = vpack.c.b16 %v2123, %v2120
    %v2169 = vpack.c.b16 %v2124, %v2121
    %v2170 = vpack.c.b16 %v2125, %v2122
    %v2171 = vpack.c.b16 %v2129, %v2126
    %v2172 = vpack.c.b16 %v2130, %v2127
    %v2173 = vpack.c.b16 %v2131, %v2128
    %v2174 = vpack.c.b16 %v2135, %v2132
    %v2175 = vpack.c.b16 %v2136, %v2133
    %v2176 = vpack.c.b16 %v2137, %v2134
    %v2177 = vpack.c.b16 %v2141, %v2138
    %v2178 = vpack.c.b16 %v2142, %v2139
    %v2179 = vpack.c.b16 %v2143, %v2140
    %v2180 = vpack.c.b16 %v2147, %v2144
    %v2181 = vpack.c.b16 %v2148, %v2145
    %v2182 = vpack.c.b16 %v2149, %v2146
    %v2183 = vpack.c.b16 %v2153, %v2150
    %v2184 = vpack.c.b16 %v2154, %v2151
    %v2185 = vpack.c.b16 %v2155, %v2152
    %v2186 = vpack.c.b16 %v2159, %v2156
    %v2187 = vpack.c.b16 %v2160, %v2157
    %v2188 = vpack.c.b16 %v2161, %v2158
    %v2189 = vpack.c.b16 %v2165, %v2162
    %v2190 = vpack.c.b16 %v2166, %v2163
    %v2191 = vpack.c.b16 %v2167, %v2164
    %2216 = vmatpush.bf16.msra.mxu0 %v2189
    %2217 = vmatpush.bf16.msra.mxu0 %v2186
    %2218 = vmatpush.bf16.msra.mxu0 %v2183
    %2219 = vmatpush.bf16.msra.mxu0 %v2180
    %2220 = vmatpush.bf16.msra.mxu0 %v2177
    %2221 = vmatpush.bf16.msra.mxu0 %v2174
    %2222 = vmatpush.bf16.msra.mxu0 %v2171
    %2223 = vmatpush.bf16.msra.mxu0 %v2168
    %2224 = vmatmul.bf16.gmra.mxu0 %v2054
    %v2225 = vpop.f32.mrf.mxu0
    %v2226 = vadd.f32 0.0, %v2225
    %v2227 = vpop.f32.mrf.mxu0
    %v2228 = vadd.f32 0.0, %v2227
    %2229 = vdwg.mxu0
    %2230 = vmatpush.bf16.msra.mxu0 %v2190
    %2231 = vmatpush.bf16.msra.mxu0 %v2187
    %2232 = vmatpush.bf16.msra.mxu0 %v2184
    %2233 = vmatpush.bf16.msra.mxu0 %v2181
    %2234 = vmatpush.bf16.msra.mxu0 %v2178
    %2235 = vmatpush.bf16.msra.mxu0 %v2175
    %2236 = vmatpush.bf16.msra.mxu0 %v2172
    %2237 = vmatpush.bf16.msra.mxu0 %v2169
    %2238 = vmatmul.bf16.gmra.mxu0 %v2054
    %v2239 = vpop.f32.mrf.mxu0
    %v2240 = vadd.f32 0.0, %v2239
    %v2241 = vpop.f32.mrf.mxu0
    %v2242 = vadd.f32 0.0, %v2241
    %2243 = vdwg.mxu0
    %2244 = vmatpush.bf16.msra.mxu0 %v2191
    %2245 = vmatpush.bf16.msra.mxu0 %v2188
    %2246 = vmatpush.bf16.msra.mxu0 %v2185
    %2247 = vmatpush.bf16.msra.mxu0 %v2182
    %2248 = vmatpush.bf16.msra.mxu0 %v2179
    %2249 = vmatpush.bf16.msra.mxu0 %v2176
    %2250 = vmatpush.bf16.msra.mxu0 %v2173
    %2251 = vmatpush.bf16.msra.mxu0 %v2170
    %2252 = vmatmul.bf16.gmra.mxu0 %v2054
    %v2253 = vpop.f32.mrf.mxu0
    %v2254 = vadd.f32 0.0, %v2253
    %v2255 = vpop.f32.mrf.mxu0
    %v2256 = vadd.f32 0.0, %v2255
    %2257 = vdwg.mxu0
    %v2258 = vrot.slane %v2226, 7
    %v2259 = vrot.slane %v2228, 7
    %v2260 = vsel %vm441, %v2258, %v2259
    %v2261 = vsel %vm441, %v2259, %v2258
    %v2262 = vsel %vm1545, %v2261, 0.0
    %v2263 = vsel %vm1546, %v2260, 0.0
    %v2264 = vadd.f32 %v2240, %v2262
    %v2265 = vadd.f32 %v2242, %v2263
    %v2266 = vrot.slane %v2254, 1
    %v2267 = vrot.slane %v2256, 1
    %v2268 = vsel %vm498, %v2266, %v2267
    %v2269 = vsel %vm498, %v2267, %v2266
    %v2270 = vsel %vm1559, %v2268, 0.0
    %v2271 = vsel %vm1560, %v2269, 0.0
    %v2272 = vadd.f32 %v2264, %v2270
    %v2273 = vadd.f32 %v2265, %v2271
    %v2274 = vperm.slane %v2045, 2
    %v2275 = vadd.f32 %v2272, %v2274
    %v2276 = vadd.f32 %v2273, %v2274
    %s2277 = scalar_lea.vmem [#allocation5], 28
    %v2278 = vld [vmem:[%s2277] sm:$0x7]
    %v2279 = vperm.slane %v2278, 0
    %v2280 = vmul.f32 %v2275, %v2279
    %v2281 = vmul.f32 %v2276, %v2279
    %v2282 = vperm.slane %v2278, 1
    %v2283 = vadd.f32 %v2280, %v2282
    %v2284 = vadd.f32 %v2281, %v2282
    %v2285 = vmax.f32 %v2283, 0.0
    %v2286 = vmax.f32 %v2284, 0.0
    %v2287 = vpack.c.bf16 %v2286, %v2285
    %s2288 = scalar_lea.vmem [#allocation3], 1344
    %v2289 = vld [vmem:[%s2288] sm:$0xff]
    %v2290 = vld [vmem:[%s2288 + $0x8] sm:$0xf]
    %v2291 = vld [vmem:[%s2288 + $0xc] sm:$0xff]
    %v2292 = vld [vmem:[%s2288 + $0x14] sm:$0xf]
    %v2293 = vld [vmem:[%s2288 + $0x18] sm:$0xff]
    %v2294 = vld [vmem:[%s2288 + $0x20] sm:$0xf]
    %v2295 = vld [vmem:[%s2288 + $0x24] sm:$0xff]
    %v2296 = vld [vmem:[%s2288 + $0x2c] sm:$0xf]
    %v2297 = vld [vmem:[%s2288 + $0x30] sm:$0xff]
    %v2298 = vld [vmem:[%s2288 + $0x38] sm:$0xf]
    %v2299 = vld [vmem:[%s2288 + $0x3c] sm:$0xff]
    %v2300 = vld [vmem:[%s2288 + $0x44] sm:$0xf]
    %v2301 = vld [vmem:[%s2288 + $0x48] sm:$0xff]
    %v2302 = vld [vmem:[%s2288 + $0x50] sm:$0xf]
    %v2303 = vld [vmem:[%s2288 + $0x54] sm:$0xff]
    %v2304 = vld [vmem:[%s2288 + $0x5c] sm:$0xf]
    %v2305 = vld [vmem:[%s2288 + $0x60] sm:$0xff]
    %v2306 = vld [vmem:[%s2288 + $0x68] sm:$0xf]
    %v2307 = vld [vmem:[%s2288 + $0x6c] sm:$0xff]
    %v2308 = vld [vmem:[%s2288 + $0x74] sm:$0xf]
    %v2309 = vld [vmem:[%s2288 + $0x78] sm:$0xff]
    %v2310 = vld [vmem:[%s2288 + $0x80] sm:$0xf]
    %v2311 = vld [vmem:[%s2288 + $0x84] sm:$0xff]
    %v2312 = vld [vmem:[%s2288 + $0x8c] sm:$0xf]
    %v2313 = vld [vmem:[%s2288 + $0x90] sm:$0xff]
    %v2314 = vld [vmem:[%s2288 + $0x98] sm:$0xf]
    %v2315 = vld [vmem:[%s2288 + $0x9c] sm:$0xff]
    %v2316 = vld [vmem:[%s2288 + $0xa4] sm:$0xf]
    %v2317 = vld [vmem:[%s2288 + $0xa8] sm:$0xff]
    %v2318 = vld [vmem:[%s2288 + $0xb0] sm:$0xf]
    %v2319 = vld [vmem:[%s2288 + $0xb4] sm:$0xff]
    %v2320 = vld [vmem:[%s2288 + $0xbc] sm:$0xf]
    %v2353 = vunpack.c.l.b16 %v2289
    %v2354 = vunpack.c.h.b16 %v2289
    %v2355 = vunpack.c.l.b16 %v2290
    %v2356 = vunpack.c.l.b16 %v2291
    %v2357 = vunpack.c.h.b16 %v2291
    %v2358 = vunpack.c.l.b16 %v2292
    %v2359 = vunpack.c.l.b16 %v2293
    %v2360 = vunpack.c.h.b16 %v2293
    %v2361 = vunpack.c.l.b16 %v2294
    %v2362 = vunpack.c.l.b16 %v2295
    %v2363 = vunpack.c.h.b16 %v2295
    %v2364 = vunpack.c.l.b16 %v2296
    %v2365 = vunpack.c.l.b16 %v2297
    %v2366 = vunpack.c.h.b16 %v2297
    %v2367 = vunpack.c.l.b16 %v2298
    %v2368 = vunpack.c.l.b16 %v2299
    %v2369 = vunpack.c.h.b16 %v2299
    %v2370 = vunpack.c.l.b16 %v2300
    %v2371 = vunpack.c.l.b16 %v2301
    %v2372 = vunpack.c.h.b16 %v2301
    %v2373 = vunpack.c.l.b16 %v2302
    %v2374 = vunpack.c.l.b16 %v2303
    %v2375 = vunpack.c.h.b16 %v2303
    %v2376 = vunpack.c.l.b16 %v2304
    %v2377 = vunpack.c.l.b16 %v2305
    %v2378 = vunpack.c.h.b16 %v2305
    %v2379 = vunpack.c.l.b16 %v2306
    %v2380 = vunpack.c.l.b16 %v2307
    %v2381 = vunpack.c.h.b16 %v2307
    %v2382 = vunpack.c.l.b16 %v2308
    %v2383 = vunpack.c.l.b16 %v2309
    %v2384 = vunpack.c.h.b16 %v2309
    %v2385 = vunpack.c.l.b16 %v2310
    %v2386 = vunpack.c.l.b16 %v2311
    %v2387 = vunpack.c.h.b16 %v2311
    %v2388 = vunpack.c.l.b16 %v2312
    %v2389 = vunpack.c.l.b16 %v2313
    %v2390 = vunpack.c.h.b16 %v2313
    %v2391 = vunpack.c.l.b16 %v2314
    %v2392 = vunpack.c.l.b16 %v2315
    %v2393 = vunpack.c.h.b16 %v2315
    %v2394 = vunpack.c.l.b16 %v2316
    %v2395 = vunpack.c.l.b16 %v2317
    %v2396 = vunpack.c.h.b16 %v2317
    %v2397 = vunpack.c.l.b16 %v2318
    %v2398 = vunpack.c.l.b16 %v2319
    %v2399 = vunpack.c.h.b16 %v2319
    %v2400 = vunpack.c.l.b16 %v2320
    %v2401 = vpack.c.b16 %v2356, %v2353
    %v2402 = vpack.c.b16 %v2357, %v2354
    %v2403 = vpack.c.b16 %v2358, %v2355
    %v2404 = vpack.c.b16 %v2362, %v2359
    %v2405 = vpack.c.b16 %v2363, %v2360
    %v2406 = vpack.c.b16 %v2364, %v2361
    %v2407 = vpack.c.b16 %v2368, %v2365
    %v2408 = vpack.c.b16 %v2369, %v2366
    %v2409 = vpack.c.b16 %v2370, %v2367
    %v2410 = vpack.c.b16 %v2374, %v2371
    %v2411 = vpack.c.b16 %v2375, %v2372
    %v2412 = vpack.c.b16 %v2376, %v2373
    %v2413 = vpack.c.b16 %v2380, %v2377
    %v2414 = vpack.c.b16 %v2381, %v2378
    %v2415 = vpack.c.b16 %v2382, %v2379
    %v2416 = vpack.c.b16 %v2386, %v2383
    %v2417 = vpack.c.b16 %v2387, %v2384
    %v2418 = vpack.c.b16 %v2388, %v2385
    %v2419 = vpack.c.b16 %v2392, %v2389
    %v2420 = vpack.c.b16 %v2393, %v2390
    %v2421 = vpack.c.b16 %v2394, %v2391
    %v2422 = vpack.c.b16 %v2398, %v2395
    %v2423 = vpack.c.b16 %v2399, %v2396
    %v2424 = vpack.c.b16 %v2400, %v2397
    %2449 = vmatpush.bf16.msra.mxu0 %v2422
    %2450 = vmatpush.bf16.msra.mxu0 %v2419
    %2451 = vmatpush.bf16.msra.mxu0 %v2416
    %2452 = vmatpush.bf16.msra.mxu0 %v2413
    %2453 = vmatpush.bf16.msra.mxu0 %v2410
    %2454 = vmatpush.bf16.msra.mxu0 %v2407
    %2455 = vmatpush.bf16.msra.mxu0 %v2404
    %2456 = vmatpush.bf16.msra.mxu0 %v2401
    %2457 = vmatmul.bf16.gmra.mxu0 %v2287
    %v2458 = vpop.f32.mrf.mxu0
    %v2459 = vadd.f32 0.0, %v2458
    %v2460 = vpop.f32.mrf.mxu0
    %v2461 = vadd.f32 0.0, %v2460
    %2462 = vdwg.mxu0
    %2463 = vmatpush.bf16.msra.mxu0 %v2423
    %2464 = vmatpush.bf16.msra.mxu0 %v2420
    %2465 = vmatpush.bf16.msra.mxu0 %v2417
    %2466 = vmatpush.bf16.msra.mxu0 %v2414
    %2467 = vmatpush.bf16.msra.mxu0 %v2411
    %2468 = vmatpush.bf16.msra.mxu0 %v2408
    %2469 = vmatpush.bf16.msra.mxu0 %v2405
    %2470 = vmatpush.bf16.msra.mxu0 %v2402
    %2471 = vmatmul.bf16.gmra.mxu0 %v2287
    %v2472 = vpop.f32.mrf.mxu0
    %v2473 = vadd.f32 0.0, %v2472
    %v2474 = vpop.f32.mrf.mxu0
    %v2475 = vadd.f32 0.0, %v2474
    %2476 = vdwg.mxu0
    %2477 = vmatpush.bf16.msra.mxu0 %v2424
    %2478 = vmatpush.bf16.msra.mxu0 %v2421
    %2479 = vmatpush.bf16.msra.mxu0 %v2418
    %2480 = vmatpush.bf16.msra.mxu0 %v2415
    %2481 = vmatpush.bf16.msra.mxu0 %v2412
    %2482 = vmatpush.bf16.msra.mxu0 %v2409
    %2483 = vmatpush.bf16.msra.mxu0 %v2406
    %2484 = vmatpush.bf16.msra.mxu0 %v2403
    %2485 = vmatmul.bf16.gmra.mxu0 %v2287
    %v2486 = vpop.f32.mrf.mxu0
    %v2487 = vadd.f32 0.0, %v2486
    %v2488 = vpop.f32.mrf.mxu0
    %v2489 = vadd.f32 0.0, %v2488
    %2490 = vdwg.mxu0
    %v2491 = vrot.slane %v2459, 7
    %v2492 = vrot.slane %v2461, 7
    %v2493 = vsel %vm441, %v2491, %v2492
    %v2494 = vsel %vm441, %v2492, %v2491
    %v2495 = vsel %vm1545, %v2494, 0.0
    %v2496 = vsel %vm1546, %v2493, 0.0
    %v2497 = vadd.f32 %v2473, %v2495
    %v2498 = vadd.f32 %v2475, %v2496
    %v2499 = vrot.slane %v2487, 1
    %v2500 = vrot.slane %v2489, 1
    %v2501 = vsel %vm498, %v2499, %v2500
    %v2502 = vsel %vm498, %v2500, %v2499
    %v2503 = vsel %vm1559, %v2501, 0.0
    %v2504 = vsel %vm1560, %v2502, 0.0
    %v2505 = vadd.f32 %v2497, %v2503
    %v2506 = vadd.f32 %v2498, %v2504
    %v2507 = vperm.slane %v2278, 2
    %v2508 = vadd.f32 %v2505, %v2507
    %v2509 = vadd.f32 %v2506, %v2507
    %v2510 = vtanh.pop %v2508
    %v2511 = vtanh.pop %v2509
    %vm2512 = vcmask 23552
    %2513 = vst.msk [vmem:[%s3] sm:$0xff] %vm2512, %v2042
    %2514 = vst.msk [vmem:[%s3 + $0x8] sm:$0xff] %vm2512, %v2043
    %2517 = vrot.lane.b32.xlu0 %v2510, 3
    %v2518 = vpop.permute.xlu0 %2517
    %2519 = vrot.lane.b32.xlu0 %v2511, 3
    %v2520 = vpop.permute.xlu0 %2519
    %vm2523 = vcmask 72728
    %2524 = vst.msk [vmem:[%s3] sm:$0xff] %vm2523, %v2518
    %2525 = vst.msk [vmem:[%s3 + $0x8] sm:$0xff] %vm2523, %v2520
    %s2526 = scalar_lea.vmem [#allocation5], 32
    %v2527 = vld [vmem:[%s2526] sm:$0x7]
    %v2528 = vperm.slane %v2527, 0
    %v2529 = vmul.f32 %v1577, %v2528
    %v2530 = vperm.slane %v2527, 1
    %v2531 = vadd.f32 %v2529, %v2530
    %v2532 = vmax.f32 %v2531, 0.0
    %v2533 = vpack.c.bf16 %v2532, %v2532
    %s2534 = scalar_lea.vmem [#allocation3], 1536
    %v2535 = vld [vmem:[%s2534] sm:$0xff]
    %v2536 = vld [vmem:[%s2534 + $0x8] sm:$0xf]
    %v2537 = vld [vmem:[%s2534 + $0xc] sm:$0xff]
    %v2538 = vld [vmem:[%s2534 + $0x14] sm:$0xf]
    %v2539 = vld [vmem:[%s2534 + $0x18] sm:$0xff]
    %v2540 = vld [vmem:[%s2534 + $0x20] sm:$0xf]
    %v2541 = vld [vmem:[%s2534 + $0x24] sm:$0xff]
    %v2542 = vld [vmem:[%s2534 + $0x2c] sm:$0xf]
    %v2543 = vld [vmem:[%s2534 + $0x30] sm:$0xff]
    %v2544 = vld [vmem:[%s2534 + $0x38] sm:$0xf]
    %v2545 = vld [vmem:[%s2534 + $0x3c] sm:$0xff]
    %v2546 = vld [vmem:[%s2534 + $0x44] sm:$0xf]
    %v2547 = vld [vmem:[%s2534 + $0x48] sm:$0xff]
    %v2548 = vld [vmem:[%s2534 + $0x50] sm:$0xf]
    %v2549 = vld [vmem:[%s2534 + $0x54] sm:$0xff]
    %v2550 = vld [vmem:[%s2534 + $0x5c] sm:$0xf]
    %v2551 = vld [vmem:[%s2534 + $0x60] sm:$0xff]
    %v2552 = vld [vmem:[%s2534 + $0x68] sm:$0xf]
    %v2553 = vld [vmem:[%s2534 + $0x6c] sm:$0xff]
    %v2554 = vld [vmem:[%s2534 + $0x74] sm:$0xf]
    %v2555 = vld [vmem:[%s2534 + $0x78] sm:$0xff]
    %v2556 = vld [vmem:[%s2534 + $0x80] sm:$0xf]
    %v2557 = vld [vmem:[%s2534 + $0x84] sm:$0xff]
    %v2558 = vld [vmem:[%s2534 + $0x8c] sm:$0xf]
    %v2559 = vld [vmem:[%s2534 + $0x90] sm:$0xff]
    %v2560 = vld [vmem:[%s2534 + $0x98] sm:$0xf]
    %v2561 = vld [vmem:[%s2534 + $0x9c] sm:$0xff]
    %v2562 = vld [vmem:[%s2534 + $0xa4] sm:$0xf]
    %v2563 = vld [vmem:[%s2534 + $0xa8] sm:$0xff]
    %v2564 = vld [vmem:[%s2534 + $0xb0] sm:$0xf]
    %v2565 = vld [vmem:[%s2534 + $0xb4] sm:$0xff]
    %v2566 = vld [vmem:[%s2534 + $0xbc] sm:$0xf]
    %v2599 = vunpack.c.l.b16 %v2535
    %v2600 = vunpack.c.h.b16 %v2535
    %v2601 = vunpack.c.l.b16 %v2536
    %v2602 = vunpack.c.l.b16 %v2537
    %v2603 = vunpack.c.h.b16 %v2537
    %v2604 = vunpack.c.l.b16 %v2538
    %v2605 = vunpack.c.l.b16 %v2539
    %v2606 = vunpack.c.h.b16 %v2539
    %v2607 = vunpack.c.l.b16 %v2540
    %v2608 = vunpack.c.l.b16 %v2541
    %v2609 = vunpack.c.h.b16 %v2541
    %v2610 = vunpack.c.l.b16 %v2542
    %v2611 = vunpack.c.l.b16 %v2543
    %v2612 = vunpack.c.h.b16 %v2543
    %v2613 = vunpack.c.l.b16 %v2544
    %v2614 = vunpack.c.l.b16 %v2545
    %v2615 = vunpack.c.h.b16 %v2545
    %v2616 = vunpack.c.l.b16 %v2546
    %v2617 = vunpack.c.l.b16 %v2547
    %v2618 = vunpack.c.h.b16 %v2547
    %v2619 = vunpack.c.l.b16 %v2548
    %v2620 = vunpack.c.l.b16 %v2549
    %v2621 = vunpack.c.h.b16 %v2549
    %v2622 = vunpack.c.l.b16 %v2550
    %v2623 = vunpack.c.l.b16 %v2551
    %v2624 = vunpack.c.h.b16 %v2551
    %v2625 = vunpack.c.l.b16 %v2552
    %v2626 = vunpack.c.l.b16 %v2553
    %v2627 = vunpack.c.h.b16 %v2553
    %v2628 = vunpack.c.l.b16 %v2554
    %v2629 = vunpack.c.l.b16 %v2555
    %v2630 = vunpack.c.h.b16 %v2555
    %v2631 = vunpack.c.l.b16 %v2556
    %v2632 = vunpack.c.l.b16 %v2557
    %v2633 = vunpack.c.h.b16 %v2557
    %v2634 = vunpack.c.l.b16 %v2558
    %v2635 = vunpack.c.l.b16 %v2559
    %v2636 = vunpack.c.h.b16 %v2559
    %v2637 = vunpack.c.l.b16 %v2560
    %v2638 = vunpack.c.l.b16 %v2561
    %v2639 = vunpack.c.h.b16 %v2561
    %v2640 = vunpack.c.l.b16 %v2562
    %v2641 = vunpack.c.l.b16 %v2563
    %v2642 = vunpack.c.h.b16 %v2563
    %v2643 = vunpack.c.l.b16 %v2564
    %v2644 = vunpack.c.l.b16 %v2565
    %v2645 = vunpack.c.h.b16 %v2565
    %v2646 = vunpack.c.l.b16 %v2566
    %v2647 = vpack.c.b16 %v2602, %v2599
    %v2648 = vpack.c.b16 %v2603, %v2600
    %v2649 = vpack.c.b16 %v2604, %v2601
    %v2650 = vpack.c.b16 %v2608, %v2605
    %v2651 = vpack.c.b16 %v2609, %v2606
    %v2652 = vpack.c.b16 %v2610, %v2607
    %v2653 = vpack.c.b16 %v2614, %v2611
    %v2654 = vpack.c.b16 %v2615, %v2612
    %v2655 = vpack.c.b16 %v2616, %v2613
    %v2656 = vpack.c.b16 %v2620, %v2617
    %v2657 = vpack.c.b16 %v2621, %v2618
    %v2658 = vpack.c.b16 %v2622, %v2619
    %v2659 = vpack.c.b16 %v2626, %v2623
    %v2660 = vpack.c.b16 %v2627, %v2624
    %v2661 = vpack.c.b16 %v2628, %v2625
    %v2662 = vpack.c.b16 %v2632, %v2629
    %v2663 = vpack.c.b16 %v2633, %v2630
    %v2664 = vpack.c.b16 %v2634, %v2631
    %v2665 = vpack.c.b16 %v2638, %v2635
    %v2666 = vpack.c.b16 %v2639, %v2636
    %v2667 = vpack.c.b16 %v2640, %v2637
    %v2668 = vpack.c.b16 %v2644, %v2641
    %v2669 = vpack.c.b16 %v2645, %v2642
    %v2670 = vpack.c.b16 %v2646, %v2643
    %2695 = vmatpush.bf16.msra.mxu0 %v2668
    %2696 = vmatpush.bf16.msra.mxu0 %v2665
    %2697 = vmatpush.bf16.msra.mxu0 %v2662
    %2698 = vmatpush.bf16.msra.mxu0 %v2659
    %2699 = vmatpush.bf16.msra.mxu0 %v2656
    %2700 = vmatpush.bf16.msra.mxu0 %v2653
    %2701 = vmatpush.bf16.msra.mxu0 %v2650
    %2702 = vmatpush.bf16.msra.mxu0 %v2647
    %2703 = vmatmul.bf16.gmra.mxu0 %v2533
    %v2704 = vpop.f32.mrf.mxu0
    %v2705 = vadd.f32 0.0, %v2704
    %v2706 = vpop.f32.mrf.mxu0
    %2707 = vdwg.mxu0
    %2708 = vmatpush.bf16.msra.mxu0 %v2669
    %2709 = vmatpush.bf16.msra.mxu0 %v2666
    %2710 = vmatpush.bf16.msra.mxu0 %v2663
    %2711 = vmatpush.bf16.msra.mxu0 %v2660
    %2712 = vmatpush.bf16.msra.mxu0 %v2657
    %2713 = vmatpush.bf16.msra.mxu0 %v2654
    %2714 = vmatpush.bf16.msra.mxu0 %v2651
    %2715 = vmatpush.bf16.msra.mxu0 %v2648
    %2716 = vmatmul.bf16.gmra.mxu0 %v2533
    %v2717 = vpop.f32.mrf.mxu0
    %v2718 = vadd.f32 0.0, %v2717
    %v2719 = vpop.f32.mrf.mxu0
    %2720 = vdwg.mxu0
    %2721 = vmatpush.bf16.msra.mxu0 %v2670
    %2722 = vmatpush.bf16.msra.mxu0 %v2667
    %2723 = vmatpush.bf16.msra.mxu0 %v2664
    %2724 = vmatpush.bf16.msra.mxu0 %v2661
    %2725 = vmatpush.bf16.msra.mxu0 %v2658
    %2726 = vmatpush.bf16.msra.mxu0 %v2655
    %2727 = vmatpush.bf16.msra.mxu0 %v2652
    %2728 = vmatpush.bf16.msra.mxu0 %v2649
    %2729 = vmatmul.bf16.gmra.mxu0 %v2533
    %v2730 = vpop.f32.mrf.mxu0
    %v2731 = vadd.f32 0.0, %v2730
    %v2732 = vpop.f32.mrf.mxu0
    %2733 = vdwg.mxu0
    %vm2734 = vcmp.lt.s32.totalorder %v329, 0
    %v2735 = vsub.s32 0, %v329
    %v2736 = vsel %vm2734, %v2735, %v329
    %v2737 = vshrl.u32 %v2736, 2
    %v2738 = vand.u32 %v2736, 3
    %v2739 = vsub.s32 0, %v2738
    %v2740 = vsel %vm2734, %v2739, %v2738
    %vm2741 = vcmp.ne.s32.totalorder %v2740, 0
    %vm2742 = vcmp.lt.s32.totalorder %v2740, 0
    %vm2743 = vmand %vm2742, %vm2741
    %v2744 = vadd.s32 %v2740, 4
    %v2745 = vsel %vm2743, %v2744, %v2740
    %v2746 = vrot.slane %v2705, 7
    %vm2747 = vcmp.ge.s32.totalorder %v2745, 1
    %v2748 = vsel %vm2747, 1, 0
    %vm2749 = vcmp.eq.s32.totalorder %v2748, 1
    %v2750 = vsel %vm2749, %v2746, 0.0
    %v2751 = vadd.f32 %v2718, %v2750
    %v2752 = vrot.slane %v2731, 1
    %vm2753 = vcmp.le.s32.totalorder %v2745, 2
    %v2754 = vsel %vm2753, 1, 0
    %vm2755 = vcmp.eq.s32.totalorder %v2754, 1
    %v2756 = vsel %vm2755, %v2752, 0.0
    %v2757 = vadd.f32 %v2751, %v2756
    %v2758 = vperm.slane %v2527, 2
    %v2759 = vadd.f32 %v2757, %v2758
    %s2760 = scalar_lea.vmem [#allocation5], 36
    %v2761 = vld [vmem:[%s2760] sm:$0x7]
    %v2762 = vperm.slane %v2761, 0
    %v2763 = vmul.f32 %v2759, %v2762
    %v2764 = vperm.slane %v2761, 1
    %v2765 = vadd.f32 %v2763, %v2764
    %v2766 = vmax.f32 %v2765, 0.0
    %v2767 = vpack.c.bf16 %v2766, %v2766
    %s2768 = scalar_lea.vmem [#allocation3], 1728
    %v2769 = vld [vmem:[%s2768] sm:$0xff]
    %v2770 = vld [vmem:[%s2768 + $0x8] sm:$0xf]
    %v2771 = vld [vmem:[%s2768 + $0xc] sm:$0xff]
    %v2772 = vld [vmem:[%s2768 + $0x14] sm:$0xf]
    %v2773 = vld [vmem:[%s2768 + $0x18] sm:$0xff]
    %v2774 = vld [vmem:[%s2768 + $0x20] sm:$0xf]
    %v2775 = vld [vmem:[%s2768 + $0x24] sm:$0xff]
    %v2776 = vld [vmem:[%s2768 + $0x2c] sm:$0xf]
    %v2777 = vld [vmem:[%s2768 + $0x30] sm:$0xff]
    %v2778 = vld [vmem:[%s2768 + $0x38] sm:$0xf]
    %v2779 = vld [vmem:[%s2768 + $0x3c] sm:$0xff]
    %v2780 = vld [vmem:[%s2768 + $0x44] sm:$0xf]
    %v2781 = vld [vmem:[%s2768 + $0x48] sm:$0xff]
    %v2782 = vld [vmem:[%s2768 + $0x50] sm:$0xf]
    %v2783 = vld [vmem:[%s2768 + $0x54] sm:$0xff]
    %v2784 = vld [vmem:[%s2768 + $0x5c] sm:$0xf]
    %v2785 = vld [vmem:[%s2768 + $0x60] sm:$0xff]
    %v2786 = vld [vmem:[%s2768 + $0x68] sm:$0xf]
    %v2787 = vld [vmem:[%s2768 + $0x6c] sm:$0xff]
    %v2788 = vld [vmem:[%s2768 + $0x74] sm:$0xf]
    %v2789 = vld [vmem:[%s2768 + $0x78] sm:$0xff]
    %v2790 = vld [vmem:[%s2768 + $0x80] sm:$0xf]
    %v2791 = vld [vmem:[%s2768 + $0x84] sm:$0xff]
    %v2792 = vld [vmem:[%s2768 + $0x8c] sm:$0xf]
    %v2793 = vld [vmem:[%s2768 + $0x90] sm:$0xff]
    %v2794 = vld [vmem:[%s2768 + $0x98] sm:$0xf]
    %v2795 = vld [vmem:[%s2768 + $0x9c] sm:$0xff]
    %v2796 = vld [vmem:[%s2768 + $0xa4] sm:$0xf]
    %v2797 = vld [vmem:[%s2768 + $0xa8] sm:$0xff]
    %v2798 = vld [vmem:[%s2768 + $0xb0] sm:$0xf]
    %v2799 = vld [vmem:[%s2768 + $0xb4] sm:$0xff]
    %v2800 = vld [vmem:[%s2768 + $0xbc] sm:$0xf]
    %v2833 = vunpack.c.l.b16 %v2769
    %v2834 = vunpack.c.h.b16 %v2769
    %v2835 = vunpack.c.l.b16 %v2770
    %v2836 = vunpack.c.l.b16 %v2771
    %v2837 = vunpack.c.h.b16 %v2771
    %v2838 = vunpack.c.l.b16 %v2772
    %v2839 = vunpack.c.l.b16 %v2773
    %v2840 = vunpack.c.h.b16 %v2773
    %v2841 = vunpack.c.l.b16 %v2774
    %v2842 = vunpack.c.l.b16 %v2775
    %v2843 = vunpack.c.h.b16 %v2775
    %v2844 = vunpack.c.l.b16 %v2776
    %v2845 = vunpack.c.l.b16 %v2777
    %v2846 = vunpack.c.h.b16 %v2777
    %v2847 = vunpack.c.l.b16 %v2778
    %v2848 = vunpack.c.l.b16 %v2779
    %v2849 = vunpack.c.h.b16 %v2779
    %v2850 = vunpack.c.l.b16 %v2780
    %v2851 = vunpack.c.l.b16 %v2781
    %v2852 = vunpack.c.h.b16 %v2781
    %v2853 = vunpack.c.l.b16 %v2782
    %v2854 = vunpack.c.l.b16 %v2783
    %v2855 = vunpack.c.h.b16 %v2783
    %v2856 = vunpack.c.l.b16 %v2784
    %v2857 = vunpack.c.l.b16 %v2785
    %v2858 = vunpack.c.h.b16 %v2785
    %v2859 = vunpack.c.l.b16 %v2786
    %v2860 = vunpack.c.l.b16 %v2787
    %v2861 = vunpack.c.h.b16 %v2787
    %v2862 = vunpack.c.l.b16 %v2788
    %v2863 = vunpack.c.l.b16 %v2789
    %v2864 = vunpack.c.h.b16 %v2789
    %v2865 = vunpack.c.l.b16 %v2790
    %v2866 = vunpack.c.l.b16 %v2791
    %v2867 = vunpack.c.h.b16 %v2791
    %v2868 = vunpack.c.l.b16 %v2792
    %v2869 = vunpack.c.l.b16 %v2793
    %v2870 = vunpack.c.h.b16 %v2793
    %v2871 = vunpack.c.l.b16 %v2794
    %v2872 = vunpack.c.l.b16 %v2795
    %v2873 = vunpack.c.h.b16 %v2795
    %v2874 = vunpack.c.l.b16 %v2796
    %v2875 = vunpack.c.l.b16 %v2797
    %v2876 = vunpack.c.h.b16 %v2797
    %v2877 = vunpack.c.l.b16 %v2798
    %v2878 = vunpack.c.l.b16 %v2799
    %v2879 = vunpack.c.h.b16 %v2799
    %v2880 = vunpack.c.l.b16 %v2800
    %v2881 = vpack.c.b16 %v2836, %v2833
    %v2882 = vpack.c.b16 %v2837, %v2834
    %v2883 = vpack.c.b16 %v2838, %v2835
    %v2884 = vpack.c.b16 %v2842, %v2839
    %v2885 = vpack.c.b16 %v2843, %v2840
    %v2886 = vpack.c.b16 %v2844, %v2841
    %v2887 = vpack.c.b16 %v2848, %v2845
    %v2888 = vpack.c.b16 %v2849, %v2846
    %v2889 = vpack.c.b16 %v2850, %v2847
    %v2890 = vpack.c.b16 %v2854, %v2851
    %v2891 = vpack.c.b16 %v2855, %v2852
    %v2892 = vpack.c.b16 %v2856, %v2853
    %v2893 = vpack.c.b16 %v2860, %v2857
    %v2894 = vpack.c.b16 %v2861, %v2858
    %v2895 = vpack.c.b16 %v2862, %v2859
    %v2896 = vpack.c.b16 %v2866, %v2863
    %v2897 = vpack.c.b16 %v2867, %v2864
    %v2898 = vpack.c.b16 %v2868, %v2865
    %v2899 = vpack.c.b16 %v2872, %v2869
    %v2900 = vpack.c.b16 %v2873, %v2870
    %v2901 = vpack.c.b16 %v2874, %v2871
    %v2902 = vpack.c.b16 %v2878, %v2875
    %v2903 = vpack.c.b16 %v2879, %v2876
    %v2904 = vpack.c.b16 %v2880, %v2877
    %2929 = vmatpush.bf16.msra.mxu0 %v2902
    %2930 = vmatpush.bf16.msra.mxu0 %v2899
    %2931 = vmatpush.bf16.msra.mxu0 %v2896
    %2932 = vmatpush.bf16.msra.mxu0 %v2893
    %2933 = vmatpush.bf16.msra.mxu0 %v2890
    %2934 = vmatpush.bf16.msra.mxu0 %v2887
    %2935 = vmatpush.bf16.msra.mxu0 %v2884
    %2936 = vmatpush.bf16.msra.mxu0 %v2881
    %2937 = vmatmul.bf16.gmra.mxu0 %v2767
    %v2938 = vpop.f32.mrf.mxu0
    %v2939 = vadd.f32 0.0, %v2938
    %v2940 = vpop.f32.mrf.mxu0
    %2941 = vdwg.mxu0
    %2942 = vmatpush.bf16.msra.mxu0 %v2903
    %2943 = vmatpush.bf16.msra.mxu0 %v2900
    %2944 = vmatpush.bf16.msra.mxu0 %v2897
    %2945 = vmatpush.bf16.msra.mxu0 %v2894
    %2946 = vmatpush.bf16.msra.mxu0 %v2891
    %2947 = vmatpush.bf16.msra.mxu0 %v2888
    %2948 = vmatpush.bf16.msra.mxu0 %v2885
    %2949 = vmatpush.bf16.msra.mxu0 %v2882
    %2950 = vmatmul.bf16.gmra.mxu0 %v2767
    %v2951 = vpop.f32.mrf.mxu0
    %v2952 = vadd.f32 0.0, %v2951
    %v2953 = vpop.f32.mrf.mxu0
    %2954 = vdwg.mxu0
    %2955 = vmatpush.bf16.msra.mxu0 %v2904
    %2956 = vmatpush.bf16.msra.mxu0 %v2901
    %2957 = vmatpush.bf16.msra.mxu0 %v2898
    %2958 = vmatpush.bf16.msra.mxu0 %v2895
    %2959 = vmatpush.bf16.msra.mxu0 %v2892
    %2960 = vmatpush.bf16.msra.mxu0 %v2889
    %2961 = vmatpush.bf16.msra.mxu0 %v2886
    %2962 = vmatpush.bf16.msra.mxu0 %v2883
    %2963 = vmatmul.bf16.gmra.mxu0 %v2767
    %v2964 = vpop.f32.mrf.mxu0
    %v2965 = vadd.f32 0.0, %v2964
    %v2966 = vpop.f32.mrf.mxu0
    %2967 = vdwg.mxu0
    %v2968 = vrot.slane %v2939, 7
    %v2969 = vsel %vm2749, %v2968, 0.0
    %v2970 = vadd.f32 %v2952, %v2969
    %v2971 = vrot.slane %v2965, 1
    %v2972 = vsel %vm2755, %v2971, 0.0
    %v2973 = vadd.f32 %v2970, %v2972
    %v2974 = vperm.slane %v2761, 2
    %v2975 = vadd.f32 %v2973, %v2974
    %s2976 = scalar_lea.vmem [#allocation5], 40
    %v2977 = vld [vmem:[%s2976] sm:$0x7]
    %v2978 = vperm.slane %v2977, 0
    %v2979 = vmul.f32 %v1577, %v2978
    %v2980 = vperm.slane %v2977, 1
    %v2981 = vadd.f32 %v2979, %v2980
    %v2982 = vmax.f32 %v2981, 0.0
    %v2983 = vpack.c.bf16 %v2982, %v2982
    %s2984 = scalar_lea.vmem [#allocation3], 1920
    %v2985 = vld [vmem:[%s2984] sm:$0xff]
    %v2986 = vld [vmem:[%s2984 + $0x8] sm:$0xf]
    %v2987 = vld [vmem:[%s2984 + $0xc] sm:$0xff]
    %v2988 = vld [vmem:[%s2984 + $0x14] sm:$0xf]
    %v2989 = vld [vmem:[%s2984 + $0x18] sm:$0xff]
    %v2990 = vld [vmem:[%s2984 + $0x20] sm:$0xf]
    %v2991 = vld [vmem:[%s2984 + $0x24] sm:$0xff]
    %v2992 = vld [vmem:[%s2984 + $0x2c] sm:$0xf]
    %v2993 = vld [vmem:[%s2984 + $0x30] sm:$0xff]
    %v2994 = vld [vmem:[%s2984 + $0x38] sm:$0xf]
    %v2995 = vld [vmem:[%s2984 + $0x3c] sm:$0xff]
    %v2996 = vld [vmem:[%s2984 + $0x44] sm:$0xf]
    %v2997 = vld [vmem:[%s2984 + $0x48] sm:$0xff]
    %v2998 = vld [vmem:[%s2984 + $0x50] sm:$0xf]
    %v2999 = vld [vmem:[%s2984 + $0x54] sm:$0xff]
    %v3000 = vld [vmem:[%s2984 + $0x5c] sm:$0xf]
    %v3001 = vld [vmem:[%s2984 + $0x60] sm:$0xff]
    %v3002 = vld [vmem:[%s2984 + $0x68] sm:$0xf]
    %v3003 = vld [vmem:[%s2984 + $0x6c] sm:$0xff]
    %v3004 = vld [vmem:[%s2984 + $0x74] sm:$0xf]
    %v3005 = vld [vmem:[%s2984 + $0x78] sm:$0xff]
    %v3006 = vld [vmem:[%s2984 + $0x80] sm:$0xf]
    %v3007 = vld [vmem:[%s2984 + $0x84] sm:$0xff]
    %v3008 = vld [vmem:[%s2984 + $0x8c] sm:$0xf]
    %v3009 = vld [vmem:[%s2984 + $0x90] sm:$0xff]
    %v3010 = vld [vmem:[%s2984 + $0x98] sm:$0xf]
    %v3011 = vld [vmem:[%s2984 + $0x9c] sm:$0xff]
    %v3012 = vld [vmem:[%s2984 + $0xa4] sm:$0xf]
    %v3013 = vld [vmem:[%s2984 + $0xa8] sm:$0xff]
    %v3014 = vld [vmem:[%s2984 + $0xb0] sm:$0xf]
    %v3015 = vld [vmem:[%s2984 + $0xb4] sm:$0xff]
    %v3016 = vld [vmem:[%s2984 + $0xbc] sm:$0xf]
    %v3049 = vunpack.c.l.b16 %v2985
    %v3050 = vunpack.c.h.b16 %v2985
    %v3051 = vunpack.c.l.b16 %v2986
    %v3052 = vunpack.c.l.b16 %v2987
    %v3053 = vunpack.c.h.b16 %v2987
    %v3054 = vunpack.c.l.b16 %v2988
    %v3055 = vunpack.c.l.b16 %v2989
    %v3056 = vunpack.c.h.b16 %v2989
    %v3057 = vunpack.c.l.b16 %v2990
    %v3058 = vunpack.c.l.b16 %v2991
    %v3059 = vunpack.c.h.b16 %v2991
    %v3060 = vunpack.c.l.b16 %v2992
    %v3061 = vunpack.c.l.b16 %v2993
    %v3062 = vunpack.c.h.b16 %v2993
    %v3063 = vunpack.c.l.b16 %v2994
    %v3064 = vunpack.c.l.b16 %v2995
    %v3065 = vunpack.c.h.b16 %v2995
    %v3066 = vunpack.c.l.b16 %v2996
    %v3067 = vunpack.c.l.b16 %v2997
    %v3068 = vunpack.c.h.b16 %v2997
    %v3069 = vunpack.c.l.b16 %v2998
    %v3070 = vunpack.c.l.b16 %v2999
    %v3071 = vunpack.c.h.b16 %v2999
    %v3072 = vunpack.c.l.b16 %v3000
    %v3073 = vunpack.c.l.b16 %v3001
    %v3074 = vunpack.c.h.b16 %v3001
    %v3075 = vunpack.c.l.b16 %v3002
    %v3076 = vunpack.c.l.b16 %v3003
    %v3077 = vunpack.c.h.b16 %v3003
    %v3078 = vunpack.c.l.b16 %v3004
    %v3079 = vunpack.c.l.b16 %v3005
    %v3080 = vunpack.c.h.b16 %v3005
    %v3081 = vunpack.c.l.b16 %v3006
    %v3082 = vunpack.c.l.b16 %v3007
    %v3083 = vunpack.c.h.b16 %v3007
    %v3084 = vunpack.c.l.b16 %v3008
    %v3085 = vunpack.c.l.b16 %v3009
    %v3086 = vunpack.c.h.b16 %v3009
    %v3087 = vunpack.c.l.b16 %v3010
    %v3088 = vunpack.c.l.b16 %v3011
    %v3089 = vunpack.c.h.b16 %v3011
    %v3090 = vunpack.c.l.b16 %v3012
    %v3091 = vunpack.c.l.b16 %v3013
    %v3092 = vunpack.c.h.b16 %v3013
    %v3093 = vunpack.c.l.b16 %v3014
    %v3094 = vunpack.c.l.b16 %v3015
    %v3095 = vunpack.c.h.b16 %v3015
    %v3096 = vunpack.c.l.b16 %v3016
    %v3097 = vpack.c.b16 %v3052, %v3049
    %v3098 = vpack.c.b16 %v3053, %v3050
    %v3099 = vpack.c.b16 %v3054, %v3051
    %v3100 = vpack.c.b16 %v3058, %v3055
    %v3101 = vpack.c.b16 %v3059, %v3056
    %v3102 = vpack.c.b16 %v3060, %v3057
    %v3103 = vpack.c.b16 %v3064, %v3061
    %v3104 = vpack.c.b16 %v3065, %v3062
    %v3105 = vpack.c.b16 %v3066, %v3063
    %v3106 = vpack.c.b16 %v3070, %v3067
    %v3107 = vpack.c.b16 %v3071, %v3068
    %v3108 = vpack.c.b16 %v3072, %v3069
    %v3109 = vpack.c.b16 %v3076, %v3073
    %v3110 = vpack.c.b16 %v3077, %v3074
    %v3111 = vpack.c.b16 %v3078, %v3075
    %v3112 = vpack.c.b16 %v3082, %v3079
    %v3113 = vpack.c.b16 %v3083, %v3080
    %v3114 = vpack.c.b16 %v3084, %v3081
    %v3115 = vpack.c.b16 %v3088, %v3085
    %v3116 = vpack.c.b16 %v3089, %v3086
    %v3117 = vpack.c.b16 %v3090, %v3087
    %v3118 = vpack.c.b16 %v3094, %v3091
    %v3119 = vpack.c.b16 %v3095, %v3092
    %v3120 = vpack.c.b16 %v3096, %v3093
    %3145 = vmatpush.bf16.msra.mxu0 %v3118
    %3146 = vmatpush.bf16.msra.mxu0 %v3115
    %3147 = vmatpush.bf16.msra.mxu0 %v3112
    %3148 = vmatpush.bf16.msra.mxu0 %v3109
    %3149 = vmatpush.bf16.msra.mxu0 %v3106
    %3150 = vmatpush.bf16.msra.mxu0 %v3103
    %3151 = vmatpush.bf16.msra.mxu0 %v3100
    %3152 = vmatpush.bf16.msra.mxu0 %v3097
    %3153 = vmatmul.bf16.gmra.mxu0 %v2983
    %v3154 = vpop.f32.mrf.mxu0
    %v3155 = vadd.f32 0.0, %v3154
    %v3156 = vpop.f32.mrf.mxu0
    %3157 = vdwg.mxu0
    %3158 = vmatpush.bf16.msra.mxu0 %v3119
    %3159 = vmatpush.bf16.msra.mxu0 %v3116
    %3160 = vmatpush.bf16.msra.mxu0 %v3113
    %3161 = vmatpush.bf16.msra.mxu0 %v3110
    %3162 = vmatpush.bf16.msra.mxu0 %v3107
    %3163 = vmatpush.bf16.msra.mxu0 %v3104
    %3164 = vmatpush.bf16.msra.mxu0 %v3101
    %3165 = vmatpush.bf16.msra.mxu0 %v3098
    %3166 = vmatmul.bf16.gmra.mxu0 %v2983
    %v3167 = vpop.f32.mrf.mxu0
    %v3168 = vadd.f32 0.0, %v3167
    %v3169 = vpop.f32.mrf.mxu0
    %3170 = vdwg.mxu0
    %3171 = vmatpush.bf16.msra.mxu0 %v3120
    %3172 = vmatpush.bf16.msra.mxu0 %v3117
    %3173 = vmatpush.bf16.msra.mxu0 %v3114
    %3174 = vmatpush.bf16.msra.mxu0 %v3111
    %3175 = vmatpush.bf16.msra.mxu0 %v3108
    %3176 = vmatpush.bf16.msra.mxu0 %v3105
    %3177 = vmatpush.bf16.msra.mxu0 %v3102
    %3178 = vmatpush.bf16.msra.mxu0 %v3099
    %3179 = vmatmul.bf16.gmra.mxu0 %v2983
    %v3180 = vpop.f32.mrf.mxu0
    %v3181 = vadd.f32 0.0, %v3180
    %v3182 = vpop.f32.mrf.mxu0
    %3183 = vdwg.mxu0
    %v3184 = vrot.slane %v3155, 7
    %v3185 = vsel %vm2749, %v3184, 0.0
    %v3186 = vadd.f32 %v3168, %v3185
    %v3187 = vrot.slane %v3181, 1
    %v3188 = vsel %vm2755, %v3187, 0.0
    %v3189 = vadd.f32 %v3186, %v3188
    %v3190 = vperm.slane %v2977, 2
    %v3191 = vadd.f32 %v3189, %v3190
    %s3192 = scalar_lea.vmem [#allocation5], 44
    %v3193 = vld [vmem:[%s3192] sm:$0x7]
    %v3194 = vperm.slane %v3193, 0
    %v3195 = vmul.f32 %v3191, %v3194
    %v3196 = vperm.slane %v3193, 1
    %v3197 = vadd.f32 %v3195, %v3196
    %v3198 = vmax.f32 %v3197, 0.0
    %v3199 = vpack.c.bf16 %v3198, %v3198
    %s3200 = scalar_lea.vmem [#allocation3], 2112
    %v3201 = vld [vmem:[%s3200] sm:$0xff]
    %v3202 = vld [vmem:[%s3200 + $0x8] sm:$0xf]
    %v3203 = vld [vmem:[%s3200 + $0xc] sm:$0xff]
    %v3204 = vld [vmem:[%s3200 + $0x14] sm:$0xf]
    %v3205 = vld [vmem:[%s3200 + $0x18] sm:$0xff]
    %v3206 = vld [vmem:[%s3200 + $0x20] sm:$0xf]
    %v3207 = vld [vmem:[%s3200 + $0x24] sm:$0xff]
    %v3208 = vld [vmem:[%s3200 + $0x2c] sm:$0xf]
    %v3209 = vld [vmem:[%s3200 + $0x30] sm:$0xff]
    %v3210 = vld [vmem:[%s3200 + $0x38] sm:$0xf]
    %v3211 = vld [vmem:[%s3200 + $0x3c] sm:$0xff]
    %v3212 = vld [vmem:[%s3200 + $0x44] sm:$0xf]
    %v3213 = vld [vmem:[%s3200 + $0x48] sm:$0xff]
    %v3214 = vld [vmem:[%s3200 + $0x50] sm:$0xf]
    %v3215 = vld [vmem:[%s3200 + $0x54] sm:$0xff]
    %v3216 = vld [vmem:[%s3200 + $0x5c] sm:$0xf]
    %v3217 = vld [vmem:[%s3200 + $0x60] sm:$0xff]
    %v3218 = vld [vmem:[%s3200 + $0x68] sm:$0xf]
    %v3219 = vld [vmem:[%s3200 + $0x6c] sm:$0xff]
    %v3220 = vld [vmem:[%s3200 + $0x74] sm:$0xf]
    %v3221 = vld [vmem:[%s3200 + $0x78] sm:$0xff]
    %v3222 = vld [vmem:[%s3200 + $0x80] sm:$0xf]
    %v3223 = vld [vmem:[%s3200 + $0x84] sm:$0xff]
    %v3224 = vld [vmem:[%s3200 + $0x8c] sm:$0xf]
    %v3225 = vld [vmem:[%s3200 + $0x90] sm:$0xff]
    %v3226 = vld [vmem:[%s3200 + $0x98] sm:$0xf]
    %v3227 = vld [vmem:[%s3200 + $0x9c] sm:$0xff]
    %v3228 = vld [vmem:[%s3200 + $0xa4] sm:$0xf]
    %v3229 = vld [vmem:[%s3200 + $0xa8] sm:$0xff]
    %v3230 = vld [vmem:[%s3200 + $0xb0] sm:$0xf]
    %v3231 = vld [vmem:[%s3200 + $0xb4] sm:$0xff]
    %v3232 = vld [vmem:[%s3200 + $0xbc] sm:$0xf]
    %v3265 = vunpack.c.l.b16 %v3201
    %v3266 = vunpack.c.h.b16 %v3201
    %v3267 = vunpack.c.l.b16 %v3202
    %v3268 = vunpack.c.l.b16 %v3203
    %v3269 = vunpack.c.h.b16 %v3203
    %v3270 = vunpack.c.l.b16 %v3204
    %v3271 = vunpack.c.l.b16 %v3205
    %v3272 = vunpack.c.h.b16 %v3205
    %v3273 = vunpack.c.l.b16 %v3206
    %v3274 = vunpack.c.l.b16 %v3207
    %v3275 = vunpack.c.h.b16 %v3207
    %v3276 = vunpack.c.l.b16 %v3208
    %v3277 = vunpack.c.l.b16 %v3209
    %v3278 = vunpack.c.h.b16 %v3209
    %v3279 = vunpack.c.l.b16 %v3210
    %v3280 = vunpack.c.l.b16 %v3211
    %v3281 = vunpack.c.h.b16 %v3211
    %v3282 = vunpack.c.l.b16 %v3212
    %v3283 = vunpack.c.l.b16 %v3213
    %v3284 = vunpack.c.h.b16 %v3213
    %v3285 = vunpack.c.l.b16 %v3214
    %v3286 = vunpack.c.l.b16 %v3215
    %v3287 = vunpack.c.h.b16 %v3215
    %v3288 = vunpack.c.l.b16 %v3216
    %v3289 = vunpack.c.l.b16 %v3217
    %v3290 = vunpack.c.h.b16 %v3217
    %v3291 = vunpack.c.l.b16 %v3218
    %v3292 = vunpack.c.l.b16 %v3219
    %v3293 = vunpack.c.h.b16 %v3219
    %v3294 = vunpack.c.l.b16 %v3220
    %v3295 = vunpack.c.l.b16 %v3221
    %v3296 = vunpack.c.h.b16 %v3221
    %v3297 = vunpack.c.l.b16 %v3222
    %v3298 = vunpack.c.l.b16 %v3223
    %v3299 = vunpack.c.h.b16 %v3223
    %v3300 = vunpack.c.l.b16 %v3224
    %v3301 = vunpack.c.l.b16 %v3225
    %v3302 = vunpack.c.h.b16 %v3225
    %v3303 = vunpack.c.l.b16 %v3226
    %v3304 = vunpack.c.l.b16 %v3227
    %v3305 = vunpack.c.h.b16 %v3227
    %v3306 = vunpack.c.l.b16 %v3228
    %v3307 = vunpack.c.l.b16 %v3229
    %v3308 = vunpack.c.h.b16 %v3229
    %v3309 = vunpack.c.l.b16 %v3230
    %v3310 = vunpack.c.l.b16 %v3231
    %v3311 = vunpack.c.h.b16 %v3231
    %v3312 = vunpack.c.l.b16 %v3232
    %v3313 = vpack.c.b16 %v3268, %v3265
    %v3314 = vpack.c.b16 %v3269, %v3266
    %v3315 = vpack.c.b16 %v3270, %v3267
    %v3316 = vpack.c.b16 %v3274, %v3271
    %v3317 = vpack.c.b16 %v3275, %v3272
    %v3318 = vpack.c.b16 %v3276, %v3273
    %v3319 = vpack.c.b16 %v3280, %v3277
    %v3320 = vpack.c.b16 %v3281, %v3278
    %v3321 = vpack.c.b16 %v3282, %v3279
    %v3322 = vpack.c.b16 %v3286, %v3283
    %v3323 = vpack.c.b16 %v3287, %v3284
    %v3324 = vpack.c.b16 %v3288, %v3285
    %v3325 = vpack.c.b16 %v3292, %v3289
    %v3326 = vpack.c.b16 %v3293, %v3290
    %v3327 = vpack.c.b16 %v3294, %v3291
    %v3328 = vpack.c.b16 %v3298, %v3295
    %v3329 = vpack.c.b16 %v3299, %v3296
    %v3330 = vpack.c.b16 %v3300, %v3297
    %v3331 = vpack.c.b16 %v3304, %v3301
    %v3332 = vpack.c.b16 %v3305, %v3302
    %v3333 = vpack.c.b16 %v3306, %v3303
    %v3334 = vpack.c.b16 %v3310, %v3307
    %v3335 = vpack.c.b16 %v3311, %v3308
    %v3336 = vpack.c.b16 %v3312, %v3309
    %3361 = vmatpush.bf16.msra.mxu0 %v3334
    %3362 = vmatpush.bf16.msra.mxu0 %v3331
    %3363 = vmatpush.bf16.msra.mxu0 %v3328
    %3364 = vmatpush.bf16.msra.mxu0 %v3325
    %3365 = vmatpush.bf16.msra.mxu0 %v3322
    %3366 = vmatpush.bf16.msra.mxu0 %v3319
    %3367 = vmatpush.bf16.msra.mxu0 %v3316
    %3368 = vmatpush.bf16.msra.mxu0 %v3313
    %3369 = vmatmul.bf16.gmra.mxu0 %v3199
    %v3370 = vpop.f32.mrf.mxu0
    %v3371 = vadd.f32 0.0, %v3370
    %v3372 = vpop.f32.mrf.mxu0
    %3373 = vdwg.mxu0
    %3374 = vmatpush.bf16.msra.mxu0 %v3335
    %3375 = vmatpush.bf16.msra.mxu0 %v3332
    %3376 = vmatpush.bf16.msra.mxu0 %v3329
    %3377 = vmatpush.bf16.msra.mxu0 %v3326
    %3378 = vmatpush.bf16.msra.mxu0 %v3323
    %3379 = vmatpush.bf16.msra.mxu0 %v3320
    %3380 = vmatpush.bf16.msra.mxu0 %v3317
    %3381 = vmatpush.bf16.msra.mxu0 %v3314
    %3382 = vmatmul.bf16.gmra.mxu0 %v3199
    %v3383 = vpop.f32.mrf.mxu0
    %v3384 = vadd.f32 0.0, %v3383
    %v3385 = vpop.f32.mrf.mxu0
    %3386 = vdwg.mxu0
    %3387 = vmatpush.bf16.msra.mxu0 %v3336
    %3388 = vmatpush.bf16.msra.mxu0 %v3333
    %3389 = vmatpush.bf16.msra.mxu0 %v3330
    %3390 = vmatpush.bf16.msra.mxu0 %v3327
    %3391 = vmatpush.bf16.msra.mxu0 %v3324
    %3392 = vmatpush.bf16.msra.mxu0 %v3321
    %3393 = vmatpush.bf16.msra.mxu0 %v3318
    %3394 = vmatpush.bf16.msra.mxu0 %v3315
    %3395 = vmatmul.bf16.gmra.mxu0 %v3199
    %v3396 = vpop.f32.mrf.mxu0
    %v3397 = vadd.f32 0.0, %v3396
    %v3398 = vpop.f32.mrf.mxu0
    %3399 = vdwg.mxu0
    %v3400 = vrot.slane %v3371, 7
    %v3401 = vsel %vm2749, %v3400, 0.0
    %v3402 = vadd.f32 %v3384, %v3401
    %v3403 = vrot.slane %v3397, 1
    %v3404 = vsel %vm2755, %v3403, 0.0
    %v3405 = vadd.f32 %v3402, %v3404
    %v3406 = vperm.slane %v3193, 2
    %v3407 = vadd.f32 %v3405, %v3406
    %v3408 = vtanh.pop %v3407
    %3409 = vst.msk [vmem:[%s4] sm:$0xff] %vm2512, %v2975
    %3411 = vrot.lane.b32.xlu0 %v3408, 3
    %v3412 = vpop.permute.xlu0 %3411
    %3414 = vst.msk [vmem:[%s4] sm:$0xff] %vm2523, %v3412
    // Predicated region
    $region22: #{_lambda_.1} parent=1 // pred_check
      _
    $region23: #{_lambda_.1} parent=1 // pred_check_branch
      %3416 = sbr.rel (0) target = $region25
    $region24: #{_lambda_.1} parent=1 // pred_region
      _
    $region25: #{_lambda_.1} parent=1 // pred_fallthru
      _
    // Predicated region
    $region26: #{_lambda_.1} parent=1 // pred_check
      _
    $region27: #{_lambda_.1} parent=1 // pred_check_branch
      %3418 = sbr.rel (0) target = $region29
    $region28: #{_lambda_.1} parent=1 // pred_region
      _
    $region29: #{_lambda_.1} parent=1 // pred_fallthru
      _
    // Predicated region
    $region30: #{_lambda_.1} parent=1 // pred_check
      _
    $region31: #{_lambda_.1} parent=1 // pred_check_branch
      %3420 = sbr.rel (0) target = $region33
    $region32: #{_lambda_.1} parent=1 // pred_region
      _
    $region33: #{_lambda_.1} parent=1 // pred_fallthru
      _
    // Predicated region
    $region34: #{_lambda_.1} parent=1 // pred_check
      _
    $region35: #{_lambda_.1} parent=1 // pred_check_branch
      %3422 = sbr.rel (0) target = $region37
    $region36: #{_lambda_.1} parent=1 // pred_region
      _
    $region37: #{_lambda_.1} parent=1 // pred_fallthru
      _
    %3423 = vsyncpa [#allocation4], 1
    %3424 = vsyncpa [#allocation6], 1

</llo_original>
